<compile_context>
chip_gen: v7x
topology: tpu7x:2x2x1
jax: 0.10.0
libtpu: 0.0.40
codegen_flags: <defaults>
</compile_context>

<pallas_src>
import functools

import jax
import jax.numpy as jnp
from jax import lax
from jax.experimental import pallas as pl
from jax.experimental.pallas import tpu as pltpu

F32 = jnp.float32
BF16 = jnp.bfloat16
I8 = jnp.int8


def _vmem_capacity():
    try:
        info = pltpu.get_tpu_info()
        cap = getattr(info, "vmem_capacity_bytes", None)
        if cap:
            return int(cap)
    except Exception:
        pass
    return 64 * 1024 * 1024          # conservative (v7x per-core VMEM)


# ----------------------------------------------------------------------------
# Generalized relational convolution (shared by relation & entity NBFNets)
# ----------------------------------------------------------------------------
def _rel_conv_kernel(h_src_ref, h_dst_ref, bnd_ref, rel_ref, adjT_ref,
                     w_comb_ref, bias_ref, gamma_ref, beta_ref,
                     out_ref, acc_ref, *, batch, dim):
    """One NBFNet generalized relational conv layer (batch-fused layout).

    Grid = (dst_tiles, src_tiles, relation_types); (s, r) are reduction axes
    accumulated into the f32 VMEM scratch:
        acc = boundary[dst_tile] + sum_{r,s} adjT[r, dst_tile, src_tile]
                                             @ (h[src_tile] * rel[r])
    where the feature axis packs all batch rows (width B*D).  At the last
    (s, r) step the combine (Linear + LayerNorm + ReLU + residual) runs per
    batch row and the lane-dense (TN, B*D) output tile is written.
    """
    s = pl.program_id(1)
    r = pl.program_id(2)

    @pl.when(jnp.logical_and(s == 0, r == 0))
    def _init():
        acc_ref[...] = bnd_ref[...]                           # boundary / self msg

    msg = h_src_ref[...] * rel_ref[0]                         # (TS, B*D) bf16
    a = adjT_ref[0].astype(jnp.float32).astype(jnp.bfloat16)  # int8 -> bf16
    acc_ref[...] += jnp.dot(a, msg,                           # bf16 MXU, f32 acc
                            preferred_element_type=jnp.float32)

    @pl.when(jnp.logical_and(s == pl.num_programs(1) - 1,
                             r == pl.num_programs(2) - 1))
    def _finalize():
        hd = h_dst_ref[...]                                   # (TN, B*D) f32
        upd = acc_ref[...]
        for b in range(batch):                                # static, unrolled
            lo, hi = b * dim, (b + 1) * dim
            hd_b = hd[:, lo:hi]                               # (TN, D)
            z = (jnp.dot(jnp.concatenate([hd_b, upd[:, lo:hi]], axis=-1),
                         w_comb_ref[...],
                         preferred_element_type=jnp.float32)
                 + bias_ref[...])
            # LayerNorm over the feature (lane) dim
            mu = jnp.mean(z, axis=-1, keepdims=True)
            var = jnp.mean((z - mu) ** 2, axis=-1, keepdims=True)
            z = (z - mu) * lax.rsqrt(var + 1e-5) * gamma_ref[...] + beta_ref[...]
            z = jnp.maximum(z, 0.0)                           # ReLU
            out_ref[:, lo:hi] = (z + hd_b).astype(out_ref.dtype)   # residual


def _rel_conv_vmem_bytes(tn, ts, bd, d):
    """Resident-set estimate: double-buffered block windows + f32 accumulator."""
    per_step = (ts * bd * 2          # h_src tile, bf16
                + 3 * tn * bd * 4    # h_dst / boundary / out tiles, f32
                + bd * 2             # relation row, bf16
                + tn * ts            # adjT tile, int8
                + 2 * d * d * 4      # W_comb
                + 3 * d * 4)         # bias, gamma, beta
    return 2 * per_step + tn * bd * 4


def _choose_tiles(n_dst, n_src, bd, d, budget):
    """Pick (dst tile, src tile) fitting budget; keep dst tiles MXU-sized."""
    def cands(n, sizes):
        out = [t for t in sizes if t < n and n % t == 0]
        out.append(n)
        return sorted(set(out))

    tn_cands = cands(n_dst, (8, 16, 32, 64, 128, 256, 512))
    ts_cands = cands(n_src, (128, 256, 512, 1024, 2048, 4096))
    best = (tn_cands[0], ts_cands[0])
    best_key = None
    for tn in tn_cands:
        for ts in ts_cands:
            if _rel_conv_vmem_bytes(tn, ts, bd, d) > budget:
                continue
            # prefer filling the 256-row MXU, then big contraction tiles
            key = (min(tn, 256), min(ts, 4096), tn, ts)
            if best_key is None or key > best_key:
                best_key, best = key, (tn, ts)
    tn, ts = best
    return tn, ts, _rel_conv_vmem_bytes(tn, ts, bd, d)


def rel_conv(h_fused, boundary_fused, rel_fused, adjT, w_comb, bias, gamma,
             beta, *, batch, dim):
    """h_fused, boundary_fused: (N, B*D) f32;  rel_fused: (NR, B*D) f32;
    adjT: (NR, N, N) int8 with adjT[r, dst, src];  w_comb: (2D, D)."""
    n, bd = h_fused.shape
    nr = adjT.shape[0]
    cap = _vmem_capacity()
    tn, ts, est = _choose_tiles(n, n, bd, dim, int(0.7 * cap))
    nt, ns = n // tn, n // ts
    vmem_limit = int(min(cap, max(2 * est, 32 * 1024 * 1024)))

    h_src = h_fused.astype(BF16)                       # MXU-side copy, bf16
    rel3 = rel_fused.astype(BF16).reshape(nr, 1, bd)   # (NR, 1, B*D)

    kern = functools.partial(_rel_conv_kernel, batch=batch, dim=dim)
    return pl.pallas_call(
        kern,
        out_shape=jax.ShapeDtypeStruct((n, bd), F32),
        grid=(nt, ns, nr),
        in_specs=[
            pl.BlockSpec((ts, bd), lambda t, s, r: (s, 0)),        # h (src, bf16)
            pl.BlockSpec((tn, bd), lambda t, s, r: (t, 0)),        # h (dst, f32)
            pl.BlockSpec((tn, bd), lambda t, s, r: (t, 0)),        # boundary tile
            pl.BlockSpec((1, 1, bd), lambda t, s, r: (r, 0, 0)),   # rel row, bf16
            pl.BlockSpec((1, tn, ts), lambda t, s, r: (r, t, s)),  # adjT tile, i8
            pl.BlockSpec((2 * dim, dim), lambda t, s, r: (0, 0)),  # W_comb
            pl.BlockSpec((1, dim), lambda t, s, r: (0, 0)),        # bias
            pl.BlockSpec((1, dim), lambda t, s, r: (0, 0)),        # ln gamma
            pl.BlockSpec((1, dim), lambda t, s, r: (0, 0)),        # ln beta
        ],
        out_specs=pl.BlockSpec((tn, bd), lambda t, s, r: (t, 0)),
        scratch_shapes=[pltpu.VMEM((tn, bd), jnp.float32)],
        compiler_params=pltpu.CompilerParams(
            dimension_semantics=("parallel", "arbitrary", "arbitrary"),
            vmem_limit_bytes=vmem_limit),
    )(h_src, h_fused, boundary_fused, rel3, adjT, w_comb, bias, gamma, beta)


# ----------------------------------------------------------------------------
# Final scoring MLP over all candidate nodes (tiled over nodes)
# ----------------------------------------------------------------------------
def _score_kernel(h_ref, qb_ref, w1h_ref, w2r_ref, b2_ref, out_ref, *,
                  batch, dim):
    """score(b, node) = w2 . relu(h[b,node] @ W1h + (q[b] @ W1q + b1)) + b2.

    Input nodes arrive in the fused (TS, B*D) layout; the query branch is
    precomputed outside (qb).  Scores are produced lane-dense as (B, TS)."""
    rows = []
    for b in range(batch):                                   # static, unrolled
        hb = h_ref[:, b * dim:(b + 1) * dim]                 # (TS, D)
        z = jnp.dot(hb, w1h_ref[...], preferred_element_type=jnp.float32)
        z = jnp.maximum(z + qb_ref[b:b + 1, :], 0.0)
        rows.append(lax.dot_general(w2r_ref[...], z,         # (1,D) x (TS,D)^T
                                    (((1,), (1,)), ((), ())),
                                    preferred_element_type=jnp.float32))
    out_ref[...] = jnp.concatenate(rows, axis=0) + b2_ref[...]


def score_all_nodes(h_fused, qb, w1h, w2_row, b2, *, batch, dim):
    n, bd = h_fused.shape
    cap = _vmem_capacity()

    def sc_bytes(t):
        return 2 * (t * bd * 4 + batch * dim * 4 + dim * dim * 4
                    + dim * 4 + 4 + batch * t * 4)

    cand = [n] + [t for t in (4096, 2048, 1024, 512, 256, 128)
                  if t < n and n % t == 0]
    tsc = next((t for t in cand if sc_bytes(t) <= int(0.7 * cap)), cand[-1])
    vmem_limit = int(min(cap, max(2 * sc_bytes(tsc), 32 * 1024 * 1024)))

    kern = functools.partial(_score_kernel, batch=batch, dim=dim)
    return pl.pallas_call(
        kern,
        out_shape=jax.ShapeDtypeStruct((batch, n), F32),
        grid=(n // tsc,),
        in_specs=[
            pl.BlockSpec((tsc, bd), lambda t: (t, 0)),       # entity features
            pl.BlockSpec((batch, dim), lambda t: (0, 0)),    # fused query bias
            pl.BlockSpec((dim, dim), lambda t: (0, 0)),      # W1h
            pl.BlockSpec((1, dim), lambda t: (0, 0)),        # w2 as a row
            pl.BlockSpec((1, 1), lambda t: (0, 0)),          # b2
        ],
        out_specs=pl.BlockSpec((batch, tsc), lambda t: (0, t)),
        compiler_params=pltpu.CompilerParams(
            dimension_semantics=("parallel",),
            vmem_limit_bytes=vmem_limit),
    )(h_fused, qb, w1h, w2_row, b2)


# ----------------------------------------------------------------------------
# ULTRA forward (glue in plain JAX, hot paths in kernels above)
# ----------------------------------------------------------------------------
def ultra_forward(params, data, batch):
    """batch: (B, K, 3) int triples (head, tail, relation); returns (B, K)."""
    adjT_rel = data["rel_graph_adjT"]              # (F, R, R) int8
    adjT_ent = data["ent_graph_adjT"]              # (R, N, N) int8
    B = batch.shape[0]
    R = adjT_rel.shape[1]
    N = adjT_ent.shape[1]
    D = params["rel_query"].shape[0]

    query_rels = batch[:, 0, 2]                    # query relation per row
    h_index = batch[:, 0, 0]                       # shared head per row
    t_index = batch[:, :, 1]                       # candidate tails

    # ---- relation model (RelNBFNet): indicator boundary at query relation ----
    ind_r = (jnp.arange(R)[:, None] == query_rels[None, :]).astype(F32)  # (R, B)
    h = (ind_r[:, :, None] * params["rel_query"][None, None, :]).reshape(R, B * D)
    boundary_rel = h
    for lp in params["rel_layers"]:
        rel_fused = jnp.tile(lp["meta_rel"], (1, B))          # shared -> (F, B*D)
        h = rel_conv(h, boundary_rel, rel_fused, adjT_rel,
                     lp["w_comb"], lp["bias"], lp["gamma"], lp["beta"],
                     batch=B, dim=D)
    rel_rep_fused = h                                         # (R, B*D)
    rel_rep = rel_rep_fused.reshape(R, B, D).transpose(1, 0, 2)   # (B, R, D)

    # ---- entity model (EntityNBFNet): query-relation repr placed at head ----
    q_vec = rel_rep[jnp.arange(B), query_rels]                # (B, D)
    ind_n = (jnp.arange(N)[:, None] == h_index[None, :]).astype(F32)   # (N, B)
    he = (ind_n[:, :, None] * q_vec[None, :, :]).reshape(N, B * D)
    boundary_ent = he
    for lp in params["ent_layers"]:
        he = rel_conv(he, boundary_ent, rel_rep_fused, adjT_ent,
                      lp["w_comb"], lp["bias"], lp["gamma"], lp["beta"],
                      batch=B, dim=D)

    # ---- scoring MLP: hoist the query branch, gather candidate tails ----
    qb = q_vec @ params["mlp_w1q"] + params["mlp_b1"]         # (B, D)
    scores_all = score_all_nodes(he, qb, params["mlp_w1h"],
                                 params["mlp_w2"].T, params["mlp_b2"],
                                 batch=B, dim=D)              # (B, N)
    score = jnp.take_along_axis(scores_all, t_index, axis=1)  # (B, K)
    return score


# ----------------------------------------------------------------------------
# Deterministic parameter / data construction
# ----------------------------------------------------------------------------
def init_params(key, num_meta_rel, dim, t_rel, t_ent):
    def lin(k, shape, scale=0.1):
        return scale * jax.random.normal(k, shape, F32)

    keys = iter(jax.random.split(key, 2 * (t_rel + t_ent) + 8))
    rel_layers = []
    for _ in range(t_rel):
        rel_layers.append(dict(
            meta_rel=lin(next(keys), (num_meta_rel, dim)),
            w_comb=lin(next(keys), (2 * dim, dim)),    # [W_self; W_msg]
            bias=jnp.zeros((1, dim), F32),
            gamma=jnp.ones((1, dim), F32),
            beta=jnp.zeros((1, dim), F32),
        ))
    ent_layers = []
    for _ in range(t_ent):
        ent_layers.append(dict(
            w_comb=lin(next(keys), (2 * dim, dim)),
            bias=jnp.zeros((1, dim), F32),
            gamma=jnp.ones((1, dim), F32),
            beta=jnp.zeros((1, dim), F32),
        ))
    return dict(
        rel_query=lin(next(keys), (dim,)),
        rel_layers=rel_layers,
        ent_layers=ent_layers,
        mlp_w1h=lin(next(keys), (dim, dim)),
        mlp_w1q=lin(next(keys), (dim, dim)),
        mlp_b1=jnp.zeros((1, dim), F32),
        mlp_w2=lin(next(keys), (dim, 1)),
        mlp_b2=jnp.zeros((1, 1), F32),
    )


if __name__ == "__main__":
    key = jax.random.PRNGKey(0)
    N, R, F, D = 16, 8, 4, 128         # entities, relations, meta-rel types, hidden
    B, K = 2, 4                        # batch rows, candidates per row
    T_REL, T_ENT = 2, 2                # GNN layers per model
    k_graph, k_relgraph, k_batch, k_param = jax.random.split(key, 4)

    # Entity graph: random edges (src, dst, rel) densified to int8 adjT[r,dst,src].
    E = 48
    ksrc, kdst, krel = jax.random.split(k_graph, 3)
    src = jax.random.randint(ksrc, (E,), 0, N)
    dst = jax.random.randint(kdst, (E,), 0, N)
    rel = jax.random.randint(krel, (E,), 0, R)
    A_ent = jnp.zeros((R, N, N), F32).at[rel, src, dst].add(1.0)  # multigraph-safe
    adjT_ent = jnp.swapaxes(A_ent, 1, 2).astype(I8)               # (R, N_dst, N_src)

    # Relation graph: relations as nodes, F fundamental interaction types.
    E2 = 24
    ks2, kd2, kr2 = jax.random.split(k_relgraph, 3)
    src2 = jax.random.randint(ks2, (E2,), 0, R)
    dst2 = jax.random.randint(kd2, (E2,), 0, R)
    rel2 = jax.random.randint(kr2, (E2,), 0, F)
    A_rel = jnp.zeros((F, R, R), F32).at[rel2, src2, dst2].add(1.0)
    adjT_rel = jnp.swapaxes(A_rel, 1, 2).astype(I8)               # (F, R_dst, R_src)

    data = {"rel_graph_adjT": adjT_rel, "ent_graph_adjT": adjT_ent}

    # Batch of triples (tail-batch mode: each row shares head & relation).
    kh, kt, kr = jax.random.split(k_batch, 3)
    heads = jnp.broadcast_to(jax.random.randint(kh, (B, 1), 0, N), (B, K))
    tails = jax.random.randint(kt, (B, K), 0, N)
    rels = jnp.broadcast_to(jax.random.randint(kr, (B, 1), 0, R), (B, K))
    batch = jnp.stack([heads, tails, rels], axis=-1).astype(jnp.int32)  # (B, K, 3)

    params = init_params(k_param, F, D, T_REL, T_ENT)

    fwd = jax.jit(ultra_forward)
    score = fwd(params, data, batch)
    score = jax.block_until_ready(score)
    assert score.shape == (B, K)
    assert bool(jnp.all(jnp.isfinite(score)))
    print("KERNEL_OK")
</pallas_src>

<mosaic_0001>
module attributes {stable_mosaic.version = 11 : i64} {
  func.func @_rel_conv_kernel(%arg0: i32, %arg1: i32, %arg2: i32, %arg3: memref<8x256xbf16, #tpu.memory_space<vmem>>, %arg4: memref<8x256xf32, #tpu.memory_space<vmem>>, %arg5: memref<8x256xf32, #tpu.memory_space<vmem>>, %arg6: memref<1x1x256xbf16, #tpu.memory_space<vmem>>, %arg7: memref<1x8x8xi8, #tpu.memory_space<vmem>>, %arg8: memref<256x128xf32, #tpu.memory_space<vmem>>, %arg9: memref<1x128xf32, #tpu.memory_space<vmem>>, %arg10: memref<1x128xf32, #tpu.memory_space<vmem>>, %arg11: memref<1x128xf32, #tpu.memory_space<vmem>>, %arg12: memref<8x256xf32, #tpu.memory_space<vmem>>, %arg13: memref<8x256xf32, #tpu.memory_space<vmem>>) attributes {dimension_semantics = [#tpu.dimension_semantics<parallel>, #tpu.dimension_semantics<arbitrary>, #tpu.dimension_semantics<arbitrary>], iteration_bounds = array<i64: 1, 1, 4>, scalar_prefetch = 0 : i64, scratch_operands = 1 : i64, tpu.core_type = #tpu.core_type<tc>, window_params = [{transform_indices = @transform_0, window_bounds = array<i64: 8, 256>}, {transform_indices = @transform_1, window_bounds = array<i64: 8, 256>}, {transform_indices = @transform_2, window_bounds = array<i64: 8, 256>}, {transform_indices = @transform_3, window_bounds = array<i64: 1, 1, 256>}, {transform_indices = @transform_4, window_bounds = array<i64: 1, 8, 8>}, {pipeline_mode = #tpu.pipeline_mode<synchronous>, transform_indices = @transform_5, window_bounds = array<i64: 256, 128>}, {pipeline_mode = #tpu.pipeline_mode<synchronous>, transform_indices = @transform_6, window_bounds = array<i64: 1, 128>}, {pipeline_mode = #tpu.pipeline_mode<synchronous>, transform_indices = @transform_7, window_bounds = array<i64: 1, 128>}, {pipeline_mode = #tpu.pipeline_mode<synchronous>, transform_indices = @transform_8, window_bounds = array<i64: 1, 128>}, {transform_indices = @transform_9, window_bounds = array<i64: 8, 256>}]} {
    %c0_i32 = arith.constant 0 : i32
    %0 = arith.cmpi eq, %arg1, %c0_i32 : i32
    %c0_i32_0 = arith.constant 0 : i32
    %1 = arith.cmpi eq, %arg2, %c0_i32_0 : i32
    %2 = arith.andi %0, %1 : i1
    %3 = arith.extui %2 : i1 to i32
    %c0_i32_1 = arith.constant 0 : i32
    %4 = arith.cmpi ne, %3, %c0_i32_1 : i32
    scf.if %4 {
      %c0_15 = arith.constant 0 : index
      %c0_16 = arith.constant 0 : index
      %23 = vector.load %arg5[%c0_15, %c0_16] : memref<8x256xf32, #tpu.memory_space<vmem>>, vector<8x256xf32>
      %c0_17 = arith.constant 0 : index
      %c0_18 = arith.constant 0 : index
      %24 = vector.load %arg13[%c0_17, %c0_18] : memref<8x256xf32, #tpu.memory_space<vmem>>, vector<8x256xf32>
      tpu.vector_store %arg13[%c0_17, %c0_18], %23 {strides = array<i32>} : memref<8x256xf32, #tpu.memory_space<vmem>>, vector<8x256xf32>,
    } else {
    }
    %c0 = arith.constant 0 : index
    %c0_2 = arith.constant 0 : index
    %5 = vector.load %arg3[%c0, %c0_2] : memref<8x256xbf16, #tpu.memory_space<vmem>>, vector<8x256xbf16>
    %c0_3 = arith.constant 0 : index
    %c0_4 = arith.constant 0 : index
    %c0_5 = arith.constant 0 : index
    %6 = vector.load %arg6[%c0_3, %c0_4, %c0_5] : memref<1x1x256xbf16, #tpu.memory_space<vmem>>, vector<1x1x256xbf16>
    %7 = vector.shape_cast %6 : vector<1x1x256xbf16> to vector<1x256xbf16>
    %8 = vector.broadcast %7 : vector<1x256xbf16> to vector<8x256xbf16>
    %9 = arith.mulf %5, %8 : vector<8x256xbf16>
    %c0_6 = arith.constant 0 : index
    %c0_7 = arith.constant 0 : index
    %c0_8 = arith.constant 0 : index
    %10 = vector.load %arg7[%c0_6, %c0_7, %c0_8] : memref<1x8x8xi8, #tpu.memory_space<vmem>>, vector<1x8x8xi8>
    %11 = vector.shape_cast %10 : vector<1x8x8xi8> to vector<8x8xi8>
    %12 = arith.sitofp %11 : vector<8x8xi8> to vector<8x8xf32>
    %13 = arith.truncf %12 : vector<8x8xf32> to vector<8x8xbf16>
    %c0_9 = arith.constant 0 : index
    %c0_10 = arith.constant 0 : index
    %14 = vector.load %arg13[%c0_9, %c0_10] : memref<8x256xf32, #tpu.memory_space<vmem>>, vector<8x256xf32>
    %cst = arith.constant dense<0.000000e+00> : vector<8x256xf32>
    %15 = tpu.matmul %13, %9, %cst {dimension_numbers = #tpu.dot_dimension_numbers<[1], [0], [0], [1], [0, 0, 1, 1], [], []>} : vector<8x8xbf16>, vector<8x256xbf16>, vector<8x256xf32> -> vector<8x256xf32>
    %16 = arith.addf %14, %15 : vector<8x256xf32>
    %c0_11 = arith.constant 0 : index
    %c0_12 = arith.constant 0 : index
    %17 = vector.load %arg13[%c0_11, %c0_12] : memref<8x256xf32, #tpu.memory_space<vmem>>, vector<8x256xf32>
    tpu.vector_store %arg13[%c0_11, %c0_12], %16 {strides = array<i32>} : memref<8x256xf32, #tpu.memory_space<vmem>>, vector<8x256xf32>,
    %c0_i32_13 = arith.constant 0 : i32
    %18 = arith.cmpi eq, %arg1, %c0_i32_13 : i32
    %c3_i32 = arith.constant 3 : i32
    %19 = arith.cmpi eq, %arg2, %c3_i32 : i32
    %20 = arith.andi %18, %19 : i1
    %21 = arith.extui %20 : i1 to i32
    %c0_i32_14 = arith.constant 0 : i32
    %22 = arith.cmpi ne, %21, %c0_i32_14 : i32
    scf.if %22 {
      %c0_15 = arith.constant 0 : index
      %c0_16 = arith.constant 0 : index
      %23 = vector.load %arg4[%c0_15, %c0_16] : memref<8x256xf32, #tpu.memory_space<vmem>>, vector<8x256xf32>
      %c0_17 = arith.constant 0 : index
      %c0_18 = arith.constant 0 : index
      %24 = vector.load %arg13[%c0_17, %c0_18] : memref<8x256xf32, #tpu.memory_space<vmem>>, vector<8x256xf32>
      %25 = vector.extract_strided_slice %23 {offsets = [0, 0], sizes = [8, 128], strides = [1, 1]} : vector<8x256xf32> to vector<8x128xf32>
      %26 = vector.extract_strided_slice %24 {offsets = [0, 0], sizes = [8, 128], strides = [1, 1]} : vector<8x256xf32> to vector<8x128xf32>
      %27 = tpu.concatenate %25, %26 in 1 : vector<8x128xf32>, vector<8x128xf32> -> vector<8x256xf32>
      %c0_19 = arith.constant 0 : index
      %c0_20 = arith.constant 0 : index
      %28 = vector.load %arg8[%c0_19, %c0_20] : memref<256x128xf32, #tpu.memory_space<vmem>>, vector<256x128xf32>
      %cst_21 = arith.constant dense<0.000000e+00> : vector<8x128xf32>
      %29 = tpu.matmul %27, %28, %cst_21 {dimension_numbers = #tpu.dot_dimension_numbers<[1], [0], [0], [1], [0, 0, 1, 1], [], []>} : vector<8x256xf32>, vector<256x128xf32>, vector<8x128xf32> -> vector<8x128xf32>
      %c0_22 = arith.constant 0 : index
      %c0_23 = arith.constant 0 : index
      %30 = vector.load %arg9[%c0_22, %c0_23] : memref<1x128xf32, #tpu.memory_space<vmem>>, vector<1x128xf32>
      %31 = vector.broadcast %30 : vector<1x128xf32> to vector<8x128xf32>
      %32 = arith.addf %29, %31 : vector<8x128xf32>
      %cst_24 = arith.constant dense<0.000000e+00> : vector<8xf32>
      %33 = vector.multi_reduction <add>, %32, %cst_24 [1] : vector<8x128xf32> to vector<8xf32>
      %34 = vector.shape_cast %33 : vector<8xf32> to vector<8x1xf32>
      %cst_25 = arith.constant 1.280000e+02 : f32
      %35 = vector.broadcast %cst_25 : f32 to vector<8x1xf32>
      %36 = arith.divf %34, %35 : vector<8x1xf32>
      %37 = vector.broadcast %36 : vector<8x1xf32> to vector<8x128xf32>
      %38 = arith.subf %32, %37 : vector<8x128xf32>
      %39 = arith.mulf %38, %38 : vector<8x128xf32>
      %cst_26 = arith.constant dense<0.000000e+00> : vector<8xf32>
      %40 = vector.multi_reduction <add>, %39, %cst_26 [1] : vector<8x128xf32> to vector<8xf32>
      %41 = vector.shape_cast %40 : vector<8xf32> to vector<8x1xf32>
      %cst_27 = arith.constant 1.280000e+02 : f32
      %42 = vector.broadcast %cst_27 : f32 to vector<8x1xf32>
      %43 = arith.divf %41, %42 : vector<8x1xf32>
      %44 = vector.broadcast %36 : vector<8x1xf32> to vector<8x128xf32>
      %45 = arith.subf %32, %44 : vector<8x128xf32>
      %cst_28 = arith.constant 9.99999974E-6 : f32
      %46 = vector.broadcast %cst_28 : f32 to vector<8x1xf32>
      %47 = arith.addf %43, %46 : vector<8x1xf32>
      %48 = math.rsqrt %47 : vector<8x1xf32>
      %49 = vector.broadcast %48 : vector<8x1xf32> to vector<8x128xf32>
      %50 = arith.mulf %45, %49 : vector<8x128xf32>
      %c0_29 = arith.constant 0 : index
      %c0_30 = arith.constant 0 : index
      %51 = vector.load %arg10[%c0_29, %c0_30] : memref<1x128xf32, #tpu.memory_space<vmem>>, vector<1x128xf32>
      %52 = vector.broadcast %51 : vector<1x128xf32> to vector<8x128xf32>
      %53 = arith.mulf %50, %52 : vector<8x128xf32>
      %c0_31 = arith.constant 0 : index
      %c0_32 = arith.constant 0 : index
      %54 = vector.load %arg11[%c0_31, %c0_32] : memref<1x128xf32, #tpu.memory_space<vmem>>, vector<1x128xf32>
      %55 = vector.broadcast %54 : vector<1x128xf32> to vector<8x128xf32>
      %56 = arith.addf %53, %55 : vector<8x128xf32>
      %cst_33 = arith.constant 0.000000e+00 : f32
      %57 = vector.broadcast %cst_33 : f32 to vector<8x128xf32>
      %58 = arith.maximumf %56, %57 : vector<8x128xf32>
      %59 = arith.addf %58, %25 : vector<8x128xf32>
      %c0_34 = arith.constant 0 : index
      %c0_35 = arith.constant 0 : index
      %60 = vector.load %arg12[%c0_34, %c0_35] : memref<8x256xf32, #tpu.memory_space<vmem>>, vector<8x128xf32>
      tpu.vector_store %arg12[%c0_34, %c0_35], %59 {strides = array<i32>} : memref<8x256xf32, #tpu.memory_space<vmem>>, vector<8x128xf32>,
      %61 = vector.extract_strided_slice %23 {offsets = [0, 128], sizes = [8, 128], strides = [1, 1]} : vector<8x256xf32> to vector<8x128xf32>
      %62 = vector.extract_strided_slice %24 {offsets = [0, 128], sizes = [8, 128], strides = [1, 1]} : vector<8x256xf32> to vector<8x128xf32>
      %63 = tpu.concatenate %61, %62 in 1 : vector<8x128xf32>, vector<8x128xf32> -> vector<8x256xf32>
      %c0_36 = arith.constant 0 : index
      %c0_37 = arith.constant 0 : index
      %64 = vector.load %arg8[%c0_36, %c0_37] : memref<256x128xf32, #tpu.memory_space<vmem>>, vector<256x128xf32>
      %cst_38 = arith.constant dense<0.000000e+00> : vector<8x128xf32>
      %65 = tpu.matmul %63, %64, %cst_38 {dimension_numbers = #tpu.dot_dimension_numbers<[1], [0], [0], [1], [0, 0, 1, 1], [], []>} : vector<8x256xf32>, vector<256x128xf32>, vector<8x128xf32> -> vector<8x128xf32>
      %c0_39 = arith.constant 0 : index
      %c0_40 = arith.constant 0 : index
      %66 = vector.load %arg9[%c0_39, %c0_40] : memref<1x128xf32, #tpu.memory_space<vmem>>, vector<1x128xf32>
      %67 = vector.broadcast %66 : vector<1x128xf32> to vector<8x128xf32>
      %68 = arith.addf %65, %67 : vector<8x128xf32>
      %cst_41 = arith.constant dense<0.000000e+00> : vector<8xf32>
      %69 = vector.multi_reduction <add>, %68, %cst_41 [1] : vector<8x128xf32> to vector<8xf32>
      %70 = vector.shape_cast %69 : vector<8xf32> to vector<8x1xf32>
      %cst_42 = arith.constant 1.280000e+02 : f32
      %71 = vector.broadcast %cst_42 : f32 to vector<8x1xf32>
      %72 = arith.divf %70, %71 : vector<8x1xf32>
      %73 = vector.broadcast %72 : vector<8x1xf32> to vector<8x128xf32>
      %74 = arith.subf %68, %73 : vector<8x128xf32>
      %75 = arith.mulf %74, %74 : vector<8x128xf32>
      %cst_43 = arith.constant dense<0.000000e+00> : vector<8xf32>
      %76 = vector.multi_reduction <add>, %75, %cst_43 [1] : vector<8x128xf32> to vector<8xf32>
      %77 = vector.shape_cast %76 : vector<8xf32> to vector<8x1xf32>
      %cst_44 = arith.constant 1.280000e+02 : f32
      %78 = vector.broadcast %cst_44 : f32 to vector<8x1xf32>
      %79 = arith.divf %77, %78 : vector<8x1xf32>
      %80 = vector.broadcast %72 : vector<8x1xf32> to vector<8x128xf32>
      %81 = arith.subf %68, %80 : vector<8x128xf32>
      %cst_45 = arith.constant 9.99999974E-6 : f32
      %82 = vector.broadcast %cst_45 : f32 to vector<8x1xf32>
      %83 = arith.addf %79, %82 : vector<8x1xf32>
      %84 = math.rsqrt %83 : vector<8x1xf32>
      %85 = vector.broadcast %84 : vector<8x1xf32> to vector<8x128xf32>
      %86 = arith.mulf %81, %85 : vector<8x128xf32>
      %c0_46 = arith.constant 0 : index
      %c0_47 = arith.constant 0 : index
      %87 = vector.load %arg10[%c0_46, %c0_47] : memref<1x128xf32, #tpu.memory_space<vmem>>, vector<1x128xf32>
      %88 = vector.broadcast %87 : vector<1x128xf32> to vector<8x128xf32>
      %89 = arith.mulf %86, %88 : vector<8x128xf32>
      %c0_48 = arith.constant 0 : index
      %c0_49 = arith.constant 0 : index
      %90 = vector.load %arg11[%c0_48, %c0_49] : memref<1x128xf32, #tpu.memory_space<vmem>>, vector<1x128xf32>
      %91 = vector.broadcast %90 : vector<1x128xf32> to vector<8x128xf32>
      %92 = arith.addf %89, %91 : vector<8x128xf32>
      %cst_50 = arith.constant 0.000000e+00 : f32
      %93 = vector.broadcast %cst_50 : f32 to vector<8x128xf32>
      %94 = arith.maximumf %92, %93 : vector<8x128xf32>
      %95 = arith.addf %94, %61 : vector<8x128xf32>
      %c0_51 = arith.constant 0 : index
      %c128 = arith.constant 128 : index
      %96 = vector.load %arg12[%c0_51, %c128] : memref<8x256xf32, #tpu.memory_space<vmem>>, vector<8x128xf32>
      tpu.vector_store %arg12[%c0_51, %c128], %95 {strides = array<i32>} : memref<8x256xf32, #tpu.memory_space<vmem>>, vector<8x128xf32>,
    } else {
    }
    return
  }
  func.func @transform_0(%arg0: i32, %arg1: i32, %arg2: i32) -> (i32, i32) {
    %c0_i32 = arith.constant 0 : i32
    %c0_i32_0 = arith.constant 0 : i32
    return %arg1, %c0_i32 : i32, i32
  }
  func.func @transform_1(%arg0: i32, %arg1: i32, %arg2: i32) -> (i32, i32) {
    %c0_i32 = arith.constant 0 : i32
    %c0_i32_0 = arith.constant 0 : i32
    return %arg0, %c0_i32 : i32, i32
  }
  func.func @transform_2(%arg0: i32, %arg1: i32, %arg2: i32) -> (i32, i32) {
    %c0_i32 = arith.constant 0 : i32
    %c0_i32_0 = arith.constant 0 : i32
    return %arg0, %c0_i32 : i32, i32
  }
  func.func @transform_3(%arg0: i32, %arg1: i32, %arg2: i32) -> (i32, i32, i32) {
    %c0_i32 = arith.constant 0 : i32
    %c0_i32_0 = arith.constant 0 : i32
    %c0_i32_1 = arith.constant 0 : i32
    return %arg2, %c0_i32, %c0_i32_0 : i32, i32, i32
  }
  func.func @transform_4(%arg0: i32, %arg1: i32, %arg2: i32) -> (i32, i32, i32) {
    %c0_i32 = arith.constant 0 : i32
    return %arg2, %arg0, %arg1 : i32, i32, i32
  }
  func.func @transform_5(%arg0: i32, %arg1: i32, %arg2: i32) -> (i32, i32) {
    %c0_i32 = arith.constant 0 : i32
    %c0_i32_0 = arith.constant 0 : i32
    %c0_i32_1 = arith.constant 0 : i32
    return %c0_i32, %c0_i32_0 : i32, i32
  }
  func.func @transform_6(%arg0: i32, %arg1: i32, %arg2: i32) -> (i32, i32) {
    %c0_i32 = arith.constant 0 : i32
    %c0_i32_0 = arith.constant 0 : i32
    %c0_i32_1 = arith.constant 0 : i32
    return %c0_i32, %c0_i32_0 : i32, i32
  }
  func.func @transform_7(%arg0: i32, %arg1: i32, %arg2: i32) -> (i32, i32) {
    %c0_i32 = arith.constant 0 : i32
    %c0_i32_0 = arith.constant 0 : i32
    %c0_i32_1 = arith.constant 0 : i32
    return %c0_i32, %c0_i32_0 : i32, i32
  }
  func.func @transform_8(%arg0: i32, %arg1: i32, %arg2: i32) -> (i32, i32) {
    %c0_i32 = arith.constant 0 : i32
    %c0_i32_0 = arith.constant 0 : i32
    %c0_i32_1 = arith.constant 0 : i32
    return %c0_i32, %c0_i32_0 : i32, i32
  }
  func.func @transform_9(%arg0: i32, %arg1: i32, %arg2: i32) -> (i32, i32) {
    %c0_i32 = arith.constant 0 : i32
    %c0_i32_0 = arith.constant 0 : i32
    return %arg0, %c0_i32 : i32, i32
  }
}

module attributes {stable_mosaic.version = 11 : i64} {
  func.func @_rel_conv_kernel(%arg0: i32, %arg1: i32, %arg2: i32, %arg3: memref<8x256xbf16, #tpu.memory_space<vmem>>, %arg4: memref<8x256xf32, #tpu.memory_space<vmem>>, %arg5: memref<8x256xf32, #tpu.memory_space<vmem>>, %arg6: memref<1x1x256xbf16, #tpu.memory_space<vmem>>, %arg7: memref<1x8x8xi8, #tpu.memory_space<vmem>>, %arg8: memref<256x128xf32, #tpu.memory_space<vmem>>, %arg9: memref<1x128xf32, #tpu.memory_space<vmem>>, %arg10: memref<1x128xf32, #tpu.memory_space<vmem>>, %arg11: memref<1x128xf32, #tpu.memory_space<vmem>>, %arg12: memref<8x256xf32, #tpu.memory_space<vmem>>, %arg13: memref<8x256xf32, #tpu.memory_space<vmem>>) attributes {dimension_semantics = [#tpu.dimension_semantics<parallel>, #tpu.dimension_semantics<arbitrary>, #tpu.dimension_semantics<arbitrary>], iteration_bounds = array<i64: 1, 1, 4>, scalar_prefetch = 0 : i64, scratch_operands = 1 : i64, tpu.core_type = #tpu.core_type<tc>, window_params = [{transform_indices = @transform_0, window_bounds = array<i64: 8, 256>}, {transform_indices = @transform_1, window_bounds = array<i64: 8, 256>}, {transform_indices = @transform_2, window_bounds = array<i64: 8, 256>}, {transform_indices = @transform_3, window_bounds = array<i64: 1, 1, 256>}, {transform_indices = @transform_4, window_bounds = array<i64: 1, 8, 8>}, {pipeline_mode = #tpu.pipeline_mode<synchronous>, transform_indices = @transform_5, window_bounds = array<i64: 256, 128>}, {pipeline_mode = #tpu.pipeline_mode<synchronous>, transform_indices = @transform_6, window_bounds = array<i64: 1, 128>}, {pipeline_mode = #tpu.pipeline_mode<synchronous>, transform_indices = @transform_7, window_bounds = array<i64: 1, 128>}, {pipeline_mode = #tpu.pipeline_mode<synchronous>, transform_indices = @transform_8, window_bounds = array<i64: 1, 128>}, {transform_indices = @transform_9, window_bounds = array<i64: 8, 256>}]} {
    %c0_i32 = arith.constant 0 : i32
    %0 = arith.cmpi eq, %arg1, %c0_i32 : i32
    %c0_i32_0 = arith.constant 0 : i32
    %1 = arith.cmpi eq, %arg2, %c0_i32_0 : i32
    %2 = arith.andi %0, %1 : i1
    %3 = arith.extui %2 : i1 to i32
    %c0_i32_1 = arith.constant 0 : i32
    %4 = arith.cmpi ne, %3, %c0_i32_1 : i32
    scf.if %4 {
      %c0_15 = arith.constant 0 : index
      %c0_16 = arith.constant 0 : index
      %23 = vector.load %arg5[%c0_15, %c0_16] : memref<8x256xf32, #tpu.memory_space<vmem>>, vector<8x256xf32>
      %c0_17 = arith.constant 0 : index
      %c0_18 = arith.constant 0 : index
      %24 = vector.load %arg13[%c0_17, %c0_18] : memref<8x256xf32, #tpu.memory_space<vmem>>, vector<8x256xf32>
      tpu.vector_store %arg13[%c0_17, %c0_18], %23 {strides = array<i32>} : memref<8x256xf32, #tpu.memory_space<vmem>>, vector<8x256xf32>,
    } else {
    }
    %c0 = arith.constant 0 : index
    %c0_2 = arith.constant 0 : index
    %5 = vector.load %arg3[%c0, %c0_2] : memref<8x256xbf16, #tpu.memory_space<vmem>>, vector<8x256xbf16>
    %c0_3 = arith.constant 0 : index
    %c0_4 = arith.constant 0 : index
    %c0_5 = arith.constant 0 : index
    %6 = vector.load %arg6[%c0_3, %c0_4, %c0_5] : memref<1x1x256xbf16, #tpu.memory_space<vmem>>, vector<1x1x256xbf16>
    %7 = vector.shape_cast %6 : vector<1x1x256xbf16> to vector<1x256xbf16>
    %8 = vector.broadcast %7 : vector<1x256xbf16> to vector<8x256xbf16>
    %9 = arith.mulf %5, %8 : vector<8x256xbf16>
    %c0_6 = arith.constant 0 : index
    %c0_7 = arith.constant 0 : index
    %c0_8 = arith.constant 0 : index
    %10 = vector.load %arg7[%c0_6, %c0_7, %c0_8] : memref<1x8x8xi8, #tpu.memory_space<vmem>>, vector<1x8x8xi8>
    %11 = vector.shape_cast %10 : vector<1x8x8xi8> to vector<8x8xi8>
    %12 = arith.sitofp %11 : vector<8x8xi8> to vector<8x8xf32>
    %13 = arith.truncf %12 : vector<8x8xf32> to vector<8x8xbf16>
    %c0_9 = arith.constant 0 : index
    %c0_10 = arith.constant 0 : index
    %14 = vector.load %arg13[%c0_9, %c0_10] : memref<8x256xf32, #tpu.memory_space<vmem>>, vector<8x256xf32>
    %cst = arith.constant dense<0.000000e+00> : vector<8x256xf32>
    %15 = tpu.matmul %13, %9, %cst {dimension_numbers = #tpu.dot_dimension_numbers<[1], [0], [0], [1], [0, 0, 1, 1], [], []>} : vector<8x8xbf16>, vector<8x256xbf16>, vector<8x256xf32> -> vector<8x256xf32>
    %16 = arith.addf %14, %15 : vector<8x256xf32>
    %c0_11 = arith.constant 0 : index
    %c0_12 = arith.constant 0 : index
    %17 = vector.load %arg13[%c0_11, %c0_12] : memref<8x256xf32, #tpu.memory_space<vmem>>, vector<8x256xf32>
    tpu.vector_store %arg13[%c0_11, %c0_12], %16 {strides = array<i32>} : memref<8x256xf32, #tpu.memory_space<vmem>>, vector<8x256xf32>,
    %c0_i32_13 = arith.constant 0 : i32
    %18 = arith.cmpi eq, %arg1, %c0_i32_13 : i32
    %c3_i32 = arith.constant 3 : i32
    %19 = arith.cmpi eq, %arg2, %c3_i32 : i32
    %20 = arith.andi %18, %19 : i1
    %21 = arith.extui %20 : i1 to i32
    %c0_i32_14 = arith.constant 0 : i32
    %22 = arith.cmpi ne, %21, %c0_i32_14 : i32
    scf.if %22 {
      %c0_15 = arith.constant 0 : index
      %c0_16 = arith.constant 0 : index
      %23 = vector.load %arg4[%c0_15, %c0_16] : memref<8x256xf32, #tpu.memory_space<vmem>>, vector<8x256xf32>
      %c0_17 = arith.constant 0 : index
      %c0_18 = arith.constant 0 : index
      %24 = vector.load %arg13[%c0_17, %c0_18] : memref<8x256xf32, #tpu.memory_space<vmem>>, vector<8x256xf32>
      %25 = vector.extract_strided_slice %23 {offsets = [0, 0], sizes = [8, 128], strides = [1, 1]} : vector<8x256xf32> to vector<8x128xf32>
      %26 = vector.extract_strided_slice %24 {offsets = [0, 0], sizes = [8, 128], strides = [1, 1]} : vector<8x256xf32> to vector<8x128xf32>
      %27 = tpu.concatenate %25, %26 in 1 : vector<8x128xf32>, vector<8x128xf32> -> vector<8x256xf32>
      %c0_19 = arith.constant 0 : index
      %c0_20 = arith.constant 0 : index
      %28 = vector.load %arg8[%c0_19, %c0_20] : memref<256x128xf32, #tpu.memory_space<vmem>>, vector<256x128xf32>
      %cst_21 = arith.constant dense<0.000000e+00> : vector<8x128xf32>
      %29 = tpu.matmul %27, %28, %cst_21 {dimension_numbers = #tpu.dot_dimension_numbers<[1], [0], [0], [1], [0, 0, 1, 1], [], []>} : vector<8x256xf32>, vector<256x128xf32>, vector<8x128xf32> -> vector<8x128xf32>
      %c0_22 = arith.constant 0 : index
      %c0_23 = arith.constant 0 : index
      %30 = vector.load %arg9[%c0_22, %c0_23] : memref<1x128xf32, #tpu.memory_space<vmem>>, vector<1x128xf32>
      %31 = vector.broadcast %30 : vector<1x128xf32> to vector<8x128xf32>
      %32 = arith.addf %29, %31 : vector<8x128xf32>
      %cst_24 = arith.constant dense<0.000000e+00> : vector<8xf32>
      %33 = vector.multi_reduction <add>, %32, %cst_24 [1] : vector<8x128xf32> to vector<8xf32>
      %34 = vector.shape_cast %33 : vector<8xf32> to vector<8x1xf32>
      %cst_25 = arith.constant 1.280000e+02 : f32
      %35 = vector.broadcast %cst_25 : f32 to vector<8x1xf32>
      %36 = arith.divf %34, %35 : vector<8x1xf32>
      %37 = vector.broadcast %36 : vector<8x1xf32> to vector<8x128xf32>
      %38 = arith.subf %32, %37 : vector<8x128xf32>
      %39 = arith.mulf %38, %38 : vector<8x128xf32>
      %cst_26 = arith.constant dense<0.000000e+00> : vector<8xf32>
      %40 = vector.multi_reduction <add>, %39, %cst_26 [1] : vector<8x128xf32> to vector<8xf32>
      %41 = vector.shape_cast %40 : vector<8xf32> to vector<8x1xf32>
      %cst_27 = arith.constant 1.280000e+02 : f32
      %42 = vector.broadcast %cst_27 : f32 to vector<8x1xf32>
      %43 = arith.divf %41, %42 : vector<8x1xf32>
      %44 = vector.broadcast %36 : vector<8x1xf32> to vector<8x128xf32>
      %45 = arith.subf %32, %44 : vector<8x128xf32>
      %cst_28 = arith.constant 9.99999974E-6 : f32
      %46 = vector.broadcast %cst_28 : f32 to vector<8x1xf32>
      %47 = arith.addf %43, %46 : vector<8x1xf32>
      %48 = math.rsqrt %47 : vector<8x1xf32>
      %49 = vector.broadcast %48 : vector<8x1xf32> to vector<8x128xf32>
      %50 = arith.mulf %45, %49 : vector<8x128xf32>
      %c0_29 = arith.constant 0 : index
      %c0_30 = arith.constant 0 : index
      %51 = vector.load %arg10[%c0_29, %c0_30] : memref<1x128xf32, #tpu.memory_space<vmem>>, vector<1x128xf32>
      %52 = vector.broadcast %51 : vector<1x128xf32> to vector<8x128xf32>
      %53 = arith.mulf %50, %52 : vector<8x128xf32>
      %c0_31 = arith.constant 0 : index
      %c0_32 = arith.constant 0 : index
      %54 = vector.load %arg11[%c0_31, %c0_32] : memref<1x128xf32, #tpu.memory_space<vmem>>, vector<1x128xf32>
      %55 = vector.broadcast %54 : vector<1x128xf32> to vector<8x128xf32>
      %56 = arith.addf %53, %55 : vector<8x128xf32>
      %cst_33 = arith.constant 0.000000e+00 : f32
      %57 = vector.broadcast %cst_33 : f32 to vector<8x128xf32>
      %58 = arith.maximumf %56, %57 : vector<8x128xf32>
      %59 = arith.addf %58, %25 : vector<8x128xf32>
      %c0_34 = arith.constant 0 : index
      %c0_35 = arith.constant 0 : index
      %60 = vector.load %arg12[%c0_34, %c0_35] : memref<8x256xf32, #tpu.memory_space<vmem>>, vector<8x128xf32>
      tpu.vector_store %arg12[%c0_34, %c0_35], %59 {strides = array<i32>} : memref<8x256xf32, #tpu.memory_space<vmem>>, vector<8x128xf32>,
      %61 = vector.extract_strided_slice %23 {offsets = [0, 128], sizes = [8, 128], strides = [1, 1]} : vector<8x256xf32> to vector<8x128xf32>
      %62 = vector.extract_strided_slice %24 {offsets = [0, 128], sizes = [8, 128], strides = [1, 1]} : vector<8x256xf32> to vector<8x128xf32>
      %63 = tpu.concatenate %61, %62 in 1 : vector<8x128xf32>, vector<8x128xf32> -> vector<8x256xf32>
      %c0_36 = arith.constant 0 : index
      %c0_37 = arith.constant 0 : index
      %64 = vector.load %arg8[%c0_36, %c0_37] : memref<256x128xf32, #tpu.memory_space<vmem>>, vector<256x128xf32>
      %cst_38 = arith.constant dense<0.000000e+00> : vector<8x128xf32>
      %65 = tpu.matmul %63, %64, %cst_38 {dimension_numbers = #tpu.dot_dimension_numbers<[1], [0], [0], [1], [0, 0, 1, 1], [], []>} : vector<8x256xf32>, vector<256x128xf32>, vector<8x128xf32> -> vector<8x128xf32>
      %c0_39 = arith.constant 0 : index
      %c0_40 = arith.constant 0 : index
      %66 = vector.load %arg9[%c0_39, %c0_40] : memref<1x128xf32, #tpu.memory_space<vmem>>, vector<1x128xf32>
      %67 = vector.broadcast %66 : vector<1x128xf32> to vector<8x128xf32>
      %68 = arith.addf %65, %67 : vector<8x128xf32>
      %cst_41 = arith.constant dense<0.000000e+00> : vector<8xf32>
      %69 = vector.multi_reduction <add>, %68, %cst_41 [1] : vector<8x128xf32> to vector<8xf32>
      %70 = vector.shape_cast %69 : vector<8xf32> to vector<8x1xf32>
      %cst_42 = arith.constant 1.280000e+02 : f32
      %71 = vector.broadcast %cst_42 : f32 to vector<8x1xf32>
      %72 = arith.divf %70, %71 : vector<8x1xf32>
      %73 = vector.broadcast %72 : vector<8x1xf32> to vector<8x128xf32>
      %74 = arith.subf %68, %73 : vector<8x128xf32>
      %75 = arith.mulf %74, %74 : vector<8x128xf32>
      %cst_43 = arith.constant dense<0.000000e+00> : vector<8xf32>
      %76 = vector.multi_reduction <add>, %75, %cst_43 [1] : vector<8x128xf32> to vector<8xf32>
      %77 = vector.shape_cast %76 : vector<8xf32> to vector<8x1xf32>
      %cst_44 = arith.constant 1.280000e+02 : f32
      %78 = vector.broadcast %cst_44 : f32 to vector<8x1xf32>
      %79 = arith.divf %77, %78 : vector<8x1xf32>
      %80 = vector.broadcast %72 : vector<8x1xf32> to vector<8x128xf32>
      %81 = arith.subf %68, %80 : vector<8x128xf32>
      %cst_45 = arith.constant 9.99999974E-6 : f32
      %82 = vector.broadcast %cst_45 : f32 to vector<8x1xf32>
      %83 = arith.addf %79, %82 : vector<8x1xf32>
      %84 = math.rsqrt %83 : vector<8x1xf32>
      %85 = vector.broadcast %84 : vector<8x1xf32> to vector<8x128xf32>
      %86 = arith.mulf %81, %85 : vector<8x128xf32>
      %c0_46 = arith.constant 0 : index
      %c0_47 = arith.constant 0 : index
      %87 = vector.load %arg10[%c0_46, %c0_47] : memref<1x128xf32, #tpu.memory_space<vmem>>, vector<1x128xf32>
      %88 = vector.broadcast %87 : vector<1x128xf32> to vector<8x128xf32>
      %89 = arith.mulf %86, %88 : vector<8x128xf32>
      %c0_48 = arith.constant 0 : index
      %c0_49 = arith.constant 0 : index
      %90 = vector.load %arg11[%c0_48, %c0_49] : memref<1x128xf32, #tpu.memory_space<vmem>>, vector<1x128xf32>
      %91 = vector.broadcast %90 : vector<1x128xf32> to vector<8x128xf32>
      %92 = arith.addf %89, %91 : vector<8x128xf32>
      %cst_50 = arith.constant 0.000000e+00 : f32
      %93 = vector.broadcast %cst_50 : f32 to vector<8x128xf32>
      %94 = arith.maximumf %92, %93 : vector<8x128xf32>
      %95 = arith.addf %94, %61 : vector<8x128xf32>
      %c0_51 = arith.constant 0 : index
      %c128 = arith.constant 128 : index
      %96 = vector.load %arg12[%c0_51, %c128] : memref<8x256xf32, #tpu.memory_space<vmem>>, vector<8x128xf32>
      tpu.vector_store %arg12[%c0_51, %c128], %95 {strides = array<i32>} : memref<8x256xf32, #tpu.memory_space<vmem>>, vector<8x128xf32>,
    } else {
    }
    return
  }
  func.func @transform_0(%arg0: i32, %arg1: i32, %arg2: i32) -> (i32, i32) {
    %c0_i32 = arith.constant 0 : i32
    %c0_i32_0 = arith.constant 0 : i32
    return %arg1, %c0_i32 : i32, i32
  }
  func.func @transform_1(%arg0: i32, %arg1: i32, %arg2: i32) -> (i32, i32) {
    %c0_i32 = arith.constant 0 : i32
    %c0_i32_0 = arith.constant 0 : i32
    return %arg0, %c0_i32 : i32, i32
  }
  func.func @transform_2(%arg0: i32, %arg1: i32, %arg2: i32) -> (i32, i32) {
    %c0_i32 = arith.constant 0 : i32
    %c0_i32_0 = arith.constant 0 : i32
    return %arg0, %c0_i32 : i32, i32
  }
  func.func @transform_3(%arg0: i32, %arg1: i32, %arg2: i32) -> (i32, i32, i32) {
    %c0_i32 = arith.constant 0 : i32
    %c0_i32_0 = arith.constant 0 : i32
    %c0_i32_1 = arith.constant 0 : i32
    return %arg2, %c0_i32, %c0_i32_0 : i32, i32, i32
  }
  func.func @transform_4(%arg0: i32, %arg1: i32, %arg2: i32) -> (i32, i32, i32) {
    %c0_i32 = arith.constant 0 : i32
    return %arg2, %arg0, %arg1 : i32, i32, i32
  }
  func.func @transform_5(%arg0: i32, %arg1: i32, %arg2: i32) -> (i32, i32) {
    %c0_i32 = arith.constant 0 : i32
    %c0_i32_0 = arith.constant 0 : i32
    %c0_i32_1 = arith.constant 0 : i32
    return %c0_i32, %c0_i32_0 : i32, i32
  }
  func.func @transform_6(%arg0: i32, %arg1: i32, %arg2: i32) -> (i32, i32) {
    %c0_i32 = arith.constant 0 : i32
    %c0_i32_0 = arith.constant 0 : i32
    %c0_i32_1 = arith.constant 0 : i32
    return %c0_i32, %c0_i32_0 : i32, i32
  }
  func.func @transform_7(%arg0: i32, %arg1: i32, %arg2: i32) -> (i32, i32) {
    %c0_i32 = arith.constant 0 : i32
    %c0_i32_0 = arith.constant 0 : i32
    %c0_i32_1 = arith.constant 0 : i32
    return %c0_i32, %c0_i32_0 : i32, i32
  }
  func.func @transform_8(%arg0: i32, %arg1: i32, %arg2: i32) -> (i32, i32) {
    %c0_i32 = arith.constant 0 : i32
    %c0_i32_0 = arith.constant 0 : i32
    %c0_i32_1 = arith.constant 0 : i32
    return %c0_i32, %c0_i32_0 : i32, i32
  }
  func.func @transform_9(%arg0: i32, %arg1: i32, %arg2: i32) -> (i32, i32) {
    %c0_i32 = arith.constant 0 : i32
    %c0_i32_0 = arith.constant 0 : i32
    return %arg0, %c0_i32 : i32, i32
  }
}

module attributes {stable_mosaic.version = 11 : i64} {
  func.func @_rel_conv_kernel(%arg0: i32, %arg1: i32, %arg2: i32, %arg3: memref<16x256xbf16, #tpu.memory_space<vmem>>, %arg4: memref<16x256xf32, #tpu.memory_space<vmem>>, %arg5: memref<16x256xf32, #tpu.memory_space<vmem>>, %arg6: memref<1x1x256xbf16, #tpu.memory_space<vmem>>, %arg7: memref<1x16x16xi8, #tpu.memory_space<vmem>>, %arg8: memref<256x128xf32, #tpu.memory_space<vmem>>, %arg9: memref<1x128xf32, #tpu.memory_space<vmem>>, %arg10: memref<1x128xf32, #tpu.memory_space<vmem>>, %arg11: memref<1x128xf32, #tpu.memory_space<vmem>>, %arg12: memref<16x256xf32, #tpu.memory_space<vmem>>, %arg13: memref<16x256xf32, #tpu.memory_space<vmem>>) attributes {dimension_semantics = [#tpu.dimension_semantics<parallel>, #tpu.dimension_semantics<arbitrary>, #tpu.dimension_semantics<arbitrary>], iteration_bounds = array<i64: 1, 1, 8>, scalar_prefetch = 0 : i64, scratch_operands = 1 : i64, tpu.core_type = #tpu.core_type<tc>, window_params = [{transform_indices = @transform_0, window_bounds = array<i64: 16, 256>}, {transform_indices = @transform_1, window_bounds = array<i64: 16, 256>}, {transform_indices = @transform_2, window_bounds = array<i64: 16, 256>}, {transform_indices = @transform_3, window_bounds = array<i64: 1, 1, 256>}, {transform_indices = @transform_4, window_bounds = array<i64: 1, 16, 16>}, {pipeline_mode = #tpu.pipeline_mode<synchronous>, transform_indices = @transform_5, window_bounds = array<i64: 256, 128>}, {pipeline_mode = #tpu.pipeline_mode<synchronous>, transform_indices = @transform_6, window_bounds = array<i64: 1, 128>}, {pipeline_mode = #tpu.pipeline_mode<synchronous>, transform_indices = @transform_7, window_bounds = array<i64: 1, 128>}, {pipeline_mode = #tpu.pipeline_mode<synchronous>, transform_indices = @transform_8, window_bounds = array<i64: 1, 128>}, {transform_indices = @transform_9, window_bounds = array<i64: 16, 256>}]} {
    %c0_i32 = arith.constant 0 : i32
    %0 = arith.cmpi eq, %arg1, %c0_i32 : i32
    %c0_i32_0 = arith.constant 0 : i32
    %1 = arith.cmpi eq, %arg2, %c0_i32_0 : i32
    %2 = arith.andi %0, %1 : i1
    %3 = arith.extui %2 : i1 to i32
    %c0_i32_1 = arith.constant 0 : i32
    %4 = arith.cmpi ne, %3, %c0_i32_1 : i32
    scf.if %4 {
      %c0_15 = arith.constant 0 : index
      %c0_16 = arith.constant 0 : index
      %23 = vector.load %arg5[%c0_15, %c0_16] : memref<16x256xf32, #tpu.memory_space<vmem>>, vector<16x256xf32>
      %c0_17 = arith.constant 0 : index
      %c0_18 = arith.constant 0 : index
      %24 = vector.load %arg13[%c0_17, %c0_18] : memref<16x256xf32, #tpu.memory_space<vmem>>, vector<16x256xf32>
      tpu.vector_store %arg13[%c0_17, %c0_18], %23 {strides = array<i32>} : memref<16x256xf32, #tpu.memory_space<vmem>>, vector<16x256xf32>,
    } else {
    }
    %c0 = arith.constant 0 : index
    %c0_2 = arith.constant 0 : index
    %5 = vector.load %arg3[%c0, %c0_2] : memref<16x256xbf16, #tpu.memory_space<vmem>>, vector<16x256xbf16>
    %c0_3 = arith.constant 0 : index
    %c0_4 = arith.constant 0 : index
    %c0_5 = arith.constant 0 : index
    %6 = vector.load %arg6[%c0_3, %c0_4, %c0_5] : memref<1x1x256xbf16, #tpu.memory_space<vmem>>, vector<1x1x256xbf16>
    %7 = vector.shape_cast %6 : vector<1x1x256xbf16> to vector<1x256xbf16>
    %8 = vector.broadcast %7 : vector<1x256xbf16> to vector<16x256xbf16>
    %9 = arith.mulf %5, %8 : vector<16x256xbf16>
    %c0_6 = arith.constant 0 : index
    %c0_7 = arith.constant 0 : index
    %c0_8 = arith.constant 0 : index
    %10 = vector.load %arg7[%c0_6, %c0_7, %c0_8] : memref<1x16x16xi8, #tpu.memory_space<vmem>>, vector<1x16x16xi8>
    %11 = vector.shape_cast %10 : vector<1x16x16xi8> to vector<16x16xi8>
    %12 = arith.sitofp %11 : vector<16x16xi8> to vector<16x16xf32>
    %13 = arith.truncf %12 : vector<16x16xf32> to vector<16x16xbf16>
    %c0_9 = arith.constant 0 : index
    %c0_10 = arith.constant 0 : index
    %14 = vector.load %arg13[%c0_9, %c0_10] : memref<16x256xf32, #tpu.memory_space<vmem>>, vector<16x256xf32>
    %cst = arith.constant dense<0.000000e+00> : vector<16x256xf32>
    %15 = tpu.matmul %13, %9, %cst {dimension_numbers = #tpu.dot_dimension_numbers<[1], [0], [0], [1], [0, 0, 1, 1], [], []>} : vector<16x16xbf16>, vector<16x256xbf16>, vector<16x256xf32> -> vector<16x256xf32>
    %16 = arith.addf %14, %15 : vector<16x256xf32>
    %c0_11 = arith.constant 0 : index
    %c0_12 = arith.constant 0 : index
    %17 = vector.load %arg13[%c0_11, %c0_12] : memref<16x256xf32, #tpu.memory_space<vmem>>, vector<16x256xf32>
    tpu.vector_store %arg13[%c0_11, %c0_12], %16 {strides = array<i32>} : memref<16x256xf32, #tpu.memory_space<vmem>>, vector<16x256xf32>,
    %c0_i32_13 = arith.constant 0 : i32
    %18 = arith.cmpi eq, %arg1, %c0_i32_13 : i32
    %c7_i32 = arith.constant 7 : i32
    %19 = arith.cmpi eq, %arg2, %c7_i32 : i32
    %20 = arith.andi %18, %19 : i1
    %21 = arith.extui %20 : i1 to i32
    %c0_i32_14 = arith.constant 0 : i32
    %22 = arith.cmpi ne, %21, %c0_i32_14 : i32
    scf.if %22 {
      %c0_15 = arith.constant 0 : index
      %c0_16 = arith.constant 0 : index
      %23 = vector.load %arg4[%c0_15, %c0_16] : memref<16x256xf32, #tpu.memory_space<vmem>>, vector<16x256xf32>
      %c0_17 = arith.constant 0 : index
      %c0_18 = arith.constant 0 : index
      %24 = vector.load %arg13[%c0_17, %c0_18] : memref<16x256xf32, #tpu.memory_space<vmem>>, vector<16x256xf32>
      %25 = vector.extract_strided_slice %23 {offsets = [0, 0], sizes = [16, 128], strides = [1, 1]} : vector<16x256xf32> to vector<16x128xf32>
      %26 = vector.extract_strided_slice %24 {offsets = [0, 0], sizes = [16, 128], strides = [1, 1]} : vector<16x256xf32> to vector<16x128xf32>
      %27 = tpu.concatenate %25, %26 in 1 : vector<16x128xf32>, vector<16x128xf32> -> vector<16x256xf32>
      %c0_19 = arith.constant 0 : index
      %c0_20 = arith.constant 0 : index
      %28 = vector.load %arg8[%c0_19, %c0_20] : memref<256x128xf32, #tpu.memory_space<vmem>>, vector<256x128xf32>
      %cst_21 = arith.constant dense<0.000000e+00> : vector<16x128xf32>
      %29 = tpu.matmul %27, %28, %cst_21 {dimension_numbers = #tpu.dot_dimension_numbers<[1], [0], [0], [1], [0, 0, 1, 1], [], []>} : vector<16x256xf32>, vector<256x128xf32>, vector<16x128xf32> -> vector<16x128xf32>
      %c0_22 = arith.constant 0 : index
      %c0_23 = arith.constant 0 : index
      %30 = vector.load %arg9[%c0_22, %c0_23] : memref<1x128xf32, #tpu.memory_space<vmem>>, vector<1x128xf32>
      %31 = vector.broadcast %30 : vector<1x128xf32> to vector<16x128xf32>
      %32 = arith.addf %29, %31 : vector<16x128xf32>
      %cst_24 = arith.constant dense<0.000000e+00> : vector<16xf32>
      %33 = vector.multi_reduction <add>, %32, %cst_24 [1] : vector<16x128xf32> to vector<16xf32>
      %34 = vector.shape_cast %33 : vector<16xf32> to vector<16x1xf32>
      %cst_25 = arith.constant 1.280000e+02 : f32
      %35 = vector.broadcast %cst_25 : f32 to vector<16x1xf32>
      %36 = arith.divf %34, %35 : vector<16x1xf32>
      %37 = vector.broadcast %36 : vector<16x1xf32> to vector<16x128xf32>
      %38 = arith.subf %32, %37 : vector<16x128xf32>
      %39 = arith.mulf %38, %38 : vector<16x128xf32>
      %cst_26 = arith.constant dense<0.000000e+00> : vector<16xf32>
      %40 = vector.multi_reduction <add>, %39, %cst_26 [1] : vector<16x128xf32> to vector<16xf32>
      %41 = vector.shape_cast %40 : vector<16xf32> to vector<16x1xf32>
      %cst_27 = arith.constant 1.280000e+02 : f32
      %42 = vector.broadcast %cst_27 : f32 to vector<16x1xf32>
      %43 = arith.divf %41, %42 : vector<16x1xf32>
      %44 = vector.broadcast %36 : vector<16x1xf32> to vector<16x128xf32>
      %45 = arith.subf %32, %44 : vector<16x128xf32>
      %cst_28 = arith.constant 9.99999974E-6 : f32
      %46 = vector.broadcast %cst_28 : f32 to vector<16x1xf32>
      %47 = arith.addf %43, %46 : vector<16x1xf32>
      %48 = math.rsqrt %47 : vector<16x1xf32>
      %49 = vector.broadcast %48 : vector<16x1xf32> to vector<16x128xf32>
      %50 = arith.mulf %45, %49 : vector<16x128xf32>
      %c0_29 = arith.constant 0 : index
      %c0_30 = arith.constant 0 : index
      %51 = vector.load %arg10[%c0_29, %c0_30] : memref<1x128xf32, #tpu.memory_space<vmem>>, vector<1x128xf32>
      %52 = vector.broadcast %51 : vector<1x128xf32> to vector<16x128xf32>
      %53 = arith.mulf %50, %52 : vector<16x128xf32>
      %c0_31 = arith.constant 0 : index
      %c0_32 = arith.constant 0 : index
      %54 = vector.load %arg11[%c0_31, %c0_32] : memref<1x128xf32, #tpu.memory_space<vmem>>, vector<1x128xf32>
      %55 = vector.broadcast %54 : vector<1x128xf32> to vector<16x128xf32>
      %56 = arith.addf %53, %55 : vector<16x128xf32>
      %cst_33 = arith.constant 0.000000e+00 : f32
      %57 = vector.broadcast %cst_33 : f32 to vector<16x128xf32>
      %58 = arith.maximumf %56, %57 : vector<16x128xf32>
      %59 = arith.addf %58, %25 : vector<16x128xf32>
      %c0_34 = arith.constant 0 : index
      %c0_35 = arith.constant 0 : index
      %60 = vector.load %arg12[%c0_34, %c0_35] : memref<16x256xf32, #tpu.memory_space<vmem>>, vector<16x128xf32>
      tpu.vector_store %arg12[%c0_34, %c0_35], %59 {strides = array<i32>} : memref<16x256xf32, #tpu.memory_space<vmem>>, vector<16x128xf32>,
      %61 = vector.extract_strided_slice %23 {offsets = [0, 128], sizes = [16, 128], strides = [1, 1]} : vector<16x256xf32> to vector<16x128xf32>
      %62 = vector.extract_strided_slice %24 {offsets = [0, 128], sizes = [16, 128], strides = [1, 1]} : vector<16x256xf32> to vector<16x128xf32>
      %63 = tpu.concatenate %61, %62 in 1 : vector<16x128xf32>, vector<16x128xf32> -> vector<16x256xf32>
      %c0_36 = arith.constant 0 : index
      %c0_37 = arith.constant 0 : index
      %64 = vector.load %arg8[%c0_36, %c0_37] : memref<256x128xf32, #tpu.memory_space<vmem>>, vector<256x128xf32>
      %cst_38 = arith.constant dense<0.000000e+00> : vector<16x128xf32>
      %65 = tpu.matmul %63, %64, %cst_38 {dimension_numbers = #tpu.dot_dimension_numbers<[1], [0], [0], [1], [0, 0, 1, 1], [], []>} : vector<16x256xf32>, vector<256x128xf32>, vector<16x128xf32> -> vector<16x128xf32>
      %c0_39 = arith.constant 0 : index
      %c0_40 = arith.constant 0 : index
      %66 = vector.load %arg9[%c0_39, %c0_40] : memref<1x128xf32, #tpu.memory_space<vmem>>, vector<1x128xf32>
      %67 = vector.broadcast %66 : vector<1x128xf32> to vector<16x128xf32>
      %68 = arith.addf %65, %67 : vector<16x128xf32>
      %cst_41 = arith.constant dense<0.000000e+00> : vector<16xf32>
      %69 = vector.multi_reduction <add>, %68, %cst_41 [1] : vector<16x128xf32> to vector<16xf32>
      %70 = vector.shape_cast %69 : vector<16xf32> to vector<16x1xf32>
      %cst_42 = arith.constant 1.280000e+02 : f32
      %71 = vector.broadcast %cst_42 : f32 to vector<16x1xf32>
      %72 = arith.divf %70, %71 : vector<16x1xf32>
      %73 = vector.broadcast %72 : vector<16x1xf32> to vector<16x128xf32>
      %74 = arith.subf %68, %73 : vector<16x128xf32>
      %75 = arith.mulf %74, %74 : vector<16x128xf32>
      %cst_43 = arith.constant dense<0.000000e+00> : vector<16xf32>
      %76 = vector.multi_reduction <add>, %75, %cst_43 [1] : vector<16x128xf32> to vector<16xf32>
      %77 = vector.shape_cast %76 : vector<16xf32> to vector<16x1xf32>
      %cst_44 = arith.constant 1.280000e+02 : f32
      %78 = vector.broadcast %cst_44 : f32 to vector<16x1xf32>
      %79 = arith.divf %77, %78 : vector<16x1xf32>
      %80 = vector.broadcast %72 : vector<16x1xf32> to vector<16x128xf32>
      %81 = arith.subf %68, %80 : vector<16x128xf32>
      %cst_45 = arith.constant 9.99999974E-6 : f32
      %82 = vector.broadcast %cst_45 : f32 to vector<16x1xf32>
      %83 = arith.addf %79, %82 : vector<16x1xf32>
      %84 = math.rsqrt %83 : vector<16x1xf32>
      %85 = vector.broadcast %84 : vector<16x1xf32> to vector<16x128xf32>
      %86 = arith.mulf %81, %85 : vector<16x128xf32>
      %c0_46 = arith.constant 0 : index
      %c0_47 = arith.constant 0 : index
      %87 = vector.load %arg10[%c0_46, %c0_47] : memref<1x128xf32, #tpu.memory_space<vmem>>, vector<1x128xf32>
      %88 = vector.broadcast %87 : vector<1x128xf32> to vector<16x128xf32>
      %89 = arith.mulf %86, %88 : vector<16x128xf32>
      %c0_48 = arith.constant 0 : index
      %c0_49 = arith.constant 0 : index
      %90 = vector.load %arg11[%c0_48, %c0_49] : memref<1x128xf32, #tpu.memory_space<vmem>>, vector<1x128xf32>
      %91 = vector.broadcast %90 : vector<1x128xf32> to vector<16x128xf32>
      %92 = arith.addf %89, %91 : vector<16x128xf32>
      %cst_50 = arith.constant 0.000000e+00 : f32
      %93 = vector.broadcast %cst_50 : f32 to vector<16x128xf32>
      %94 = arith.maximumf %92, %93 : vector<16x128xf32>
      %95 = arith.addf %94, %61 : vector<16x128xf32>
      %c0_51 = arith.constant 0 : index
      %c128 = arith.constant 128 : index
      %96 = vector.load %arg12[%c0_51, %c128] : memref<16x256xf32, #tpu.memory_space<vmem>>, vector<16x128xf32>
      tpu.vector_store %arg12[%c0_51, %c128], %95 {strides = array<i32>} : memref<16x256xf32, #tpu.memory_space<vmem>>, vector<16x128xf32>,
    } else {
    }
    return
  }
  func.func @transform_0(%arg0: i32, %arg1: i32, %arg2: i32) -> (i32, i32) {
    %c0_i32 = arith.constant 0 : i32
    %c0_i32_0 = arith.constant 0 : i32
    return %arg1, %c0_i32 : i32, i32
  }
  func.func @transform_1(%arg0: i32, %arg1: i32, %arg2: i32) -> (i32, i32) {
    %c0_i32 = arith.constant 0 : i32
    %c0_i32_0 = arith.constant 0 : i32
    return %arg0, %c0_i32 : i32, i32
  }
  func.func @transform_2(%arg0: i32, %arg1: i32, %arg2: i32) -> (i32, i32) {
    %c0_i32 = arith.constant 0 : i32
    %c0_i32_0 = arith.constant 0 : i32
    return %arg0, %c0_i32 : i32, i32
  }
  func.func @transform_3(%arg0: i32, %arg1: i32, %arg2: i32) -> (i32, i32, i32) {
    %c0_i32 = arith.constant 0 : i32
    %c0_i32_0 = arith.constant 0 : i32
    %c0_i32_1 = arith.constant 0 : i32
    return %arg2, %c0_i32, %c0_i32_0 : i32, i32, i32
  }
  func.func @transform_4(%arg0: i32, %arg1: i32, %arg2: i32) -> (i32, i32, i32) {
    %c0_i32 = arith.constant 0 : i32
    return %arg2, %arg0, %arg1 : i32, i32, i32
  }
  func.func @transform_5(%arg0: i32, %arg1: i32, %arg2: i32) -> (i32, i32) {
    %c0_i32 = arith.constant 0 : i32
    %c0_i32_0 = arith.constant 0 : i32
    %c0_i32_1 = arith.constant 0 : i32
    return %c0_i32, %c0_i32_0 : i32, i32
  }
  func.func @transform_6(%arg0: i32, %arg1: i32, %arg2: i32) -> (i32, i32) {
    %c0_i32 = arith.constant 0 : i32
    %c0_i32_0 = arith.constant 0 : i32
    %c0_i32_1 = arith.constant 0 : i32
    return %c0_i32, %c0_i32_0 : i32, i32
  }
  func.func @transform_7(%arg0: i32, %arg1: i32, %arg2: i32) -> (i32, i32) {
    %c0_i32 = arith.constant 0 : i32
    %c0_i32_0 = arith.constant 0 : i32
    %c0_i32_1 = arith.constant 0 : i32
    return %c0_i32, %c0_i32_0 : i32, i32
  }
  func.func @transform_8(%arg0: i32, %arg1: i32, %arg2: i32) -> (i32, i32) {
    %c0_i32 = arith.constant 0 : i32
    %c0_i32_0 = arith.constant 0 : i32
    %c0_i32_1 = arith.constant 0 : i32
    return %c0_i32, %c0_i32_0 : i32, i32
  }
  func.func @transform_9(%arg0: i32, %arg1: i32, %arg2: i32) -> (i32, i32) {
    %c0_i32 = arith.constant 0 : i32
    %c0_i32_0 = arith.constant 0 : i32
    return %arg0, %c0_i32 : i32, i32
  }
}

module attributes {stable_mosaic.version = 11 : i64} {
  func.func @_score_kernel(%arg0: i32, %arg1: memref<16x256xf32, #tpu.memory_space<vmem>>, %arg2: memref<2x128xf32, #tpu.memory_space<vmem>>, %arg3: memref<128x128xf32, #tpu.memory_space<vmem>>, %arg4: memref<1x128xf32, #tpu.memory_space<vmem>>, %arg5: memref<1x1xf32, #tpu.memory_space<vmem>>, %arg6: memref<2x16xf32, #tpu.memory_space<vmem>>) attributes {dimension_semantics = [#tpu.dimension_semantics<parallel>], iteration_bounds = array<i64: 1>, scalar_prefetch = 0 : i64, scratch_operands = 0 : i64, tpu.core_type = #tpu.core_type<tc>, window_params = [{transform_indices = @transform_0, window_bounds = array<i64: 16, 256>}, {pipeline_mode = #tpu.pipeline_mode<synchronous>, transform_indices = @transform_1, window_bounds = array<i64: 2, 128>}, {pipeline_mode = #tpu.pipeline_mode<synchronous>, transform_indices = @transform_2, window_bounds = array<i64: 128, 128>}, {pipeline_mode = #tpu.pipeline_mode<synchronous>, transform_indices = @transform_3, window_bounds = array<i64: 1, 128>}, {pipeline_mode = #tpu.pipeline_mode<synchronous>, transform_indices = @transform_4, window_bounds = array<i64: 1, 1>}, {transform_indices = @transform_5, window_bounds = array<i64: 2, 16>}]} {
    %c0 = arith.constant 0 : index
    %c0_0 = arith.constant 0 : index
    %0 = vector.load %arg1[%c0, %c0_0] : memref<16x256xf32, #tpu.memory_space<vmem>>, vector<16x128xf32>
    %c0_1 = arith.constant 0 : index
    %c0_2 = arith.constant 0 : index
    %1 = vector.load %arg3[%c0_1, %c0_2] : memref<128x128xf32, #tpu.memory_space<vmem>>, vector<128x128xf32>
    %cst = arith.constant dense<0.000000e+00> : vector<16x128xf32>
    %2 = tpu.matmul %0, %1, %cst {dimension_numbers = #tpu.dot_dimension_numbers<[1], [0], [0], [1], [0, 0, 1, 1], [], []>} : vector<16x128xf32>, vector<128x128xf32>, vector<16x128xf32> -> vector<16x128xf32>
    %c0_3 = arith.constant 0 : index
    %c0_4 = arith.constant 0 : index
    %3 = vector.load %arg2[%c0_3, %c0_4] : memref<2x128xf32, #tpu.memory_space<vmem>>, vector<1x128xf32>
    %4 = vector.broadcast %3 : vector<1x128xf32> to vector<16x128xf32>
    %5 = arith.addf %2, %4 : vector<16x128xf32>
    %cst_5 = arith.constant 0.000000e+00 : f32
    %6 = vector.broadcast %cst_5 : f32 to vector<16x128xf32>
    %7 = arith.maximumf %5, %6 : vector<16x128xf32>
    %c0_6 = arith.constant 0 : index
    %c0_7 = arith.constant 0 : index
    %8 = vector.load %arg4[%c0_6, %c0_7] : memref<1x128xf32, #tpu.memory_space<vmem>>, vector<1x128xf32>
    %cst_8 = arith.constant dense<0.000000e+00> : vector<1x16xf32>
    %9 = tpu.matmul %8, %7, %cst_8 {dimension_numbers = #tpu.dot_dimension_numbers<[1], [1], [0], [0], [0, 0, 1, 0], [], []>} : vector<1x128xf32>, vector<16x128xf32>, vector<1x16xf32> -> vector<1x16xf32>
    %c0_9 = arith.constant 0 : index
    %c128 = arith.constant 128 : index
    %10 = vector.load %arg1[%c0_9, %c128] : memref<16x256xf32, #tpu.memory_space<vmem>>, vector<16x128xf32>
    %c0_10 = arith.constant 0 : index
    %c0_11 = arith.constant 0 : index
    %11 = vector.load %arg3[%c0_10, %c0_11] : memref<128x128xf32, #tpu.memory_space<vmem>>, vector<128x128xf32>
    %cst_12 = arith.constant dense<0.000000e+00> : vector<16x128xf32>
    %12 = tpu.matmul %10, %11, %cst_12 {dimension_numbers = #tpu.dot_dimension_numbers<[1], [0], [0], [1], [0, 0, 1, 1], [], []>} : vector<16x128xf32>, vector<128x128xf32>, vector<16x128xf32> -> vector<16x128xf32>
    %c1 = arith.constant 1 : index
    %c0_13 = arith.constant 0 : index
    %13 = vector.load %arg2[%c1, %c0_13] : memref<2x128xf32, #tpu.memory_space<vmem>>, vector<1x128xf32>
    %14 = vector.broadcast %13 : vector<1x128xf32> to vector<16x128xf32>
    %15 = arith.addf %12, %14 : vector<16x128xf32>
    %cst_14 = arith.constant 0.000000e+00 : f32
    %16 = vector.broadcast %cst_14 : f32 to vector<16x128xf32>
    %17 = arith.maximumf %15, %16 : vector<16x128xf32>
    %c0_15 = arith.constant 0 : index
    %c0_16 = arith.constant 0 : index
    %18 = vector.load %arg4[%c0_15, %c0_16] : memref<1x128xf32, #tpu.memory_space<vmem>>, vector<1x128xf32>
    %cst_17 = arith.constant dense<0.000000e+00> : vector<1x16xf32>
    %19 = tpu.matmul %18, %17, %cst_17 {dimension_numbers = #tpu.dot_dimension_numbers<[1], [1], [0], [0], [0, 0, 1, 0], [], []>} : vector<1x128xf32>, vector<16x128xf32>, vector<1x16xf32> -> vector<1x16xf32>
    %20 = tpu.concatenate %9, %19 in 0 : vector<1x16xf32>, vector<1x16xf32> -> vector<2x16xf32>
    %c0_18 = arith.constant 0 : index
    %c0_19 = arith.constant 0 : index
    %21 = vector.load %arg5[%c0_18, %c0_19] : memref<1x1xf32, #tpu.memory_space<vmem>>, vector<1x1xf32>
    %22 = vector.broadcast %21 : vector<1x1xf32> to vector<2x16xf32>
    %23 = arith.addf %20, %22 : vector<2x16xf32>
    %c0_20 = arith.constant 0 : index
    %c0_21 = arith.constant 0 : index
    %24 = vector.load %arg6[%c0_20, %c0_21] : memref<2x16xf32, #tpu.memory_space<vmem>>, vector<2x16xf32>
    tpu.vector_store %arg6[%c0_20, %c0_21], %23 {strides = array<i32>} : memref<2x16xf32, #tpu.memory_space<vmem>>, vector<2x16xf32>,
    return
  }
  func.func @transform_0(%arg0: i32) -> (i32, i32) {
    %c0_i32 = arith.constant 0 : i32
    %c0_i32_0 = arith.constant 0 : i32
    return %arg0, %c0_i32 : i32, i32
  }
  func.func @transform_1(%arg0: i32) -> (i32, i32) {
    %c0_i32 = arith.constant 0 : i32
    %c0_i32_0 = arith.constant 0 : i32
    %c0_i32_1 = arith.constant 0 : i32
    return %c0_i32, %c0_i32_0 : i32, i32
  }
  func.func @transform_2(%arg0: i32) -> (i32, i32) {
    %c0_i32 = arith.constant 0 : i32
    %c0_i32_0 = arith.constant 0 : i32
    %c0_i32_1 = arith.constant 0 : i32
    return %c0_i32, %c0_i32_0 : i32, i32
  }
  func.func @transform_3(%arg0: i32) -> (i32, i32) {
    %c0_i32 = arith.constant 0 : i32
    %c0_i32_0 = arith.constant 0 : i32
    %c0_i32_1 = arith.constant 0 : i32
    return %c0_i32, %c0_i32_0 : i32, i32
  }
  func.func @transform_4(%arg0: i32) -> (i32, i32) {
    %c0_i32 = arith.constant 0 : i32
    %c0_i32_0 = arith.constant 0 : i32
    %c0_i32_1 = arith.constant 0 : i32
    return %c0_i32, %c0_i32_0 : i32, i32
  }
  func.func @transform_5(%arg0: i32) -> (i32, i32) {
    %c0_i32 = arith.constant 0 : i32
    %c0_i32_0 = arith.constant 0 : i32
    return %c0_i32, %arg0 : i32, i32
  }
}

</mosaic_0001>

<llo_original>
// kernel: ultra_forward.6
$region0: #{ultra_forward.6}
  #allocation0 [shape = 'u32[]', space=smem, size = 0x4, offset = 0x4, fixed_abs, tag = 'smem constant byte address 0x4 - core index']
  #allocation1 [shape = 'u32[144,128]{1,0:T(1,128)}', space=vmem, size = 0x12000, scoped, tag = 'internal scratch']
  #allocation2 [shape = 'f32[8,256]{1,0:T(8,128)}', space=vmem, size = 0x2000, scoped, tag = 'scratch operand']
  %s0 = inlined_call_operand.vmem [shape: bf16[8,256], index: 0, kind: input, shape index: {}]
  %s1 = inlined_call_operand.vmem [shape: f32[8,256], index: 1, kind: input, shape index: {}]
  %s2 = inlined_call_operand.vmem [shape: f32[8,256], index: 2, kind: input, shape index: {}]
  %s3 = inlined_call_operand.vmem [shape: bf16[4,1,256], index: 3, kind: input, shape index: {}]
  %s4 = inlined_call_operand.vmem [shape: s8[4,8,8], index: 4, kind: input, shape index: {}]
  %s5 = inlined_call_operand.vmem [shape: f32[256,128], index: 5, kind: input, shape index: {}]
  %s6 = inlined_call_operand.vmem [shape: f32[1,128], index: 6, kind: input, shape index: {}]
  %s7 = inlined_call_operand.vmem [shape: f32[1,128], index: 7, kind: input, shape index: {}]
  %s8 = inlined_call_operand.vmem [shape: f32[1,128], index: 8, kind: input, shape index: {}]
  %s9 = inlined_call_operand.vmem [shape: f32[8,256], index: 9, kind: output, shape index: {}]
  %s10 = sld [smem:[#allocation0]]
  $region77: #{ultra_forward.6} parent=0
    _
  %s12 = ssub.s32 1, %s10
  %s13 = scalar_select 0, %s12, %s10
  loop: start=0, step=1, limit=6
  $region2: #{ultra_forward.6} parent=0 // loop_pre_header
    _
  $region3: #{ultra_forward.6} parent=0 // loop_header
    %s15 = sphi 0, %s19
    %p16 = scmp.ge.s32.totalorder %s15, 6
    %s22 = sphi 0, %s41
    %s23 = sphi 0, %s37
    %s24 = sphi 0, %s33
    %s25 = sphi 0, %s22
    %s26 = sphi 0, %s23
    %s27 = sphi 0, %s24
    %s28 = sphi 0, %s25
    %s29 = sphi 0, %s26
    %s30 = sphi 0, %s27
    %s44 = sphi 0, %s46
    %s47 = sphi 0, %s44
    %s48 = sphi 0, %s47
    %s64 = sphi 0, %s48
    %s70 = sphi 0, %s72
    %s73 = sphi 0, %s70
    %s74 = sphi 0, %s73
    %s90 = sphi 0, %s74
    %s96 = sphi 0, %s98
    %s99 = sphi 0, %s96
    %s100 = sphi 0, %s99
    %s116 = sphi 0, %s100
    %s122 = sphi 0, %s124
    %s125 = sphi 0, %s122
    %s126 = sphi 0, %s125
    %s142 = sphi 0, %s126
    %s152 = sphi 0, %s154
    %s155 = sphi 0, %s152
    %s156 = sphi 0, %s155
    %s172 = sphi 0, %s156
    %s176 = sphi 0, %s176
    %s178 = sphi 0, %s176
    %s179 = sphi 0, %s178
    %s193 = sphi 0, %s179
    %s197 = sphi 0, %s197
    %s199 = sphi 0, %s197
    %s200 = sphi 0, %s199
    %s214 = sphi 0, %s200
    %s218 = sphi 0, %s218
    %s220 = sphi 0, %s218
    %s221 = sphi 0, %s220
    %s235 = sphi 0, %s221
    %s239 = sphi 0, %s239
    %s241 = sphi 0, %s239
    %s242 = sphi 0, %s241
    %s256 = sphi 0, %s242
    %s262 = sphi 0, %s264
    %s265 = sphi 0, %s262
    %s266 = sphi 0, %s265
    %s282 = sphi 0, %s266
  $region4: #{ultra_forward.6} parent=0 // loop_header_branch
    %18 = sbr.rel (%p16) target = $region8
  $region5: #{ultra_forward.6} parent=0 // loop_body
    %s20 = ssub.s32 %s15, 1
    %s21 = ssub.s32 %s15, 2
    %s31 = sadd.s32 1, %s24
    %p32 = scmp.ge.s32.totalorder %s31, 4
    %s33 = scalar_select %p32, 0, %s31
    %s34 = sadd.s32 1, %s23
    %s35 = scalar_select %p32, %s34, %s23
    %p36 = scmp.ge.s32.totalorder %s35, 1
    %s37 = scalar_select %p36, 0, %s35
    %s38 = sadd.s32 1, %s22
    %s39 = scalar_select %p36, %s38, %s22
    %p40 = scmp.ge.s32.totalorder %s39, 1
    %s41 = scalar_select %p40, 0, %s39
    %s42 = ssub.s32 %s23, %s37
    %p43 = scmp.eq.s32.totalorder %s42, 0
    %s45 = sadd.s32 %s44, 1
    %s46 = scalar_select %p43, %s44, %s45
    %p49 = pneg %p43
    %p50 = scmp.eq.s32.totalorder %s15, 3
    %p51 = por %p49, %p50
    %p52 = scmp.ne.s32.totalorder %s44, %s47
    %p53 = scmp.eq.s32.totalorder %s15, 0
    %p54 = por %p52, %p53
    %p55 = scmp.ne.s32.totalorder %s44, %s47
    %p56 = scmp.eq.s32.totalorder %s20, 3
    %p57 = por %p55, %p56
    %p58 = scmp.ne.s32.totalorder %s47, %s48
    %p59 = scmp.eq.s32.totalorder %s20, 0
    %p60 = por %p58, %p59
    %p61 = scmp.ne.s32.totalorder %s47, %s48
    %p62 = scmp.eq.s32.totalorder %s21, 3
    %p63 = por %p61, %p62
    %p65 = scmp.ne.s32.totalorder %s48, %s64
    %p66 = scmp.eq.s32.totalorder %s21, 0
    %p67 = por %p65, %p66
    %s68 = ssub.s32 %s22, %s41
    %p69 = scmp.eq.s32.totalorder %s68, 0
    %s71 = sadd.s32 %s70, 1
    %s72 = scalar_select %p69, %s70, %s71
    %p75 = pneg %p69
    %p76 = scmp.eq.s32.totalorder %s15, 3
    %p77 = por %p75, %p76
    %p78 = scmp.ne.s32.totalorder %s70, %s73
    %p79 = scmp.eq.s32.totalorder %s15, 0
    %p80 = por %p78, %p79
    %p81 = scmp.ne.s32.totalorder %s70, %s73
    %p82 = scmp.eq.s32.totalorder %s20, 3
    %p83 = por %p81, %p82
    %p84 = scmp.ne.s32.totalorder %s73, %s74
    %p85 = scmp.eq.s32.totalorder %s20, 0
    %p86 = por %p84, %p85
    %p87 = scmp.ne.s32.totalorder %s73, %s74
    %p88 = scmp.eq.s32.totalorder %s21, 3
    %p89 = por %p87, %p88
    %p91 = scmp.ne.s32.totalorder %s74, %s90
    %p92 = scmp.eq.s32.totalorder %s21, 0
    %p93 = por %p91, %p92
    %s94 = ssub.s32 %s22, %s41
    %p95 = scmp.eq.s32.totalorder %s94, 0
    %s97 = sadd.s32 %s96, 1
    %s98 = scalar_select %p95, %s96, %s97
    %p101 = pneg %p95
    %p102 = scmp.eq.s32.totalorder %s15, 3
    %p103 = por %p101, %p102
    %p104 = scmp.ne.s32.totalorder %s96, %s99
    %p105 = scmp.eq.s32.totalorder %s15, 0
    %p106 = por %p104, %p105
    %p107 = scmp.ne.s32.totalorder %s96, %s99
    %p108 = scmp.eq.s32.totalorder %s20, 3
    %p109 = por %p107, %p108
    %p110 = scmp.ne.s32.totalorder %s99, %s100
    %p111 = scmp.eq.s32.totalorder %s20, 0
    %p112 = por %p110, %p111
    %p113 = scmp.ne.s32.totalorder %s99, %s100
    %p114 = scmp.eq.s32.totalorder %s21, 3
    %p115 = por %p113, %p114
    %p117 = scmp.ne.s32.totalorder %s100, %s116
    %p118 = scmp.eq.s32.totalorder %s21, 0
    %p119 = por %p117, %p118
    %s120 = ssub.s32 %s24, %s33
    %p121 = scmp.eq.s32.totalorder %s120, 0
    %s123 = sadd.s32 %s122, 1
    %s124 = scalar_select %p121, %s122, %s123
    %p127 = pneg %p121
    %p128 = scmp.eq.s32.totalorder %s15, 3
    %p129 = por %p127, %p128
    %p130 = scmp.ne.s32.totalorder %s122, %s125
    %p131 = scmp.eq.s32.totalorder %s15, 0
    %p132 = por %p130, %p131
    %p133 = scmp.ne.s32.totalorder %s122, %s125
    %p134 = scmp.eq.s32.totalorder %s20, 3
    %p135 = por %p133, %p134
    %p136 = scmp.ne.s32.totalorder %s125, %s126
    %p137 = scmp.eq.s32.totalorder %s20, 0
    %p138 = por %p136, %p137
    %p139 = scmp.ne.s32.totalorder %s125, %s126
    %p140 = scmp.eq.s32.totalorder %s21, 3
    %p141 = por %p139, %p140
    %p143 = scmp.ne.s32.totalorder %s126, %s142
    %p144 = scmp.eq.s32.totalorder %s21, 0
    %p145 = por %p143, %p144
    %s146 = ssub.s32 %s24, %s33
    %s147 = ssub.s32 %s22, %s41
    %s148 = sor.u32 %s146, %s147
    %s149 = ssub.s32 %s23, %s37
    %s150 = sor.u32 %s148, %s149
    %p151 = scmp.eq.s32.totalorder %s150, 0
    %s153 = sadd.s32 %s152, 1
    %s154 = scalar_select %p151, %s152, %s153
    %p157 = pneg %p151
    %p158 = scmp.eq.s32.totalorder %s15, 3
    %p159 = por %p157, %p158
    %p160 = scmp.ne.s32.totalorder %s152, %s155
    %p161 = scmp.eq.s32.totalorder %s15, 0
    %p162 = por %p160, %p161
    %p163 = scmp.ne.s32.totalorder %s152, %s155
    %p164 = scmp.eq.s32.totalorder %s20, 3
    %p165 = por %p163, %p164
    %p166 = scmp.ne.s32.totalorder %s155, %s156
    %p167 = scmp.eq.s32.totalorder %s20, 0
    %p168 = por %p166, %p167
    %p169 = scmp.ne.s32.totalorder %s155, %s156
    %p170 = scmp.eq.s32.totalorder %s21, 3
    %p171 = por %p169, %p170
    %p173 = scmp.ne.s32.totalorder %s156, %s172
    %p174 = scmp.eq.s32.totalorder %s21, 0
    %p175 = por %p173, %p174
    %s177 = sadd.s32 %s176, 1
    %p180 = scmp.eq.s32.totalorder %s15, 3
    %p181 = scmp.ne.s32.totalorder %s176, %s178
    %p182 = scmp.eq.s32.totalorder %s15, 0
    %p183 = por %p181, %p182
    %p184 = scmp.ne.s32.totalorder %s176, %s178
    %p185 = scmp.eq.s32.totalorder %s20, 3
    %p186 = por %p184, %p185
    %p187 = scmp.ne.s32.totalorder %s178, %s179
    %p188 = scmp.eq.s32.totalorder %s20, 0
    %p189 = por %p187, %p188
    %p190 = scmp.ne.s32.totalorder %s178, %s179
    %p191 = scmp.eq.s32.totalorder %s21, 3
    %p192 = por %p190, %p191
    %p194 = scmp.ne.s32.totalorder %s179, %s193
    %p195 = scmp.eq.s32.totalorder %s21, 0
    %p196 = por %p194, %p195
    %s198 = sadd.s32 %s197, 1
    %p201 = scmp.eq.s32.totalorder %s15, 3
    %p202 = scmp.ne.s32.totalorder %s197, %s199
    %p203 = scmp.eq.s32.totalorder %s15, 0
    %p204 = por %p202, %p203
    %p205 = scmp.ne.s32.totalorder %s197, %s199
    %p206 = scmp.eq.s32.totalorder %s20, 3
    %p207 = por %p205, %p206
    %p208 = scmp.ne.s32.totalorder %s199, %s200
    %p209 = scmp.eq.s32.totalorder %s20, 0
    %p210 = por %p208, %p209
    %p211 = scmp.ne.s32.totalorder %s199, %s200
    %p212 = scmp.eq.s32.totalorder %s21, 3
    %p213 = por %p211, %p212
    %p215 = scmp.ne.s32.totalorder %s200, %s214
    %p216 = scmp.eq.s32.totalorder %s21, 0
    %p217 = por %p215, %p216
    %s219 = sadd.s32 %s218, 1
    %p222 = scmp.eq.s32.totalorder %s15, 3
    %p223 = scmp.ne.s32.totalorder %s218, %s220
    %p224 = scmp.eq.s32.totalorder %s15, 0
    %p225 = por %p223, %p224
    %p226 = scmp.ne.s32.totalorder %s218, %s220
    %p227 = scmp.eq.s32.totalorder %s20, 3
    %p228 = por %p226, %p227
    %p229 = scmp.ne.s32.totalorder %s220, %s221
    %p230 = scmp.eq.s32.totalorder %s20, 0
    %p231 = por %p229, %p230
    %p232 = scmp.ne.s32.totalorder %s220, %s221
    %p233 = scmp.eq.s32.totalorder %s21, 3
    %p234 = por %p232, %p233
    %p236 = scmp.ne.s32.totalorder %s221, %s235
    %p237 = scmp.eq.s32.totalorder %s21, 0
    %p238 = por %p236, %p237
    %s240 = sadd.s32 %s239, 1
    %p243 = scmp.eq.s32.totalorder %s15, 3
    %p244 = scmp.ne.s32.totalorder %s239, %s241
    %p245 = scmp.eq.s32.totalorder %s15, 0
    %p246 = por %p244, %p245
    %p247 = scmp.ne.s32.totalorder %s239, %s241
    %p248 = scmp.eq.s32.totalorder %s20, 3
    %p249 = por %p247, %p248
    %p250 = scmp.ne.s32.totalorder %s241, %s242
    %p251 = scmp.eq.s32.totalorder %s20, 0
    %p252 = por %p250, %p251
    %p253 = scmp.ne.s32.totalorder %s241, %s242
    %p254 = scmp.eq.s32.totalorder %s21, 3
    %p255 = por %p253, %p254
    %p257 = scmp.ne.s32.totalorder %s242, %s256
    %p258 = scmp.eq.s32.totalorder %s21, 0
    %p259 = por %p257, %p258
    %s260 = ssub.s32 %s22, %s41
    %p261 = scmp.eq.s32.totalorder %s260, 0
    %s263 = sadd.s32 %s262, 1
    %s264 = scalar_select %p261, %s262, %s263
    %p267 = pneg %p261
    %p268 = scmp.eq.s32.totalorder %s15, 3
    %p269 = por %p267, %p268
    %p270 = scmp.ne.s32.totalorder %s262, %s265
    %p271 = scmp.eq.s32.totalorder %s15, 0
    %p272 = por %p270, %p271
    %p273 = scmp.ne.s32.totalorder %s262, %s265
    %p274 = scmp.eq.s32.totalorder %s20, 3
    %p275 = por %p273, %p274
    %p276 = scmp.ne.s32.totalorder %s265, %s266
    %p277 = scmp.eq.s32.totalorder %s20, 0
    %p278 = por %p276, %p277
    %p279 = scmp.ne.s32.totalorder %s265, %s266
    %p280 = scmp.eq.s32.totalorder %s21, 3
    %p281 = por %p279, %p280
    %p283 = scmp.ne.s32.totalorder %s266, %s282
    %p284 = scmp.eq.s32.totalorder %s21, 0
    %p285 = por %p283, %p284
    %p286 = scmp.le.s32.totalorder 1, %s15
    %p287 = scmp.lt.s32.totalorder %s15, 5
    %p288 = pnand %p286, %p287
    %p289 = pneg %p288
    // Predicated region
    $region9: #{ultra_forward.6} parent=5 // pred_check
      _
    $region10: #{ultra_forward.6} parent=5 // pred_check_branch
      %291 = sbr.rel (%p288) target = $region12
    $region11: #{ultra_forward.6} parent=5 // pred_region
      %s292 = ssub.s32 %s15, 1
      // Predicated region
      $region13: #{ultra_forward.6} parent=11 // pred_check
        %p293 = pneg %p60
      $region14: #{ultra_forward.6} parent=11 // pred_check_branch
        %295 = sbr.rel (%p293) target = $region16
      $region15: #{ultra_forward.6} parent=11 // pred_region
        %p296 = scmp.lt.s32.totalorder %s26, 0
        %s297 = scalar_select %p296, %s26, 0
        %s298 = smul.addr %s297, 2
        %s299 = smul.addr %s298, 4
        %s300 = scalar_lea.vmem %s0, %s299
      $region16: #{ultra_forward.6} parent=11 // pred_fallthru
        _
      // Predicated region
      $region17: #{ultra_forward.6} parent=11 // pred_check
        %p301 = pneg %p86
      $region18: #{ultra_forward.6} parent=11 // pred_check_branch
        %303 = sbr.rel (%p301) target = $region20
      $region19: #{ultra_forward.6} parent=11 // pred_region
        %p304 = scmp.lt.s32.totalorder %s25, 0
        %s305 = scalar_select %p304, %s25, 0
        %s306 = smul.addr %s305, 2
        %s307 = smul.addr %s306, 8
        %s308 = scalar_lea.vmem %s1, %s307
      $region20: #{ultra_forward.6} parent=11 // pred_fallthru
        _
      // Predicated region
      $region21: #{ultra_forward.6} parent=11 // pred_check
        %p309 = pneg %p112
      $region22: #{ultra_forward.6} parent=11 // pred_check_branch
        %311 = sbr.rel (%p309) target = $region24
      $region23: #{ultra_forward.6} parent=11 // pred_region
        %p312 = scmp.lt.s32.totalorder %s25, 0
        %s313 = scalar_select %p312, %s25, 0
        %s314 = smul.addr %s313, 2
        %s315 = smul.addr %s314, 8
        %s316 = scalar_lea.vmem %s2, %s315
      $region24: #{ultra_forward.6} parent=11 // pred_fallthru
        _
      // Predicated region
      $region25: #{ultra_forward.6} parent=11 // pred_check
        %p317 = pneg %p189
      $region26: #{ultra_forward.6} parent=11 // pred_check_branch
        %319 = sbr.rel (%p317) target = $region28
      $region27: #{ultra_forward.6} parent=11 // pred_region
        _
      $region28: #{ultra_forward.6} parent=11 // pred_fallthru
        _
      // Predicated region
      $region29: #{ultra_forward.6} parent=11 // pred_check
        %p320 = pneg %p210
      $region30: #{ultra_forward.6} parent=11 // pred_check_branch
        %322 = sbr.rel (%p320) target = $region32
      $region31: #{ultra_forward.6} parent=11 // pred_region
        _
      $region32: #{ultra_forward.6} parent=11 // pred_fallthru
        _
      // Predicated region
      $region33: #{ultra_forward.6} parent=11 // pred_check
        %p323 = pneg %p231
      $region34: #{ultra_forward.6} parent=11 // pred_check_branch
        %325 = sbr.rel (%p323) target = $region36
      $region35: #{ultra_forward.6} parent=11 // pred_region
        _
      $region36: #{ultra_forward.6} parent=11 // pred_fallthru
        _
      // Predicated region
      $region37: #{ultra_forward.6} parent=11 // pred_check
        %p326 = pneg %p252
      $region38: #{ultra_forward.6} parent=11 // pred_check_branch
        %328 = sbr.rel (%p326) target = $region40
      $region39: #{ultra_forward.6} parent=11 // pred_region
        _
      $region40: #{ultra_forward.6} parent=11 // pred_fallthru
        _
    $region12: #{ultra_forward.6} parent=5 // pred_fallthru
      _
    %p329 = scmp.lt.s32.totalorder %s15, 4
    // Predicated region
    $region41: #{ultra_forward.6} parent=5 // pred_check
      %p330 = pneg %p329
    $region42: #{ultra_forward.6} parent=5 // pred_check_branch
      %332 = sbr.rel (%p330) target = $region44
    $region43: #{ultra_forward.6} parent=5 // pred_region
      // Predicated region
      $region45: #{ultra_forward.6} parent=43 // pred_check
        %p333 = pneg %p132
      $region46: #{ultra_forward.6} parent=43 // pred_check_branch
        %335 = sbr.rel (%p333) target = $region48
      $region47: #{ultra_forward.6} parent=43 // pred_region
        %p336 = scmp.lt.s32.totalorder %s24, 3
        %s337 = scalar_select %p336, %s24, 3
        %s338 = smul.addr %s337, 2
        %s339 = scalar_lea.vmem %s3, %s338
      $region48: #{ultra_forward.6} parent=43 // pred_fallthru
        _
      // Predicated region
      $region49: #{ultra_forward.6} parent=43 // pred_check
        %p340 = pneg %p162
      $region50: #{ultra_forward.6} parent=43 // pred_check_branch
        %342 = sbr.rel (%p340) target = $region52
      $region51: #{ultra_forward.6} parent=43 // pred_region
        %p343 = scmp.lt.s32.totalorder %s24, 3
        %s344 = scalar_select %p343, %s24, 3
        %p345 = scmp.lt.s32.totalorder %s22, 0
        %s346 = scalar_select %p345, %s22, 0
        %p347 = scmp.lt.s32.totalorder %s23, 0
        %s348 = scalar_select %p347, %s23, 0
        %s349 = sadd.s32 %s348, %s346
        %s350 = sadd.s32 %s349, %s344
        %s351 = smul.addr %s350, 2
        %s352 = scalar_lea.vmem %s4, %s351
      $region52: #{ultra_forward.6} parent=43 // pred_fallthru
        _
    $region44: #{ultra_forward.6} parent=5 // pred_fallthru
      _
    %p353 = scmp.le.s32.totalorder 1, %s15
    %p354 = scmp.lt.s32.totalorder %s15, 5
    %p355 = pnand %p353, %p354
    %p356 = pneg %p355
    // Predicated region
    $region53: #{ultra_forward.6} parent=5 // pred_check
      _
    $region54: #{ultra_forward.6} parent=5 // pred_check_branch
      %358 = sbr.rel (%p355) target = $region56
    $region55: #{ultra_forward.6} parent=5 // pred_region
      %s359 = ssub.s32 %s15, 1
      %p360 = scmp.lt.s32.totalorder %s26, 0
      %s361 = scalar_select %p360, %s26, 0
      %s362 = smul.addr %s361, 2
      %s363 = smul.addr %s362, 4
      %s364 = scalar_lea.vmem %s0, %s363
      %p365 = pneg %p60
      %p366 = pneg %p57
      %p367 = scmp.lt.s32.totalorder %s25, 0
      %s368 = scalar_select %p367, %s25, 0
      %s369 = smul.addr %s368, 2
      %s370 = smul.addr %s369, 8
      %s371 = scalar_lea.vmem %s1, %s370
      %p372 = pneg %p86
      %p373 = pneg %p83
      %p374 = scmp.lt.s32.totalorder %s25, 0
      %s375 = scalar_select %p374, %s25, 0
      %s376 = smul.addr %s375, 2
      %s377 = smul.addr %s376, 8
      %s378 = scalar_lea.vmem %s2, %s377
      %p379 = pneg %p112
      %p380 = pneg %p109
      %p381 = scmp.lt.s32.totalorder %s27, 3
      %s382 = scalar_select %p381, %s27, 3
      %s383 = smul.addr %s382, 2
      %s384 = scalar_lea.vmem %s3, %s383
      %p385 = pneg %p138
      %p386 = pneg %p135
      %p387 = scmp.lt.s32.totalorder %s27, 3
      %s388 = scalar_select %p387, %s27, 3
      %p389 = scmp.lt.s32.totalorder %s25, 0
      %s390 = scalar_select %p389, %s25, 0
      %p391 = scmp.lt.s32.totalorder %s26, 0
      %s392 = scalar_select %p391, %s26, 0
      %s393 = sadd.s32 %s392, %s390
      %s394 = sadd.s32 %s393, %s388
      %s395 = smul.addr %s394, 2
      %s396 = scalar_lea.vmem %s4, %s395
      %p397 = pneg %p168
      %p398 = pneg %p165
      %p399 = pneg %p189
      %p400 = pneg %p186
      %p401 = pneg %p210
      %p402 = pneg %p207
      %p403 = pneg %p231
      %p404 = pneg %p228
      %p405 = pneg %p252
      %p406 = pneg %p249
      %p407 = pneg %p278
      %p408 = pneg %p275
      %p409 = scmp.lt.s32.totalorder %s25, 0
      %s410 = scalar_select %p409, %s25, 0
      %s411 = smul.addr %s410, 2
      %s412 = smul.addr %s411, 8
      %s413 = scalar_lea.vmem %s9, %s412
      %p414 = scmp.lt.s32.totalorder %s26, 0
      %s415 = scalar_select %p414, %s26, 0
      %s416 = smul.addr %s415, 2
      %s417 = smul.addr %s416, 4
      %s418 = scalar_lea.vmem %s0, %s417
      %p419 = scmp.lt.s32.totalorder %s25, 0
      %s420 = scalar_select %p419, %s25, 0
      %s421 = smul.addr %s420, 2
      %s422 = smul.addr %s421, 8
      %s423 = scalar_lea.vmem %s1, %s422
      %p424 = scmp.lt.s32.totalorder %s25, 0
      %s425 = scalar_select %p424, %s25, 0
      %s426 = smul.addr %s425, 2
      %s427 = smul.addr %s426, 8
      %s428 = scalar_lea.vmem %s2, %s427
      %p429 = scmp.lt.s32.totalorder %s27, 3
      %s430 = scalar_select %p429, %s27, 3
      %s431 = smul.addr %s430, 2
      %s432 = scalar_lea.vmem %s3, %s431
      %p433 = scmp.lt.s32.totalorder %s27, 3
      %s434 = scalar_select %p433, %s27, 3
      %p435 = scmp.lt.s32.totalorder %s25, 0
      %s436 = scalar_select %p435, %s25, 0
      %p437 = scmp.lt.s32.totalorder %s26, 0
      %s438 = scalar_select %p437, %s26, 0
      %s439 = sadd.s32 %s438, %s436
      %s440 = sadd.s32 %s439, %s434
      %s441 = smul.addr %s440, 2
      %s442 = scalar_lea.vmem %s4, %s441
      %p443 = scmp.lt.s32.totalorder %s25, 0
      %s444 = scalar_select %p443, %s25, 0
      %s445 = smul.addr %s444, 2
      %s446 = smul.addr %s445, 8
      %s447 = scalar_lea.vmem %s9, %s446
      %p449 = scmp.eq.s32.totalorder %s26, 0
      %p450 = scmp.eq.s32.totalorder %s27, 0
      %p451 = pnand %p449, %p450
      %p452 = pneg %p451
      // Predicated region
      $region57: #{ultra_forward.6} parent=55 // pred_check
        _
      $region58: #{ultra_forward.6} parent=55 // pred_check_branch
        %454 = sbr.rel (%p451) target = $region60
      $region59: #{ultra_forward.6} parent=55 // pred_region
        %v455 = vld [vmem:[%s428] sm:$0xff]
        %v456 = vld [vmem:[%s428 + $0x8] sm:$0xff]
        %457 = vst [vmem:[#allocation2] sm:$0xff] %v455
        %458 = vst [vmem:[#allocation2 + $0x8] sm:$0xff] %v456
      $region60: #{ultra_forward.6} parent=55 // pred_fallthru
        _
      %v459 = vld [vmem:[%s418] sm:$0xff]
      %v460 = vld [vmem:[%s432] sm:$0x3]
      %v463 = vunpack.c.l.s4 1966171168
      %v464 = vunpack.c.0.s8 %v463
      %v465 = vlaneseq
      %v466 = vshrl.u32 %v465, 7
      %v467 = vsub.s32 %v464, %v466
      %v468 = vrot.slane %v460, %v467
      %v469 = vcombine.high %v468, %v468
      %v471 = vunpack.c.l.s4 1966171168
      %v472 = vunpack.c.0.s8 %v471
      %v473 = vlaneseq
      %v474 = vshrl.u32 %v473, 7
      %v475 = vsub.s32 %v472, %v474
      %v476 = vrot.slane %v468, %v475
      %v478 = vunpack.c.l.s4 1966171168
      %v479 = vunpack.c.0.s8 %v478
      %v480 = vlaneseq
      %v481 = vshrl.u32 %v480, 7
      %v482 = vsub.s32 %v479, %v481
      %v483 = vrot.slane %v469, %v482
      %v485 = vpack.i.b16 %v476, %v476
      %v487 = vlaneseq
      %v488 = vshrl.u32 %v487, 7
      %v489 = vsub.s32 0, %v488
      %v490 = vrot.slane %v485, %v489
      %v492 = vpack.i.b16 %v483, %v483
      %v494 = vlaneseq
      %v495 = vshrl.u32 %v494, 7
      %v496 = vsub.s32 0, %v495
      %v497 = vrot.slane %v492, %v496
      %v500 = vunpack.c.l.b16 %v490
      %v501 = vunpack.c.l.b16 %v497
      %v502 = vpack.c.b16 %v501, %v500
      %v504 = vmul.bf16 %v459, %v502
      %v505 = vld [vmem:[%s442] sm:$0x3]
      %v506 = vunpack.c.l.s8.bf16 %v505
      %v507 = vld [vmem:[#allocation2] sm:$0xff]
      %v508 = vld [vmem:[#allocation2 + $0x8] sm:$0xff]
      %v510 = vunpack.c.l.b16 %v504
      %v511 = vunpack.c.h.b16 %v504
      %v512 = vpack.c.b16 %v510, %v510
      %v513 = vpack.c.b16 %v511, %v511
      %vm514 = vcmask 64512
      %v516 = vsel %vm514, %v506, 0
      %vm518 = vcmask 1043456
      %v520 = vsel %vm518, %v512, 0
      %v523 = vsel %vm518, %v513, 0
      %525 = vmatprep.subr.bf16.mxu0 %v523
      %526 = vmatpush1.bf16.msra.mxu0 %v520
      %527 = vmatprep.subr.bf16.mxu0 0
      %528 = vmatpush1.bf16.msra.mxu0 0
      %529 = vmatprep.subr.bf16.mxu0 0
      %530 = vmatpush1.bf16.msra.mxu0 0
      %531 = vmatprep.subr.bf16.mxu0 0
      %532 = vmatpush1.bf16.msra.mxu0 0
      %533 = vmatprep.subr.bf16.mxu0 0
      %534 = vmatpush1.bf16.msra.mxu0 0
      %535 = vmatprep.subr.bf16.mxu0 0
      %536 = vmatpush1.bf16.msra.mxu0 0
      %537 = vmatprep.subr.bf16.mxu0 0
      %538 = vmatpush1.bf16.msra.mxu0 0
      %539 = vmatprep.subr.bf16.mxu0 0
      %540 = vmatpush1.bf16.msra.mxu0 0
      %541 = vmatprep.subr.bf16.mxu0 0
      %542 = vmatpush1.bf16.msra.mxu0 0
      %543 = vmatprep.subr.bf16.mxu0 0
      %544 = vmatpush1.bf16.msra.mxu0 0
      %545 = vmatprep.subr.bf16.mxu0 0
      %546 = vmatpush1.bf16.msra.mxu0 0
      %547 = vmatprep.subr.bf16.mxu0 0
      %548 = vmatpush1.bf16.msra.mxu0 0
      %549 = vmatprep.subr.bf16.mxu0 0
      %550 = vmatpush1.bf16.msra.mxu0 0
      %551 = vmatprep.subr.bf16.mxu0 0
      %552 = vmatpush1.bf16.msra.mxu0 0
      %553 = vmatprep.subr.bf16.mxu0 0
      %554 = vmatpush1.bf16.msra.mxu0 0
      %555 = vmatprep.subr.bf16.mxu0 0
      %556 = vmatpush1.bf16.msra.mxu0 0
      %557 = vmatprep.mubr.bf16.mxu0 0
      %558 = vmatmul.mubr.bf16.gmra.mrb[0].mxu0 %v516
      %v559 = vpop.f32.mrb[0].mxu0
      %v560 = vadd.f32 0.0, %v559
      %v561 = vpop.f32.mrb[0].mxu0
      %v562 = vadd.f32 0.0, %v561
      %v563 = vpop.f32.mrb[0].mxu0
      %v564 = vpop.f32.mrb[0].mxu0
      %565 = vdwg.mxu0
      %v566 = vadd.f32 %v507, %v560
      %v567 = vadd.f32 %v508, %v562
      %568 = vst [vmem:[#allocation2] sm:$0xff] %v566
      %569 = vst [vmem:[#allocation2 + $0x8] sm:$0xff] %v567
      %p570 = scmp.eq.s32.totalorder %s27, 3
      %p571 = pnand %p449, %p570
      %p572 = pneg %p571
      // Predicated region
      $region61: #{ultra_forward.6} parent=55 // pred_check
        _
      $region62: #{ultra_forward.6} parent=55 // pred_check_branch
        %574 = sbr.rel (%p571) target = $region64
      $region63: #{ultra_forward.6} parent=55 // pred_region
        %v575 = vld [vmem:[%s423] sm:$0xff]
        %v576 = vld [vmem:[%s423 + $0x8] sm:$0xff]
        %v577 = vld [vmem:[#allocation2] sm:$0xff]
        %v578 = vld [vmem:[#allocation2 + $0x8] sm:$0xff]
        %v579 = vld [vmem:[%s5] sm:$0xff]
        %v580 = vld [vmem:[%s5 + $0x8] sm:$0xff]
        %v581 = vld [vmem:[%s5 + $0x10] sm:$0xff]
        %v582 = vld [vmem:[%s5 + $0x18] sm:$0xff]
        %v583 = vld [vmem:[%s5 + $0x20] sm:$0xff]
        %v584 = vld [vmem:[%s5 + $0x28] sm:$0xff]
        %v585 = vld [vmem:[%s5 + $0x30] sm:$0xff]
        %v586 = vld [vmem:[%s5 + $0x38] sm:$0xff]
        %v587 = vld [vmem:[%s5 + $0x40] sm:$0xff]
        %v588 = vld [vmem:[%s5 + $0x48] sm:$0xff]
        %v589 = vld [vmem:[%s5 + $0x50] sm:$0xff]
        %v590 = vld [vmem:[%s5 + $0x58] sm:$0xff]
        %v591 = vld [vmem:[%s5 + $0x60] sm:$0xff]
        %v592 = vld [vmem:[%s5 + $0x68] sm:$0xff]
        %v593 = vld [vmem:[%s5 + $0x70] sm:$0xff]
        %v594 = vld [vmem:[%s5 + $0x78] sm:$0xff]
        %v595 = vld [vmem:[%s5 + $0x80] sm:$0xff]
        %v596 = vld [vmem:[%s5 + $0x88] sm:$0xff]
        %v597 = vld [vmem:[%s5 + $0x90] sm:$0xff]
        %v598 = vld [vmem:[%s5 + $0x98] sm:$0xff]
        %v599 = vld [vmem:[%s5 + $0xa0] sm:$0xff]
        %v600 = vld [vmem:[%s5 + $0xa8] sm:$0xff]
        %v601 = vld [vmem:[%s5 + $0xb0] sm:$0xff]
        %v602 = vld [vmem:[%s5 + $0xb8] sm:$0xff]
        %v603 = vld [vmem:[%s5 + $0xc0] sm:$0xff]
        %v604 = vld [vmem:[%s5 + $0xc8] sm:$0xff]
        %v605 = vld [vmem:[%s5 + $0xd0] sm:$0xff]
        %v606 = vld [vmem:[%s5 + $0xd8] sm:$0xff]
        %v607 = vld [vmem:[%s5 + $0xe0] sm:$0xff]
        %v608 = vld [vmem:[%s5 + $0xe8] sm:$0xff]
        %v609 = vld [vmem:[%s5 + $0xf0] sm:$0xff]
        %v610 = vld [vmem:[%s5 + $0xf8] sm:$0xff]
        %v611 = vld [vmem:[%s6] sm:$0x1]
        %v613 = vlaneseq
        %v614 = vshrl.u32 %v613, 7
        %v615 = vsub.s32 0, %v614
        %v616 = vrot.slane %v611, %v615
        %618 = vmatprep.subr.mxu0 0.0
        %619 = vmatpush1.msra.mxu0 %v579
        %620 = vmatprep.subr.mxu0 0.0
        %621 = vmatpush1.msra.mxu0 %v580
        %622 = vmatprep.subr.mxu0 0.0
        %623 = vmatpush1.msra.mxu0 %v581
        %624 = vmatprep.subr.mxu0 0.0
        %625 = vmatpush1.msra.mxu0 %v582
        %626 = vmatprep.subr.mxu0 0.0
        %627 = vmatpush1.msra.mxu0 %v583
        %628 = vmatprep.subr.mxu0 0.0
        %629 = vmatpush1.msra.mxu0 %v584
        %630 = vmatprep.subr.mxu0 0.0
        %631 = vmatpush1.msra.mxu0 %v585
        %632 = vmatprep.subr.mxu0 0.0
        %633 = vmatpush1.msra.mxu0 %v586
        %634 = vmatprep.subr.mxu0 0.0
        %635 = vmatpush1.msra.mxu0 %v587
        %636 = vmatprep.subr.mxu0 0.0
        %637 = vmatpush1.msra.mxu0 %v588
        %638 = vmatprep.subr.mxu0 0.0
        %639 = vmatpush1.msra.mxu0 %v589
        %640 = vmatprep.subr.mxu0 0.0
        %641 = vmatpush1.msra.mxu0 %v590
        %642 = vmatprep.subr.mxu0 0.0
        %643 = vmatpush1.msra.mxu0 %v591
        %644 = vmatprep.subr.mxu0 0.0
        %645 = vmatpush1.msra.mxu0 %v592
        %646 = vmatprep.subr.mxu0 0.0
        %647 = vmatpush1.msra.mxu0 %v593
        %648 = vmatprep.subr.mxu0 0.0
        %649 = vmatpush1.msra.mxu0 %v594
        %650 = vmatprep.subr.mxu0 0.0
        %651 = vmatpush1.msra.mxu0 %v595
        %652 = vmatprep.subr.mxu0 0.0
        %653 = vmatpush1.msra.mxu0 %v596
        %654 = vmatprep.subr.mxu0 0.0
        %655 = vmatpush1.msra.mxu0 %v597
        %656 = vmatprep.subr.mxu0 0.0
        %657 = vmatpush1.msra.mxu0 %v598
        %658 = vmatprep.subr.mxu0 0.0
        %659 = vmatpush1.msra.mxu0 %v599
        %660 = vmatprep.subr.mxu0 0.0
        %661 = vmatpush1.msra.mxu0 %v600
        %662 = vmatprep.subr.mxu0 0.0
        %663 = vmatpush1.msra.mxu0 %v601
        %664 = vmatprep.subr.mxu0 0.0
        %665 = vmatpush1.msra.mxu0 %v602
        %666 = vmatprep.subr.mxu0 0.0
        %667 = vmatpush1.msra.mxu0 %v603
        %668 = vmatprep.subr.mxu0 0.0
        %669 = vmatpush1.msra.mxu0 %v604
        %670 = vmatprep.subr.mxu0 0.0
        %671 = vmatpush1.msra.mxu0 %v605
        %672 = vmatprep.subr.mxu0 0.0
        %673 = vmatpush1.msra.mxu0 %v606
        %674 = vmatprep.subr.mxu0 0.0
        %675 = vmatpush1.msra.mxu0 %v607
        %676 = vmatprep.subr.mxu0 0.0
        %677 = vmatpush1.msra.mxu0 %v608
        %678 = vmatprep.subr.mxu0 0.0
        %679 = vmatpush1.msra.mxu0 %v609
        %680 = vmatprep.subr.mxu0 0.0
        %681 = vmatpush1.msra.mxu0 %v610
        %682 = vmatprep.mubr.f32.mxu0 %v577
        %683 = vmatmul.mubr.f32.gmra.mrb[0].mxu0 %v575
        %v684 = vpop.f32.mrb[0].mxu0
        %v685 = vadd.f32 %v616, %v684
        %v686 = vpop.f32.mrb[0].mxu0
        %687 = vdwg.mxu0
        %688 = vadd.xlane.f32.xlu0 %v685
        %v689 = vpop.xlane.xlu0 %688
        %v690 = vrcp.pop 128.0
        %v691 = vmul.f32 %v689, %v690
        %v692 = vsub.f32 %v685, %v691
        %v693 = vmul.f32 %v692, %v692
        %694 = vadd.xlane.f32.xlu0 %v693
        %v695 = vpop.xlane.xlu0 %694
        %v696 = vmul.f32 %v695, %v690
        %v697 = vadd.f32 %v696, 1e-05
        %v698 = vrsqrt.pop %v697
        %v699 = vmul.f32 %v692, %v698
        %v700 = vld [vmem:[%s7] sm:$0x1]
        %v702 = vlaneseq
        %v703 = vshrl.u32 %v702, 7
        %v704 = vsub.s32 0, %v703
        %v705 = vrot.slane %v700, %v704
        %v707 = vmul.f32 %v699, %v705
        %v708 = vld [vmem:[%s8] sm:$0x1]
        %v710 = vlaneseq
        %v711 = vshrl.u32 %v710, 7
        %v712 = vsub.s32 0, %v711
        %v713 = vrot.slane %v708, %v712
        %v715 = vadd.f32 %v707, %v713
        %v716 = vmax.f32 %v715, 0.0
        %v717 = vadd.f32 %v716, %v575
        %718 = vst [vmem:[%s447] sm:$0xff] %v717
        %v719 = vld [vmem:[%s5] sm:$0xff]
        %v720 = vld [vmem:[%s5 + $0x8] sm:$0xff]
        %v721 = vld [vmem:[%s5 + $0x10] sm:$0xff]
        %v722 = vld [vmem:[%s5 + $0x18] sm:$0xff]
        %v723 = vld [vmem:[%s5 + $0x20] sm:$0xff]
        %v724 = vld [vmem:[%s5 + $0x28] sm:$0xff]
        %v725 = vld [vmem:[%s5 + $0x30] sm:$0xff]
        %v726 = vld [vmem:[%s5 + $0x38] sm:$0xff]
        %v727 = vld [vmem:[%s5 + $0x40] sm:$0xff]
        %v728 = vld [vmem:[%s5 + $0x48] sm:$0xff]
        %v729 = vld [vmem:[%s5 + $0x50] sm:$0xff]
        %v730 = vld [vmem:[%s5 + $0x58] sm:$0xff]
        %v731 = vld [vmem:[%s5 + $0x60] sm:$0xff]
        %v732 = vld [vmem:[%s5 + $0x68] sm:$0xff]
        %v733 = vld [vmem:[%s5 + $0x70] sm:$0xff]
        %v734 = vld [vmem:[%s5 + $0x78] sm:$0xff]
        %v735 = vld [vmem:[%s5 + $0x80] sm:$0xff]
        %v736 = vld [vmem:[%s5 + $0x88] sm:$0xff]
        %v737 = vld [vmem:[%s5 + $0x90] sm:$0xff]
        %v738 = vld [vmem:[%s5 + $0x98] sm:$0xff]
        %v739 = vld [vmem:[%s5 + $0xa0] sm:$0xff]
        %v740 = vld [vmem:[%s5 + $0xa8] sm:$0xff]
        %v741 = vld [vmem:[%s5 + $0xb0] sm:$0xff]
        %v742 = vld [vmem:[%s5 + $0xb8] sm:$0xff]
        %v743 = vld [vmem:[%s5 + $0xc0] sm:$0xff]
        %v744 = vld [vmem:[%s5 + $0xc8] sm:$0xff]
        %v745 = vld [vmem:[%s5 + $0xd0] sm:$0xff]
        %v746 = vld [vmem:[%s5 + $0xd8] sm:$0xff]
        %v747 = vld [vmem:[%s5 + $0xe0] sm:$0xff]
        %v748 = vld [vmem:[%s5 + $0xe8] sm:$0xff]
        %v749 = vld [vmem:[%s5 + $0xf0] sm:$0xff]
        %v750 = vld [vmem:[%s5 + $0xf8] sm:$0xff]
        %v751 = vld [vmem:[%s6] sm:$0x1]
        %v753 = vlaneseq
        %v754 = vshrl.u32 %v753, 7
        %v755 = vsub.s32 0, %v754
        %v756 = vrot.slane %v751, %v755
        %758 = vmatprep.subr.mxu0 0.0
        %759 = vmatpush1.msra.mxu0 %v719
        %760 = vmatprep.subr.mxu0 0.0
        %761 = vmatpush1.msra.mxu0 %v720
        %762 = vmatprep.subr.mxu0 0.0
        %763 = vmatpush1.msra.mxu0 %v721
        %764 = vmatprep.subr.mxu0 0.0
        %765 = vmatpush1.msra.mxu0 %v722
        %766 = vmatprep.subr.mxu0 0.0
        %767 = vmatpush1.msra.mxu0 %v723
        %768 = vmatprep.subr.mxu0 0.0
        %769 = vmatpush1.msra.mxu0 %v724
        %770 = vmatprep.subr.mxu0 0.0
        %771 = vmatpush1.msra.mxu0 %v725
        %772 = vmatprep.subr.mxu0 0.0
        %773 = vmatpush1.msra.mxu0 %v726
        %774 = vmatprep.subr.mxu0 0.0
        %775 = vmatpush1.msra.mxu0 %v727
        %776 = vmatprep.subr.mxu0 0.0
        %777 = vmatpush1.msra.mxu0 %v728
        %778 = vmatprep.subr.mxu0 0.0
        %779 = vmatpush1.msra.mxu0 %v729
        %780 = vmatprep.subr.mxu0 0.0
        %781 = vmatpush1.msra.mxu0 %v730
        %782 = vmatprep.subr.mxu0 0.0
        %783 = vmatpush1.msra.mxu0 %v731
        %784 = vmatprep.subr.mxu0 0.0
        %785 = vmatpush1.msra.mxu0 %v732
        %786 = vmatprep.subr.mxu0 0.0
        %787 = vmatpush1.msra.mxu0 %v733
        %788 = vmatprep.subr.mxu0 0.0
        %789 = vmatpush1.msra.mxu0 %v734
        %790 = vmatprep.subr.mxu0 0.0
        %791 = vmatpush1.msra.mxu0 %v735
        %792 = vmatprep.subr.mxu0 0.0
        %793 = vmatpush1.msra.mxu0 %v736
        %794 = vmatprep.subr.mxu0 0.0
        %795 = vmatpush1.msra.mxu0 %v737
        %796 = vmatprep.subr.mxu0 0.0
        %797 = vmatpush1.msra.mxu0 %v738
        %798 = vmatprep.subr.mxu0 0.0
        %799 = vmatpush1.msra.mxu0 %v739
        %800 = vmatprep.subr.mxu0 0.0
        %801 = vmatpush1.msra.mxu0 %v740
        %802 = vmatprep.subr.mxu0 0.0
        %803 = vmatpush1.msra.mxu0 %v741
        %804 = vmatprep.subr.mxu0 0.0
        %805 = vmatpush1.msra.mxu0 %v742
        %806 = vmatprep.subr.mxu0 0.0
        %807 = vmatpush1.msra.mxu0 %v743
        %808 = vmatprep.subr.mxu0 0.0
        %809 = vmatpush1.msra.mxu0 %v744
        %810 = vmatprep.subr.mxu0 0.0
        %811 = vmatpush1.msra.mxu0 %v745
        %812 = vmatprep.subr.mxu0 0.0
        %813 = vmatpush1.msra.mxu0 %v746
        %814 = vmatprep.subr.mxu0 0.0
        %815 = vmatpush1.msra.mxu0 %v747
        %816 = vmatprep.subr.mxu0 0.0
        %817 = vmatpush1.msra.mxu0 %v748
        %818 = vmatprep.subr.mxu0 0.0
        %819 = vmatpush1.msra.mxu0 %v749
        %820 = vmatprep.subr.mxu0 0.0
        %821 = vmatpush1.msra.mxu0 %v750
        %822 = vmatprep.mubr.f32.mxu0 %v578
        %823 = vmatmul.mubr.f32.gmra.mrb[0].mxu0 %v576
        %v824 = vpop.f32.mrb[0].mxu0
        %v825 = vadd.f32 %v756, %v824
        %v826 = vpop.f32.mrb[0].mxu0
        %827 = vdwg.mxu0
        %828 = vadd.xlane.f32.xlu0 %v825
        %v829 = vpop.xlane.xlu0 %828
        %v830 = vmul.f32 %v829, %v690
        %v831 = vsub.f32 %v825, %v830
        %v832 = vmul.f32 %v831, %v831
        %833 = vadd.xlane.f32.xlu0 %v832
        %v834 = vpop.xlane.xlu0 %833
        %v835 = vmul.f32 %v834, %v690
        %v836 = vadd.f32 %v835, 1e-05
        %v837 = vrsqrt.pop %v836
        %v838 = vmul.f32 %v831, %v837
        %v839 = vld [vmem:[%s7] sm:$0x1]
        %v841 = vlaneseq
        %v842 = vshrl.u32 %v841, 7
        %v843 = vsub.s32 0, %v842
        %v844 = vrot.slane %v839, %v843
        %v846 = vmul.f32 %v838, %v844
        %v847 = vld [vmem:[%s8] sm:$0x1]
        %v849 = vlaneseq
        %v850 = vshrl.u32 %v849, 7
        %v851 = vsub.s32 0, %v850
        %v852 = vrot.slane %v847, %v851
        %v854 = vadd.f32 %v846, %v852
        %v855 = vmax.f32 %v854, 0.0
        %v856 = vadd.f32 %v855, %v576
        %857 = vst [vmem:[%s447 + $0x8] sm:$0xff] %v856
      $region64: #{ultra_forward.6} parent=55 // pred_fallthru
        _
      %p858 = scmp.lt.s32.totalorder %s25, 0
      %s859 = scalar_select %p858, %s25, 0
      %s860 = smul.addr %s859, 2
      %s861 = smul.addr %s860, 8
      %s862 = scalar_lea.vmem %s9, %s861
      // Predicated region
      $region65: #{ultra_forward.6} parent=55 // pred_check
        %p863 = pneg %p275
      $region66: #{ultra_forward.6} parent=55 // pred_check_branch
        %865 = sbr.rel (%p863) target = $region68
      $region67: #{ultra_forward.6} parent=55 // pred_region
        _
      $region68: #{ultra_forward.6} parent=55 // pred_fallthru
        _
      // Predicated region
      $region69: #{ultra_forward.6} parent=55 // pred_check
        %p866 = pneg %p275
      $region70: #{ultra_forward.6} parent=55 // pred_check_branch
        %868 = sbr.rel (%p866) target = $region72
      $region71: #{ultra_forward.6} parent=55 // pred_region
        %p869 = scmp.lt.s32.totalorder %s25, 0
        %s870 = scalar_select %p869, %s25, 0
        %s871 = smul.addr %s870, 2
        %s872 = smul.addr %s871, 8
        %s873 = scalar_lea.vmem %s9, %s872
      $region72: #{ultra_forward.6} parent=55 // pred_fallthru
        _
    $region56: #{ultra_forward.6} parent=5 // pred_fallthru
      _
    %p874 = scmp.le.s32.totalorder 2, %s15
    // Predicated region
    $region73: #{ultra_forward.6} parent=5 // pred_check
      %p875 = pneg %p874
    $region74: #{ultra_forward.6} parent=5 // pred_check_branch
      %877 = sbr.rel (%p875) target = $region76
    $region75: #{ultra_forward.6} parent=5 // pred_region
      %s878 = ssub.s32 %s15, 2
    $region76: #{ultra_forward.6} parent=5 // pred_fallthru
      _
  $region6: #{ultra_forward.6} parent=0 // loop_footer
    %s19 = sadd.s32 1, %s15
  $region7: #{ultra_forward.6} parent=0 // loop_footer_branch
    %14 = sbr.rel target = $region3
  $region8: #{ultra_forward.6} parent=0 // loop_exit
    _

// kernel: ultra_forward.9
$region0: #{ultra_forward.9}
  #allocation0 [shape = 'u32[]', space=smem, size = 0x4, offset = 0x4, fixed_abs, tag = 'smem constant byte address 0x4 - core index']
  #allocation1 [shape = 'u32[144,128]{1,0:T(1,128)}', space=vmem, size = 0x12000, scoped, tag = 'internal scratch']
  #allocation2 [shape = 'f32[1,1]{1,0:T(1,128)S(1)}', space=vmem, size = 0x200, scoped, tag = 'scoped memory for ultra_forward.9']
  %s0 = inlined_call_operand.vmem [shape: f32[16,256], index: 0, kind: input, shape index: {}]
  %s1 = inlined_call_operand.vmem [shape: f32[2,128], index: 1, kind: input, shape index: {}]
  %s2 = inlined_call_operand.vmem [shape: f32[128,128], index: 2, kind: input, shape index: {}]
  %s3 = inlined_call_operand.vmem [shape: f32[1,128], index: 3, kind: input, shape index: {}]
  %s4 = inlined_call_operand.<no memory space> [shape: f32[1,1], index: 4, kind: input, shape index: {}]
  %s5 = inlined_call_operand.vmem [shape: f32[2,16], index: 5, kind: output, shape index: {}]
  %s6 = sld [smem:[#allocation0]]
  $region30: #{ultra_forward.9} parent=0
    _
  %s8 = ssub.s32 1, %s6
  %s9 = scalar_select 0, %s8, %s6
  %v10 = vstv %s4
  %11 = vst [vmem:[#allocation2] sm:$0x1] %v10
  // Predicated region
  $region2: #{ultra_forward.9} parent=0 // pred_check
    _
  $region3: #{ultra_forward.9} parent=0 // pred_check_branch
    %13 = sbr.rel (0) target = $region5
  $region4: #{ultra_forward.9} parent=0 // pred_region
    _
  $region5: #{ultra_forward.9} parent=0 // pred_fallthru
    _
  // Predicated region
  $region6: #{ultra_forward.9} parent=0 // pred_check
    _
  $region7: #{ultra_forward.9} parent=0 // pred_check_branch
    %15 = sbr.rel (0) target = $region9
  $region8: #{ultra_forward.9} parent=0 // pred_region
    _
  $region9: #{ultra_forward.9} parent=0 // pred_fallthru
    _
  // Predicated region
  $region10: #{ultra_forward.9} parent=0 // pred_check
    _
  $region11: #{ultra_forward.9} parent=0 // pred_check_branch
    %17 = sbr.rel (0) target = $region13
  $region12: #{ultra_forward.9} parent=0 // pred_region
    _
  $region13: #{ultra_forward.9} parent=0 // pred_fallthru
    _
  // Predicated region
  $region14: #{ultra_forward.9} parent=0 // pred_check
    _
  $region15: #{ultra_forward.9} parent=0 // pred_check_branch
    %19 = sbr.rel (0) target = $region17
  $region16: #{ultra_forward.9} parent=0 // pred_region
    _
  $region17: #{ultra_forward.9} parent=0 // pred_fallthru
    _
  // Predicated region
  $region18: #{ultra_forward.9} parent=0 // pred_check
    _
  $region19: #{ultra_forward.9} parent=0 // pred_check_branch
    %21 = sbr.rel (0) target = $region21
  $region20: #{ultra_forward.9} parent=0 // pred_region
    _
  $region21: #{ultra_forward.9} parent=0 // pred_fallthru
    _
  %v22 = vld [vmem:[%s0] sm:$0xff]
  %v23 = vld [vmem:[%s0 + $0x10] sm:$0xff]
  %v24 = vld [vmem:[%s2] sm:$0xff]
  %v25 = vld [vmem:[%s2 + $0x8] sm:$0xff]
  %v26 = vld [vmem:[%s2 + $0x10] sm:$0xff]
  %v27 = vld [vmem:[%s2 + $0x18] sm:$0xff]
  %v28 = vld [vmem:[%s2 + $0x20] sm:$0xff]
  %v29 = vld [vmem:[%s2 + $0x28] sm:$0xff]
  %v30 = vld [vmem:[%s2 + $0x30] sm:$0xff]
  %v31 = vld [vmem:[%s2 + $0x38] sm:$0xff]
  %v32 = vld [vmem:[%s2 + $0x40] sm:$0xff]
  %v33 = vld [vmem:[%s2 + $0x48] sm:$0xff]
  %v34 = vld [vmem:[%s2 + $0x50] sm:$0xff]
  %v35 = vld [vmem:[%s2 + $0x58] sm:$0xff]
  %v36 = vld [vmem:[%s2 + $0x60] sm:$0xff]
  %v37 = vld [vmem:[%s2 + $0x68] sm:$0xff]
  %v38 = vld [vmem:[%s2 + $0x70] sm:$0xff]
  %v39 = vld [vmem:[%s2 + $0x78] sm:$0xff]
  %v40 = vld [vmem:[%s1] sm:$0x1]
  %v41 = vlaneseq
  %v42 = vshrl.u32 %v41, 7
  %v43 = vsub.s32 0, %v42
  %v44 = vrot.slane %v40, %v43
  %45 = vmatprep.subr.mxu0 0.0
  %46 = vmatpush1.msra.mxu0 %v24
  %47 = vmatprep.subr.mxu0 0.0
  %48 = vmatpush1.msra.mxu0 %v25
  %49 = vmatprep.subr.mxu0 0.0
  %50 = vmatpush1.msra.mxu0 %v26
  %51 = vmatprep.subr.mxu0 0.0
  %52 = vmatpush1.msra.mxu0 %v27
  %53 = vmatprep.subr.mxu0 0.0
  %54 = vmatpush1.msra.mxu0 %v28
  %55 = vmatprep.subr.mxu0 0.0
  %56 = vmatpush1.msra.mxu0 %v29
  %57 = vmatprep.subr.mxu0 0.0
  %58 = vmatpush1.msra.mxu0 %v30
  %59 = vmatprep.subr.mxu0 0.0
  %60 = vmatpush1.msra.mxu0 %v31
  %61 = vmatprep.subr.mxu0 0.0
  %62 = vmatpush1.msra.mxu0 %v32
  %63 = vmatprep.subr.mxu0 0.0
  %64 = vmatpush1.msra.mxu0 %v33
  %65 = vmatprep.subr.mxu0 0.0
  %66 = vmatpush1.msra.mxu0 %v34
  %67 = vmatprep.subr.mxu0 0.0
  %68 = vmatpush1.msra.mxu0 %v35
  %69 = vmatprep.subr.mxu0 0.0
  %70 = vmatpush1.msra.mxu0 %v36
  %71 = vmatprep.subr.mxu0 0.0
  %72 = vmatpush1.msra.mxu0 %v37
  %73 = vmatprep.subr.mxu0 0.0
  %74 = vmatpush1.msra.mxu0 %v38
  %75 = vmatprep.subr.mxu0 0.0
  %76 = vmatpush1.msra.mxu0 %v39
  %77 = vmatprep.subr.mxu0 0.0
  %78 = vmatpush1.msra.mxu0 0.0
  %79 = vmatprep.subr.mxu0 0.0
  %80 = vmatpush1.msra.mxu0 0.0
  %81 = vmatprep.subr.mxu0 0.0
  %82 = vmatpush1.msra.mxu0 0.0
  %83 = vmatprep.subr.mxu0 0.0
  %84 = vmatpush1.msra.mxu0 0.0
  %85 = vmatprep.subr.mxu0 0.0
  %86 = vmatpush1.msra.mxu0 0.0
  %87 = vmatprep.subr.mxu0 0.0
  %88 = vmatpush1.msra.mxu0 0.0
  %89 = vmatprep.subr.mxu0 0.0
  %90 = vmatpush1.msra.mxu0 0.0
  %91 = vmatprep.subr.mxu0 0.0
  %92 = vmatpush1.msra.mxu0 0.0
  %93 = vmatprep.subr.mxu0 0.0
  %94 = vmatpush1.msra.mxu0 0.0
  %95 = vmatprep.subr.mxu0 0.0
  %96 = vmatpush1.msra.mxu0 0.0
  %97 = vmatprep.subr.mxu0 0.0
  %98 = vmatpush1.msra.mxu0 0.0
  %99 = vmatprep.subr.mxu0 0.0
  %100 = vmatpush1.msra.mxu0 0.0
  %101 = vmatprep.subr.mxu0 0.0
  %102 = vmatpush1.msra.mxu0 0.0
  %103 = vmatprep.subr.mxu0 0.0
  %104 = vmatpush1.msra.mxu0 0.0
  %105 = vmatprep.subr.mxu0 0.0
  %106 = vmatpush1.msra.mxu0 0.0
  %107 = vmatprep.subr.mxu0 0.0
  %108 = vmatpush1.msra.mxu0 0.0
  %109 = vmatprep.mubr.f32.mxu0 0.0
  %110 = vmatmul.mubr.f32.gmra.mrb[0].mxu0 %v22
  %v111 = vpop.f32.mrb[0].mxu0
  %v112 = vadd.f32 %v44, %v111
  %v113 = vpop.f32.mrb[0].mxu0
  %114 = vmatprep.mubr.f32.mxu0 0.0
  %115 = vmatmul.mubr.f32.gmra.mrb[0].mxu0 %v23
  %v116 = vpop.f32.mrb[0].mxu0
  %v117 = vadd.f32 %v44, %v116
  %v118 = vpop.f32.mrb[0].mxu0
  %119 = vdwg.mxu0
  %v120 = vmax.f32 %v112, 0.0
  %v121 = vmax.f32 %v117, 0.0
  %v122 = vld [vmem:[%s3] sm:$0x1]
  %123 = vmatprep.subr.mxu0 0.0
  %124 = vmatpush1.xpose.msra.mxu0 %v120
  %125 = vmatprep.subr.mxu0 0.0
  %126 = vmatpush1.xpose.msra.mxu0 %v121
  %127 = vmatprep.subr.mxu0 0.0
  %128 = vmatpush1.xpose.msra.mxu0 0.0
  %129 = vmatprep.subr.mxu0 0.0
  %130 = vmatpush1.xpose.msra.mxu0 0.0
  %131 = vmatprep.subr.mxu0 0.0
  %132 = vmatpush1.xpose.msra.mxu0 0.0
  %133 = vmatprep.subr.mxu0 0.0
  %134 = vmatpush1.xpose.msra.mxu0 0.0
  %135 = vmatprep.subr.mxu0 0.0
  %136 = vmatpush1.xpose.msra.mxu0 0.0
  %137 = vmatprep.subr.mxu0 0.0
  %138 = vmatpush1.xpose.msra.mxu0 0.0
  %139 = vmatprep.subr.mxu0 0.0
  %140 = vmatpush1.xpose.msra.mxu0 0.0
  %141 = vmatprep.subr.mxu0 0.0
  %142 = vmatpush1.xpose.msra.mxu0 0.0
  %143 = vmatprep.subr.mxu0 0.0
  %144 = vmatpush1.xpose.msra.mxu0 0.0
  %145 = vmatprep.subr.mxu0 0.0
  %146 = vmatpush1.xpose.msra.mxu0 0.0
  %147 = vmatprep.subr.mxu0 0.0
  %148 = vmatpush1.xpose.msra.mxu0 0.0
  %149 = vmatprep.subr.mxu0 0.0
  %150 = vmatpush1.xpose.msra.mxu0 0.0
  %151 = vmatprep.subr.mxu0 0.0
  %152 = vmatpush1.xpose.msra.mxu0 0.0
  %153 = vmatprep.subr.mxu0 0.0
  %154 = vmatpush1.xpose.msra.mxu0 0.0
  %155 = vmatprep.subr.mxu0 0.0
  %156 = vmatpush1.xpose.msra.mxu0 0.0
  %157 = vmatprep.subr.mxu0 0.0
  %158 = vmatpush1.xpose.msra.mxu0 0.0
  %159 = vmatprep.subr.mxu0 0.0
  %160 = vmatpush1.xpose.msra.mxu0 0.0
  %161 = vmatprep.subr.mxu0 0.0
  %162 = vmatpush1.xpose.msra.mxu0 0.0
  %163 = vmatprep.subr.mxu0 0.0
  %164 = vmatpush1.xpose.msra.mxu0 0.0
  %165 = vmatprep.subr.mxu0 0.0
  %166 = vmatpush1.xpose.msra.mxu0 0.0
  %167 = vmatprep.subr.mxu0 0.0
  %168 = vmatpush1.xpose.msra.mxu0 0.0
  %169 = vmatprep.subr.mxu0 0.0
  %170 = vmatpush1.xpose.msra.mxu0 0.0
  %171 = vmatprep.subr.mxu0 0.0
  %172 = vmatpush1.xpose.msra.mxu0 0.0
  %173 = vmatprep.subr.mxu0 0.0
  %174 = vmatpush1.xpose.msra.mxu0 0.0
  %175 = vmatprep.subr.mxu0 0.0
  %176 = vmatpush1.xpose.msra.mxu0 0.0
  %177 = vmatprep.subr.mxu0 0.0
  %178 = vmatpush1.xpose.msra.mxu0 0.0
  %179 = vmatprep.subr.mxu0 0.0
  %180 = vmatpush1.xpose.msra.mxu0 0.0
  %181 = vmatprep.subr.mxu0 0.0
  %182 = vmatpush1.xpose.msra.mxu0 0.0
  %183 = vmatprep.subr.mxu0 0.0
  %184 = vmatpush1.xpose.msra.mxu0 0.0
  %185 = vmatprep.subr.mxu0 0.0
  %186 = vmatpush1.xpose.msra.mxu0 0.0
  %187 = vmatprep.mubr.f32.mxu0 0.0
  %188 = vmatmul.mubr.f32.gmra.mrb[0].mxu0 %v122
  %v189 = vpop.f32.mrb[0].mxu0
  %v190 = vadd.f32 0.0, %v189
  %v191 = vpop.f32.mrb[0].mxu0
  %192 = vdwg.mxu0
  %v193 = vld [vmem:[%s0 + $0x8] sm:$0xff]
  %v194 = vld [vmem:[%s0 + $0x18] sm:$0xff]
  %v195 = vld [vmem:[%s1 + $0x1] sm:$0x1]
  %v196 = vlaneseq
  %v197 = vshrl.u32 %v196, 7
  %v198 = vsub.s32 0, %v197
  %v199 = vrot.slane %v195, %v198
  %200 = vmatprep.subr.mxu0 0.0
  %201 = vmatpush1.msra.mxu0 %v24
  %202 = vmatprep.subr.mxu0 0.0
  %203 = vmatpush1.msra.mxu0 %v25
  %204 = vmatprep.subr.mxu0 0.0
  %205 = vmatpush1.msra.mxu0 %v26
  %206 = vmatprep.subr.mxu0 0.0
  %207 = vmatpush1.msra.mxu0 %v27
  %208 = vmatprep.subr.mxu0 0.0
  %209 = vmatpush1.msra.mxu0 %v28
  %210 = vmatprep.subr.mxu0 0.0
  %211 = vmatpush1.msra.mxu0 %v29
  %212 = vmatprep.subr.mxu0 0.0
  %213 = vmatpush1.msra.mxu0 %v30
  %214 = vmatprep.subr.mxu0 0.0
  %215 = vmatpush1.msra.mxu0 %v31
  %216 = vmatprep.subr.mxu0 0.0
  %217 = vmatpush1.msra.mxu0 %v32
  %218 = vmatprep.subr.mxu0 0.0
  %219 = vmatpush1.msra.mxu0 %v33
  %220 = vmatprep.subr.mxu0 0.0
  %221 = vmatpush1.msra.mxu0 %v34
  %222 = vmatprep.subr.mxu0 0.0
  %223 = vmatpush1.msra.mxu0 %v35
  %224 = vmatprep.subr.mxu0 0.0
  %225 = vmatpush1.msra.mxu0 %v36
  %226 = vmatprep.subr.mxu0 0.0
  %227 = vmatpush1.msra.mxu0 %v37
  %228 = vmatprep.subr.mxu0 0.0
  %229 = vmatpush1.msra.mxu0 %v38
  %230 = vmatprep.subr.mxu0 0.0
  %231 = vmatpush1.msra.mxu0 %v39
  %232 = vmatprep.subr.mxu0 0.0
  %233 = vmatpush1.msra.mxu0 0.0
  %234 = vmatprep.subr.mxu0 0.0
  %235 = vmatpush1.msra.mxu0 0.0
  %236 = vmatprep.subr.mxu0 0.0
  %237 = vmatpush1.msra.mxu0 0.0
  %238 = vmatprep.subr.mxu0 0.0
  %239 = vmatpush1.msra.mxu0 0.0
  %240 = vmatprep.subr.mxu0 0.0
  %241 = vmatpush1.msra.mxu0 0.0
  %242 = vmatprep.subr.mxu0 0.0
  %243 = vmatpush1.msra.mxu0 0.0
  %244 = vmatprep.subr.mxu0 0.0
  %245 = vmatpush1.msra.mxu0 0.0
  %246 = vmatprep.subr.mxu0 0.0
  %247 = vmatpush1.msra.mxu0 0.0
  %248 = vmatprep.subr.mxu0 0.0
  %249 = vmatpush1.msra.mxu0 0.0
  %250 = vmatprep.subr.mxu0 0.0
  %251 = vmatpush1.msra.mxu0 0.0
  %252 = vmatprep.subr.mxu0 0.0
  %253 = vmatpush1.msra.mxu0 0.0
  %254 = vmatprep.subr.mxu0 0.0
  %255 = vmatpush1.msra.mxu0 0.0
  %256 = vmatprep.subr.mxu0 0.0
  %257 = vmatpush1.msra.mxu0 0.0
  %258 = vmatprep.subr.mxu0 0.0
  %259 = vmatpush1.msra.mxu0 0.0
  %260 = vmatprep.subr.mxu0 0.0
  %261 = vmatpush1.msra.mxu0 0.0
  %262 = vmatprep.subr.mxu0 0.0
  %263 = vmatpush1.msra.mxu0 0.0
  %264 = vmatprep.mubr.f32.mxu0 0.0
  %265 = vmatmul.mubr.f32.gmra.mrb[0].mxu0 %v193
  %v266 = vpop.f32.mrb[0].mxu0
  %v267 = vadd.f32 %v199, %v266
  %v268 = vpop.f32.mrb[0].mxu0
  %269 = vmatprep.mubr.f32.mxu0 0.0
  %270 = vmatmul.mubr.f32.gmra.mrb[0].mxu0 %v194
  %v271 = vpop.f32.mrb[0].mxu0
  %v272 = vadd.f32 %v199, %v271
  %v273 = vpop.f32.mrb[0].mxu0
  %274 = vdwg.mxu0
  %v275 = vmax.f32 %v267, 0.0
  %v276 = vmax.f32 %v272, 0.0
  %277 = vmatprep.subr.mxu0 0.0
  %278 = vmatpush1.xpose.msra.mxu0 %v275
  %279 = vmatprep.subr.mxu0 0.0
  %280 = vmatpush1.xpose.msra.mxu0 %v276
  %281 = vmatprep.subr.mxu0 0.0
  %282 = vmatpush1.xpose.msra.mxu0 0.0
  %283 = vmatprep.subr.mxu0 0.0
  %284 = vmatpush1.xpose.msra.mxu0 0.0
  %285 = vmatprep.subr.mxu0 0.0
  %286 = vmatpush1.xpose.msra.mxu0 0.0
  %287 = vmatprep.subr.mxu0 0.0
  %288 = vmatpush1.xpose.msra.mxu0 0.0
  %289 = vmatprep.subr.mxu0 0.0
  %290 = vmatpush1.xpose.msra.mxu0 0.0
  %291 = vmatprep.subr.mxu0 0.0
  %292 = vmatpush1.xpose.msra.mxu0 0.0
  %293 = vmatprep.subr.mxu0 0.0
  %294 = vmatpush1.xpose.msra.mxu0 0.0
  %295 = vmatprep.subr.mxu0 0.0
  %296 = vmatpush1.xpose.msra.mxu0 0.0
  %297 = vmatprep.subr.mxu0 0.0
  %298 = vmatpush1.xpose.msra.mxu0 0.0
  %299 = vmatprep.subr.mxu0 0.0
  %300 = vmatpush1.xpose.msra.mxu0 0.0
  %301 = vmatprep.subr.mxu0 0.0
  %302 = vmatpush1.xpose.msra.mxu0 0.0
  %303 = vmatprep.subr.mxu0 0.0
  %304 = vmatpush1.xpose.msra.mxu0 0.0
  %305 = vmatprep.subr.mxu0 0.0
  %306 = vmatpush1.xpose.msra.mxu0 0.0
  %307 = vmatprep.subr.mxu0 0.0
  %308 = vmatpush1.xpose.msra.mxu0 0.0
  %309 = vmatprep.subr.mxu0 0.0
  %310 = vmatpush1.xpose.msra.mxu0 0.0
  %311 = vmatprep.subr.mxu0 0.0
  %312 = vmatpush1.xpose.msra.mxu0 0.0
  %313 = vmatprep.subr.mxu0 0.0
  %314 = vmatpush1.xpose.msra.mxu0 0.0
  %315 = vmatprep.subr.mxu0 0.0
  %316 = vmatpush1.xpose.msra.mxu0 0.0
  %317 = vmatprep.subr.mxu0 0.0
  %318 = vmatpush1.xpose.msra.mxu0 0.0
  %319 = vmatprep.subr.mxu0 0.0
  %320 = vmatpush1.xpose.msra.mxu0 0.0
  %321 = vmatprep.subr.mxu0 0.0
  %322 = vmatpush1.xpose.msra.mxu0 0.0
  %323 = vmatprep.subr.mxu0 0.0
  %324 = vmatpush1.xpose.msra.mxu0 0.0
  %325 = vmatprep.subr.mxu0 0.0
  %326 = vmatpush1.xpose.msra.mxu0 0.0
  %327 = vmatprep.subr.mxu0 0.0
  %328 = vmatpush1.xpose.msra.mxu0 0.0
  %329 = vmatprep.subr.mxu0 0.0
  %330 = vmatpush1.xpose.msra.mxu0 0.0
  %331 = vmatprep.subr.mxu0 0.0
  %332 = vmatpush1.xpose.msra.mxu0 0.0
  %333 = vmatprep.subr.mxu0 0.0
  %334 = vmatpush1.xpose.msra.mxu0 0.0
  %335 = vmatprep.subr.mxu0 0.0
  %336 = vmatpush1.xpose.msra.mxu0 0.0
  %337 = vmatprep.subr.mxu0 0.0
  %338 = vmatpush1.xpose.msra.mxu0 0.0
  %339 = vmatprep.subr.mxu0 0.0
  %340 = vmatpush1.xpose.msra.mxu0 0.0
  %341 = vmatprep.mubr.f32.mxu0 0.0
  %342 = vmatmul.mubr.f32.gmra.mrb[0].mxu0 %v122
  %v343 = vpop.f32.mrb[0].mxu0
  %v344 = vadd.f32 0.0, %v343
  %v345 = vpop.f32.mrb[0].mxu0
  %346 = vdwg.mxu0
  %v348 = vrot.slane %v344, 7
  %vm350 = vcmask 1040384
  %v351 = vsel %vm350, %v190, %v348
  %v352 = vld [vmem:[#allocation2] sm:$0x1]
  %v354 = vlaneseq
  %v355 = vshrl.u32 %v354, 7
  %v356 = vsub.s32 0, %v355
  %v357 = vrot.slane %v352, %v356
  %358 = vset.pattern.permute.xlu0 0
  %359 = vperm.xlu0 %358, %v357
  %v360 = vpop.permute.xlu0 %359
  %v362 = vadd.f32 %v351, %v360
  %vm363 = vcmask 123904
  %364 = vst.msk [vmem:[%s5] sm:$0x3] %vm363, %v362
  // Predicated region
  $region22: #{ultra_forward.9} parent=0 // pred_check
    _
  $region23: #{ultra_forward.9} parent=0 // pred_check_branch
    %366 = sbr.rel (0) target = $region25
  $region24: #{ultra_forward.9} parent=0 // pred_region
    _
  $region25: #{ultra_forward.9} parent=0 // pred_fallthru
    _
  // Predicated region
  $region26: #{ultra_forward.9} parent=0 // pred_check
    _
  $region27: #{ultra_forward.9} parent=0 // pred_check_branch
    %368 = sbr.rel (0) target = $region29
  $region28: #{ultra_forward.9} parent=0 // pred_region
    _
  $region29: #{ultra_forward.9} parent=0 // pred_fallthru
    _

// kernel: ultra_forward.5
$region0: #{ultra_forward.5}
  #allocation0 [shape = 'u32[]', space=smem, size = 0x4, offset = 0x4, fixed_abs, tag = 'smem constant byte address 0x4 - core index']
  #allocation1 [shape = 'u32[144,128]{1,0:T(1,128)}', space=vmem, size = 0x12000, scoped, tag = 'internal scratch']
  #allocation2 [shape = 'f32[8,256]{1,0:T(8,128)}', space=vmem, size = 0x2000, scoped, tag = 'scratch operand']
  %s0 = inlined_call_operand.vmem [shape: bf16[8,256], index: 0, kind: input, shape index: {}]
  %s1 = inlined_call_operand.vmem [shape: f32[8,256], index: 1, kind: input, shape index: {}, may-alias: {1,2}]
  %s2 = inlined_call_operand.vmem [shape: f32[8,256], index: 2, kind: input, shape index: {}, may-alias: {1,2}]
  %s3 = inlined_call_operand.vmem [shape: bf16[4,1,256], index: 3, kind: input, shape index: {}]
  %s4 = inlined_call_operand.vmem [shape: s8[4,8,8], index: 4, kind: input, shape index: {}]
  %s5 = inlined_call_operand.hbm [shape: f32[256,128], index: 5, kind: input, shape index: {}]
  %s6 = inlined_call_operand.vmem [shape: f32[1,128], index: 6, kind: input, shape index: {}]
  %s7 = inlined_call_operand.vmem [shape: f32[1,128], index: 7, kind: input, shape index: {}]
  %s8 = inlined_call_operand.vmem [shape: f32[1,128], index: 8, kind: input, shape index: {}]
  %s9 = inlined_call_operand.vmem [shape: f32[8,256], index: 9, kind: output, shape index: {}]
  %s10 = sld [smem:[#allocation0]]
  $region81: #{ultra_forward.5} parent=0
    _
  %s12 = ssub.s32 1, %s10
  %s13 = scalar_select 0, %s12, %s10
  $region1: #{ultra_forward.5} parent=0
    #allocation3 [shape = 'u8[131072]{0}', space=vmem, size = 0x20000, scoped, tag = 'input window, operand 5, single buffered']
    #allocation4 [shape = 's32[2]{0}', space=sflag, size = 0x8, scoped, tag = 'scoped memory for ultra_forward.5']
    %14 = vsyncpa [#allocation4], 0
    loop: start=0, step=1, limit=6
    $region2: #{ultra_forward.5} parent=1 // loop_pre_header
      _
    $region3: #{ultra_forward.5} parent=1 // loop_header
      %s16 = sphi 0, %s20
      %p17 = scmp.ge.s32.totalorder %s16, 6
      %s23 = sphi 0, %s42
      %s24 = sphi 0, %s38
      %s25 = sphi 0, %s34
      %s26 = sphi 0, %s23
      %s27 = sphi 0, %s24
      %s28 = sphi 0, %s25
      %s29 = sphi 0, %s26
      %s30 = sphi 0, %s27
      %s31 = sphi 0, %s28
      %s45 = sphi 0, %s47
      %s48 = sphi 0, %s45
      %s49 = sphi 0, %s48
      %s65 = sphi 0, %s49
      %s71 = sphi 0, %s73
      %s74 = sphi 0, %s71
      %s75 = sphi 0, %s74
      %s91 = sphi 0, %s75
      %s97 = sphi 0, %s99
      %s100 = sphi 0, %s97
      %s101 = sphi 0, %s100
      %s117 = sphi 0, %s101
      %s123 = sphi 0, %s125
      %s126 = sphi 0, %s123
      %s127 = sphi 0, %s126
      %s143 = sphi 0, %s127
      %s153 = sphi 0, %s155
      %s156 = sphi 0, %s153
      %s157 = sphi 0, %s156
      %s173 = sphi 0, %s157
      %s177 = sphi 0, %s177
      %s179 = sphi 0, %s177
      %s180 = sphi 0, %s179
      %s194 = sphi 0, %s180
      %s198 = sphi 0, %s198
      %s200 = sphi 0, %s198
      %s201 = sphi 0, %s200
      %s215 = sphi 0, %s201
      %s219 = sphi 0, %s219
      %s221 = sphi 0, %s219
      %s222 = sphi 0, %s221
      %s236 = sphi 0, %s222
      %s240 = sphi 0, %s240
      %s242 = sphi 0, %s240
      %s243 = sphi 0, %s242
      %s257 = sphi 0, %s243
      %s263 = sphi 0, %s265
      %s266 = sphi 0, %s263
      %s267 = sphi 0, %s266
      %s283 = sphi 0, %s267
    $region4: #{ultra_forward.5} parent=1 // loop_header_branch
      %19 = sbr.rel (%p17) target = $region8
    $region5: #{ultra_forward.5} parent=1 // loop_body
      %s21 = ssub.s32 %s16, 1
      %s22 = ssub.s32 %s16, 2
      %s32 = sadd.s32 1, %s25
      %p33 = scmp.ge.s32.totalorder %s32, 4
      %s34 = scalar_select %p33, 0, %s32
      %s35 = sadd.s32 1, %s24
      %s36 = scalar_select %p33, %s35, %s24
      %p37 = scmp.ge.s32.totalorder %s36, 1
      %s38 = scalar_select %p37, 0, %s36
      %s39 = sadd.s32 1, %s23
      %s40 = scalar_select %p37, %s39, %s23
      %p41 = scmp.ge.s32.totalorder %s40, 1
      %s42 = scalar_select %p41, 0, %s40
      %s43 = ssub.s32 %s24, %s38
      %p44 = scmp.eq.s32.totalorder %s43, 0
      %s46 = sadd.s32 %s45, 1
      %s47 = scalar_select %p44, %s45, %s46
      %p50 = pneg %p44
      %p51 = scmp.eq.s32.totalorder %s16, 3
      %p52 = por %p50, %p51
      %p53 = scmp.ne.s32.totalorder %s45, %s48
      %p54 = scmp.eq.s32.totalorder %s16, 0
      %p55 = por %p53, %p54
      %p56 = scmp.ne.s32.totalorder %s45, %s48
      %p57 = scmp.eq.s32.totalorder %s21, 3
      %p58 = por %p56, %p57
      %p59 = scmp.ne.s32.totalorder %s48, %s49
      %p60 = scmp.eq.s32.totalorder %s21, 0
      %p61 = por %p59, %p60
      %p62 = scmp.ne.s32.totalorder %s48, %s49
      %p63 = scmp.eq.s32.totalorder %s22, 3
      %p64 = por %p62, %p63
      %p66 = scmp.ne.s32.totalorder %s49, %s65
      %p67 = scmp.eq.s32.totalorder %s22, 0
      %p68 = por %p66, %p67
      %s69 = ssub.s32 %s23, %s42
      %p70 = scmp.eq.s32.totalorder %s69, 0
      %s72 = sadd.s32 %s71, 1
      %s73 = scalar_select %p70, %s71, %s72
      %p76 = pneg %p70
      %p77 = scmp.eq.s32.totalorder %s16, 3
      %p78 = por %p76, %p77
      %p79 = scmp.ne.s32.totalorder %s71, %s74
      %p80 = scmp.eq.s32.totalorder %s16, 0
      %p81 = por %p79, %p80
      %p82 = scmp.ne.s32.totalorder %s71, %s74
      %p83 = scmp.eq.s32.totalorder %s21, 3
      %p84 = por %p82, %p83
      %p85 = scmp.ne.s32.totalorder %s74, %s75
      %p86 = scmp.eq.s32.totalorder %s21, 0
      %p87 = por %p85, %p86
      %p88 = scmp.ne.s32.totalorder %s74, %s75
      %p89 = scmp.eq.s32.totalorder %s22, 3
      %p90 = por %p88, %p89
      %p92 = scmp.ne.s32.totalorder %s75, %s91
      %p93 = scmp.eq.s32.totalorder %s22, 0
      %p94 = por %p92, %p93
      %s95 = ssub.s32 %s23, %s42
      %p96 = scmp.eq.s32.totalorder %s95, 0
      %s98 = sadd.s32 %s97, 1
      %s99 = scalar_select %p96, %s97, %s98
      %p102 = pneg %p96
      %p103 = scmp.eq.s32.totalorder %s16, 3
      %p104 = por %p102, %p103
      %p105 = scmp.ne.s32.totalorder %s97, %s100
      %p106 = scmp.eq.s32.totalorder %s16, 0
      %p107 = por %p105, %p106
      %p108 = scmp.ne.s32.totalorder %s97, %s100
      %p109 = scmp.eq.s32.totalorder %s21, 3
      %p110 = por %p108, %p109
      %p111 = scmp.ne.s32.totalorder %s100, %s101
      %p112 = scmp.eq.s32.totalorder %s21, 0
      %p113 = por %p111, %p112
      %p114 = scmp.ne.s32.totalorder %s100, %s101
      %p115 = scmp.eq.s32.totalorder %s22, 3
      %p116 = por %p114, %p115
      %p118 = scmp.ne.s32.totalorder %s101, %s117
      %p119 = scmp.eq.s32.totalorder %s22, 0
      %p120 = por %p118, %p119
      %s121 = ssub.s32 %s25, %s34
      %p122 = scmp.eq.s32.totalorder %s121, 0
      %s124 = sadd.s32 %s123, 1
      %s125 = scalar_select %p122, %s123, %s124
      %p128 = pneg %p122
      %p129 = scmp.eq.s32.totalorder %s16, 3
      %p130 = por %p128, %p129
      %p131 = scmp.ne.s32.totalorder %s123, %s126
      %p132 = scmp.eq.s32.totalorder %s16, 0
      %p133 = por %p131, %p132
      %p134 = scmp.ne.s32.totalorder %s123, %s126
      %p135 = scmp.eq.s32.totalorder %s21, 3
      %p136 = por %p134, %p135
      %p137 = scmp.ne.s32.totalorder %s126, %s127
      %p138 = scmp.eq.s32.totalorder %s21, 0
      %p139 = por %p137, %p138
      %p140 = scmp.ne.s32.totalorder %s126, %s127
      %p141 = scmp.eq.s32.totalorder %s22, 3
      %p142 = por %p140, %p141
      %p144 = scmp.ne.s32.totalorder %s127, %s143
      %p145 = scmp.eq.s32.totalorder %s22, 0
      %p146 = por %p144, %p145
      %s147 = ssub.s32 %s25, %s34
      %s148 = ssub.s32 %s23, %s42
      %s149 = sor.u32 %s147, %s148
      %s150 = ssub.s32 %s24, %s38
      %s151 = sor.u32 %s149, %s150
      %p152 = scmp.eq.s32.totalorder %s151, 0
      %s154 = sadd.s32 %s153, 1
      %s155 = scalar_select %p152, %s153, %s154
      %p158 = pneg %p152
      %p159 = scmp.eq.s32.totalorder %s16, 3
      %p160 = por %p158, %p159
      %p161 = scmp.ne.s32.totalorder %s153, %s156
      %p162 = scmp.eq.s32.totalorder %s16, 0
      %p163 = por %p161, %p162
      %p164 = scmp.ne.s32.totalorder %s153, %s156
      %p165 = scmp.eq.s32.totalorder %s21, 3
      %p166 = por %p164, %p165
      %p167 = scmp.ne.s32.totalorder %s156, %s157
      %p168 = scmp.eq.s32.totalorder %s21, 0
      %p169 = por %p167, %p168
      %p170 = scmp.ne.s32.totalorder %s156, %s157
      %p171 = scmp.eq.s32.totalorder %s22, 3
      %p172 = por %p170, %p171
      %p174 = scmp.ne.s32.totalorder %s157, %s173
      %p175 = scmp.eq.s32.totalorder %s22, 0
      %p176 = por %p174, %p175
      %s178 = sadd.s32 %s177, 1
      %p181 = scmp.eq.s32.totalorder %s16, 3
      %p182 = scmp.ne.s32.totalorder %s177, %s179
      %p183 = scmp.eq.s32.totalorder %s16, 0
      %p184 = por %p182, %p183
      %p185 = scmp.ne.s32.totalorder %s177, %s179
      %p186 = scmp.eq.s32.totalorder %s21, 3
      %p187 = por %p185, %p186
      %p188 = scmp.ne.s32.totalorder %s179, %s180
      %p189 = scmp.eq.s32.totalorder %s21, 0
      %p190 = por %p188, %p189
      %p191 = scmp.ne.s32.totalorder %s179, %s180
      %p192 = scmp.eq.s32.totalorder %s22, 3
      %p193 = por %p191, %p192
      %p195 = scmp.ne.s32.totalorder %s180, %s194
      %p196 = scmp.eq.s32.totalorder %s22, 0
      %p197 = por %p195, %p196
      %s199 = sadd.s32 %s198, 1
      %p202 = scmp.eq.s32.totalorder %s16, 3
      %p203 = scmp.ne.s32.totalorder %s198, %s200
      %p204 = scmp.eq.s32.totalorder %s16, 0
      %p205 = por %p203, %p204
      %p206 = scmp.ne.s32.totalorder %s198, %s200
      %p207 = scmp.eq.s32.totalorder %s21, 3
      %p208 = por %p206, %p207
      %p209 = scmp.ne.s32.totalorder %s200, %s201
      %p210 = scmp.eq.s32.totalorder %s21, 0
      %p211 = por %p209, %p210
      %p212 = scmp.ne.s32.totalorder %s200, %s201
      %p213 = scmp.eq.s32.totalorder %s22, 3
      %p214 = por %p212, %p213
      %p216 = scmp.ne.s32.totalorder %s201, %s215
      %p217 = scmp.eq.s32.totalorder %s22, 0
      %p218 = por %p216, %p217
      %s220 = sadd.s32 %s219, 1
      %p223 = scmp.eq.s32.totalorder %s16, 3
      %p224 = scmp.ne.s32.totalorder %s219, %s221
      %p225 = scmp.eq.s32.totalorder %s16, 0
      %p226 = por %p224, %p225
      %p227 = scmp.ne.s32.totalorder %s219, %s221
      %p228 = scmp.eq.s32.totalorder %s21, 3
      %p229 = por %p227, %p228
      %p230 = scmp.ne.s32.totalorder %s221, %s222
      %p231 = scmp.eq.s32.totalorder %s21, 0
      %p232 = por %p230, %p231
      %p233 = scmp.ne.s32.totalorder %s221, %s222
      %p234 = scmp.eq.s32.totalorder %s22, 3
      %p235 = por %p233, %p234
      %p237 = scmp.ne.s32.totalorder %s222, %s236
      %p238 = scmp.eq.s32.totalorder %s22, 0
      %p239 = por %p237, %p238
      %s241 = sadd.s32 %s240, 1
      %p244 = scmp.eq.s32.totalorder %s16, 3
      %p245 = scmp.ne.s32.totalorder %s240, %s242
      %p246 = scmp.eq.s32.totalorder %s16, 0
      %p247 = por %p245, %p246
      %p248 = scmp.ne.s32.totalorder %s240, %s242
      %p249 = scmp.eq.s32.totalorder %s21, 3
      %p250 = por %p248, %p249
      %p251 = scmp.ne.s32.totalorder %s242, %s243
      %p252 = scmp.eq.s32.totalorder %s21, 0
      %p253 = por %p251, %p252
      %p254 = scmp.ne.s32.totalorder %s242, %s243
      %p255 = scmp.eq.s32.totalorder %s22, 3
      %p256 = por %p254, %p255
      %p258 = scmp.ne.s32.totalorder %s243, %s257
      %p259 = scmp.eq.s32.totalorder %s22, 0
      %p260 = por %p258, %p259
      %s261 = ssub.s32 %s23, %s42
      %p262 = scmp.eq.s32.totalorder %s261, 0
      %s264 = sadd.s32 %s263, 1
      %s265 = scalar_select %p262, %s263, %s264
      %p268 = pneg %p262
      %p269 = scmp.eq.s32.totalorder %s16, 3
      %p270 = por %p268, %p269
      %p271 = scmp.ne.s32.totalorder %s263, %s266
      %p272 = scmp.eq.s32.totalorder %s16, 0
      %p273 = por %p271, %p272
      %p274 = scmp.ne.s32.totalorder %s263, %s266
      %p275 = scmp.eq.s32.totalorder %s21, 3
      %p276 = por %p274, %p275
      %p277 = scmp.ne.s32.totalorder %s266, %s267
      %p278 = scmp.eq.s32.totalorder %s21, 0
      %p279 = por %p277, %p278
      %p280 = scmp.ne.s32.totalorder %s266, %s267
      %p281 = scmp.eq.s32.totalorder %s22, 3
      %p282 = por %p280, %p281
      %p284 = scmp.ne.s32.totalorder %s267, %s283
      %p285 = scmp.eq.s32.totalorder %s22, 0
      %p286 = por %p284, %p285
      %p287 = scmp.le.s32.totalorder 1, %s16
      %p288 = scmp.lt.s32.totalorder %s16, 5
      %p289 = pnand %p287, %p288
      %p290 = pneg %p289
      // Predicated region
      $region9: #{ultra_forward.5} parent=5 // pred_check
        _
      $region10: #{ultra_forward.5} parent=5 // pred_check_branch
        %292 = sbr.rel (%p289) target = $region12
      $region11: #{ultra_forward.5} parent=5 // pred_region
        %s293 = ssub.s32 %s16, 1
        // Predicated region
        $region13: #{ultra_forward.5} parent=11 // pred_check
          %p294 = pneg %p61
        $region14: #{ultra_forward.5} parent=11 // pred_check_branch
          %296 = sbr.rel (%p294) target = $region16
        $region15: #{ultra_forward.5} parent=11 // pred_region
          %p297 = scmp.lt.s32.totalorder %s27, 0
          %s298 = scalar_select %p297, %s27, 0
          %s299 = smul.addr %s298, 2
          %s300 = smul.addr %s299, 4
          %s301 = scalar_lea.vmem %s0, %s300
        $region16: #{ultra_forward.5} parent=11 // pred_fallthru
          _
        // Predicated region
        $region17: #{ultra_forward.5} parent=11 // pred_check
          %p302 = pneg %p87
        $region18: #{ultra_forward.5} parent=11 // pred_check_branch
          %304 = sbr.rel (%p302) target = $region20
        $region19: #{ultra_forward.5} parent=11 // pred_region
          %p305 = scmp.lt.s32.totalorder %s26, 0
          %s306 = scalar_select %p305, %s26, 0
          %s307 = smul.addr %s306, 2
          %s308 = smul.addr %s307, 8
          %s309 = scalar_lea.vmem %s1, %s308
        $region20: #{ultra_forward.5} parent=11 // pred_fallthru
          _
        // Predicated region
        $region21: #{ultra_forward.5} parent=11 // pred_check
          %p310 = pneg %p113
        $region22: #{ultra_forward.5} parent=11 // pred_check_branch
          %312 = sbr.rel (%p310) target = $region24
        $region23: #{ultra_forward.5} parent=11 // pred_region
          %p313 = scmp.lt.s32.totalorder %s26, 0
          %s314 = scalar_select %p313, %s26, 0
          %s315 = smul.addr %s314, 2
          %s316 = smul.addr %s315, 8
          %s317 = scalar_lea.vmem %s2, %s316
        $region24: #{ultra_forward.5} parent=11 // pred_fallthru
          _
        // Predicated region
        $region25: #{ultra_forward.5} parent=11 // pred_check
          %p318 = pneg %p190
        $region26: #{ultra_forward.5} parent=11 // pred_check_branch
          %320 = sbr.rel (%p318) target = $region28
        $region27: #{ultra_forward.5} parent=11 // pred_region
          %s322 = ssub.s32 4096, 4096
          %323 = vsyncadd [#allocation4], %s322
          %s324 = sshll.u32 [#allocation3], 4
          %s325 = int_to_ptr.vmem [resolvable:$true] %s324
          %330 = dma.hbm_to_vmem [thread:$0]  %s5, 4096, %s325, [#allocation4], 128, 128, 8
        $region28: #{ultra_forward.5} parent=11 // pred_fallthru
          _
        // Predicated region
        $region29: #{ultra_forward.5} parent=11 // pred_check
          %p331 = pneg %p211
        $region30: #{ultra_forward.5} parent=11 // pred_check_branch
          %333 = sbr.rel (%p331) target = $region32
        $region31: #{ultra_forward.5} parent=11 // pred_region
          _
        $region32: #{ultra_forward.5} parent=11 // pred_fallthru
          _
        // Predicated region
        $region33: #{ultra_forward.5} parent=11 // pred_check
          %p334 = pneg %p232
        $region34: #{ultra_forward.5} parent=11 // pred_check_branch
          %336 = sbr.rel (%p334) target = $region36
        $region35: #{ultra_forward.5} parent=11 // pred_region
          _
        $region36: #{ultra_forward.5} parent=11 // pred_fallthru
          _
        // Predicated region
        $region37: #{ultra_forward.5} parent=11 // pred_check
          %p337 = pneg %p253
        $region38: #{ultra_forward.5} parent=11 // pred_check_branch
          %339 = sbr.rel (%p337) target = $region40
        $region39: #{ultra_forward.5} parent=11 // pred_region
          _
        $region40: #{ultra_forward.5} parent=11 // pred_fallthru
          _
      $region12: #{ultra_forward.5} parent=5 // pred_fallthru
        _
      %p340 = scmp.lt.s32.totalorder %s16, 4
      // Predicated region
      $region41: #{ultra_forward.5} parent=5 // pred_check
        %p341 = pneg %p340
      $region42: #{ultra_forward.5} parent=5 // pred_check_branch
        %343 = sbr.rel (%p341) target = $region44
      $region43: #{ultra_forward.5} parent=5 // pred_region
        // Predicated region
        $region45: #{ultra_forward.5} parent=43 // pred_check
          %p344 = pneg %p133
        $region46: #{ultra_forward.5} parent=43 // pred_check_branch
          %346 = sbr.rel (%p344) target = $region48
        $region47: #{ultra_forward.5} parent=43 // pred_region
          %p347 = scmp.lt.s32.totalorder %s25, 3
          %s348 = scalar_select %p347, %s25, 3
          %s349 = smul.addr %s348, 2
          %s350 = scalar_lea.vmem %s3, %s349
        $region48: #{ultra_forward.5} parent=43 // pred_fallthru
          _
        // Predicated region
        $region49: #{ultra_forward.5} parent=43 // pred_check
          %p351 = pneg %p163
        $region50: #{ultra_forward.5} parent=43 // pred_check_branch
          %353 = sbr.rel (%p351) target = $region52
        $region51: #{ultra_forward.5} parent=43 // pred_region
          %p354 = scmp.lt.s32.totalorder %s25, 3
          %s355 = scalar_select %p354, %s25, 3
          %p356 = scmp.lt.s32.totalorder %s23, 0
          %s357 = scalar_select %p356, %s23, 0
          %p358 = scmp.lt.s32.totalorder %s24, 0
          %s359 = scalar_select %p358, %s24, 0
          %s360 = sadd.s32 %s359, %s357
          %s361 = sadd.s32 %s360, %s355
          %s362 = smul.addr %s361, 2
          %s363 = scalar_lea.vmem %s4, %s362
        $region52: #{ultra_forward.5} parent=43 // pred_fallthru
          _
      $region44: #{ultra_forward.5} parent=5 // pred_fallthru
        _
      %p364 = scmp.le.s32.totalorder 1, %s16
      %p365 = scmp.lt.s32.totalorder %s16, 5
      %p366 = pnand %p364, %p365
      %p367 = pneg %p366
      // Predicated region
      $region53: #{ultra_forward.5} parent=5 // pred_check
        _
      $region54: #{ultra_forward.5} parent=5 // pred_check_branch
        %369 = sbr.rel (%p366) target = $region56
      $region55: #{ultra_forward.5} parent=5 // pred_region
        %s370 = ssub.s32 %s16, 1
        // Predicated region
        $region57: #{ultra_forward.5} parent=55 // pred_check
          %p371 = pneg %p190
        $region58: #{ultra_forward.5} parent=55 // pred_check_branch
          %373 = sbr.rel (%p371) target = $region60
        $region59: #{ultra_forward.5} parent=55 // pred_region
          %374 = dma.done [#allocation4], 4096
        $region60: #{ultra_forward.5} parent=55 // pred_fallthru
          _
        %p375 = scmp.lt.s32.totalorder %s27, 0
        %s376 = scalar_select %p375, %s27, 0
        %s377 = smul.addr %s376, 2
        %s378 = smul.addr %s377, 4
        %s379 = scalar_lea.vmem %s0, %s378
        %p380 = pneg %p61
        %p381 = pneg %p58
        %p382 = scmp.lt.s32.totalorder %s26, 0
        %s383 = scalar_select %p382, %s26, 0
        %s384 = smul.addr %s383, 2
        %s385 = smul.addr %s384, 8
        %s386 = scalar_lea.vmem %s1, %s385
        %p387 = pneg %p87
        %p388 = pneg %p84
        %p389 = scmp.lt.s32.totalorder %s26, 0
        %s390 = scalar_select %p389, %s26, 0
        %s391 = smul.addr %s390, 2
        %s392 = smul.addr %s391, 8
        %s393 = scalar_lea.vmem %s2, %s392
        %p394 = pneg %p113
        %p395 = pneg %p110
        %p396 = scmp.lt.s32.totalorder %s28, 3
        %s397 = scalar_select %p396, %s28, 3
        %s398 = smul.addr %s397, 2
        %s399 = scalar_lea.vmem %s3, %s398
        %p400 = pneg %p139
        %p401 = pneg %p136
        %p402 = scmp.lt.s32.totalorder %s28, 3
        %s403 = scalar_select %p402, %s28, 3
        %p404 = scmp.lt.s32.totalorder %s26, 0
        %s405 = scalar_select %p404, %s26, 0
        %p406 = scmp.lt.s32.totalorder %s27, 0
        %s407 = scalar_select %p406, %s27, 0
        %s408 = sadd.s32 %s407, %s405
        %s409 = sadd.s32 %s408, %s403
        %s410 = smul.addr %s409, 2
        %s411 = scalar_lea.vmem %s4, %s410
        %p412 = pneg %p169
        %p413 = pneg %p166
        %p414 = pneg %p190
        %p415 = pneg %p187
        %p416 = pneg %p211
        %p417 = pneg %p208
        %p418 = pneg %p232
        %p419 = pneg %p229
        %p420 = pneg %p253
        %p421 = pneg %p250
        %p422 = pneg %p279
        %p423 = pneg %p276
        %p424 = scmp.lt.s32.totalorder %s26, 0
        %s425 = scalar_select %p424, %s26, 0
        %s426 = smul.addr %s425, 2
        %s427 = smul.addr %s426, 8
        %s428 = scalar_lea.vmem %s9, %s427
        %p429 = scmp.lt.s32.totalorder %s27, 0
        %s430 = scalar_select %p429, %s27, 0
        %s431 = smul.addr %s430, 2
        %s432 = smul.addr %s431, 4
        %s433 = scalar_lea.vmem %s0, %s432
        %p434 = scmp.lt.s32.totalorder %s26, 0
        %s435 = scalar_select %p434, %s26, 0
        %s436 = smul.addr %s435, 2
        %s437 = smul.addr %s436, 8
        %s438 = scalar_lea.vmem %s1, %s437
        %p439 = scmp.lt.s32.totalorder %s26, 0
        %s440 = scalar_select %p439, %s26, 0
        %s441 = smul.addr %s440, 2
        %s442 = smul.addr %s441, 8
        %s443 = scalar_lea.vmem %s2, %s442
        %p444 = scmp.lt.s32.totalorder %s28, 3
        %s445 = scalar_select %p444, %s28, 3
        %s446 = smul.addr %s445, 2
        %s447 = scalar_lea.vmem %s3, %s446
        %p448 = scmp.lt.s32.totalorder %s28, 3
        %s449 = scalar_select %p448, %s28, 3
        %p450 = scmp.lt.s32.totalorder %s26, 0
        %s451 = scalar_select %p450, %s26, 0
        %p452 = scmp.lt.s32.totalorder %s27, 0
        %s453 = scalar_select %p452, %s27, 0
        %s454 = sadd.s32 %s453, %s451
        %s455 = sadd.s32 %s454, %s449
        %s456 = smul.addr %s455, 2
        %s457 = scalar_lea.vmem %s4, %s456
        %p458 = scmp.lt.s32.totalorder %s26, 0
        %s459 = scalar_select %p458, %s26, 0
        %s460 = smul.addr %s459, 2
        %s461 = smul.addr %s460, 8
        %s462 = scalar_lea.vmem %s9, %s461
        %p464 = scmp.eq.s32.totalorder %s27, 0
        %p465 = scmp.eq.s32.totalorder %s28, 0
        %p466 = pnand %p464, %p465
        %p467 = pneg %p466
        // Predicated region
        $region61: #{ultra_forward.5} parent=55 // pred_check
          _
        $region62: #{ultra_forward.5} parent=55 // pred_check_branch
          %469 = sbr.rel (%p466) target = $region64
        $region63: #{ultra_forward.5} parent=55 // pred_region
          %v470 = vld [vmem:[%s443] sm:$0xff]
          %v471 = vld [vmem:[%s443 + $0x8] sm:$0xff]
          %472 = vst [vmem:[#allocation2] sm:$0xff] %v470
          %473 = vst [vmem:[#allocation2 + $0x8] sm:$0xff] %v471
        $region64: #{ultra_forward.5} parent=55 // pred_fallthru
          _
        %v474 = vld [vmem:[%s433] sm:$0xff]
        %v475 = vld [vmem:[%s447] sm:$0x3]
        %v478 = vunpack.c.l.s4 1966171168
        %v479 = vunpack.c.0.s8 %v478
        %v480 = vlaneseq
        %v481 = vshrl.u32 %v480, 7
        %v482 = vsub.s32 %v479, %v481
        %v483 = vrot.slane %v475, %v482
        %v484 = vcombine.high %v483, %v483
        %v486 = vunpack.c.l.s4 1966171168
        %v487 = vunpack.c.0.s8 %v486
        %v488 = vlaneseq
        %v489 = vshrl.u32 %v488, 7
        %v490 = vsub.s32 %v487, %v489
        %v491 = vrot.slane %v483, %v490
        %v493 = vunpack.c.l.s4 1966171168
        %v494 = vunpack.c.0.s8 %v493
        %v495 = vlaneseq
        %v496 = vshrl.u32 %v495, 7
        %v497 = vsub.s32 %v494, %v496
        %v498 = vrot.slane %v484, %v497
        %v500 = vpack.i.b16 %v491, %v491
        %v502 = vlaneseq
        %v503 = vshrl.u32 %v502, 7
        %v504 = vsub.s32 0, %v503
        %v505 = vrot.slane %v500, %v504
        %v507 = vpack.i.b16 %v498, %v498
        %v509 = vlaneseq
        %v510 = vshrl.u32 %v509, 7
        %v511 = vsub.s32 0, %v510
        %v512 = vrot.slane %v507, %v511
        %v515 = vunpack.c.l.b16 %v505
        %v516 = vunpack.c.l.b16 %v512
        %v517 = vpack.c.b16 %v516, %v515
        %v519 = vmul.bf16 %v474, %v517
        %v520 = vld [vmem:[%s457] sm:$0x3]
        %v521 = vunpack.c.l.s8.bf16 %v520
        %v522 = vld [vmem:[#allocation2] sm:$0xff]
        %v523 = vld [vmem:[#allocation2 + $0x8] sm:$0xff]
        %v525 = vunpack.c.l.b16 %v519
        %v526 = vunpack.c.h.b16 %v519
        %v527 = vpack.c.b16 %v525, %v525
        %v528 = vpack.c.b16 %v526, %v526
        %vm529 = vcmask 64512
        %v531 = vsel %vm529, %v521, 0
        %vm533 = vcmask 1043456
        %v535 = vsel %vm533, %v527, 0
        %v538 = vsel %vm533, %v528, 0
        %540 = vmatprep.subr.bf16.mxu0 %v538
        %541 = vmatpush1.bf16.msra.mxu0 %v535
        %542 = vmatprep.subr.bf16.mxu0 0
        %543 = vmatpush1.bf16.msra.mxu0 0
        %544 = vmatprep.subr.bf16.mxu0 0
        %545 = vmatpush1.bf16.msra.mxu0 0
        %546 = vmatprep.subr.bf16.mxu0 0
        %547 = vmatpush1.bf16.msra.mxu0 0
        %548 = vmatprep.subr.bf16.mxu0 0
        %549 = vmatpush1.bf16.msra.mxu0 0
        %550 = vmatprep.subr.bf16.mxu0 0
        %551 = vmatpush1.bf16.msra.mxu0 0
        %552 = vmatprep.subr.bf16.mxu0 0
        %553 = vmatpush1.bf16.msra.mxu0 0
        %554 = vmatprep.subr.bf16.mxu0 0
        %555 = vmatpush1.bf16.msra.mxu0 0
        %556 = vmatprep.subr.bf16.mxu0 0
        %557 = vmatpush1.bf16.msra.mxu0 0
        %558 = vmatprep.subr.bf16.mxu0 0
        %559 = vmatpush1.bf16.msra.mxu0 0
        %560 = vmatprep.subr.bf16.mxu0 0
        %561 = vmatpush1.bf16.msra.mxu0 0
        %562 = vmatprep.subr.bf16.mxu0 0
        %563 = vmatpush1.bf16.msra.mxu0 0
        %564 = vmatprep.subr.bf16.mxu0 0
        %565 = vmatpush1.bf16.msra.mxu0 0
        %566 = vmatprep.subr.bf16.mxu0 0
        %567 = vmatpush1.bf16.msra.mxu0 0
        %568 = vmatprep.subr.bf16.mxu0 0
        %569 = vmatpush1.bf16.msra.mxu0 0
        %570 = vmatprep.subr.bf16.mxu0 0
        %571 = vmatpush1.bf16.msra.mxu0 0
        %572 = vmatprep.mubr.bf16.mxu0 0
        %573 = vmatmul.mubr.bf16.gmra.mrb[0].mxu0 %v531
        %v574 = vpop.f32.mrb[0].mxu0
        %v575 = vadd.f32 0.0, %v574
        %v576 = vpop.f32.mrb[0].mxu0
        %v577 = vadd.f32 0.0, %v576
        %v578 = vpop.f32.mrb[0].mxu0
        %v579 = vpop.f32.mrb[0].mxu0
        %580 = vdwg.mxu0
        %v581 = vadd.f32 %v522, %v575
        %v582 = vadd.f32 %v523, %v577
        %583 = vst [vmem:[#allocation2] sm:$0xff] %v581
        %584 = vst [vmem:[#allocation2 + $0x8] sm:$0xff] %v582
        %p585 = scmp.eq.s32.totalorder %s28, 3
        %p586 = pnand %p464, %p585
        %p587 = pneg %p586
        // Predicated region
        $region65: #{ultra_forward.5} parent=55 // pred_check
          _
        $region66: #{ultra_forward.5} parent=55 // pred_check_branch
          %589 = sbr.rel (%p586) target = $region68
        $region67: #{ultra_forward.5} parent=55 // pred_region
          %v590 = vld [vmem:[%s438] sm:$0xff]
          %v591 = vld [vmem:[%s438 + $0x8] sm:$0xff]
          %v592 = vld [vmem:[#allocation2] sm:$0xff]
          %v593 = vld [vmem:[#allocation2 + $0x8] sm:$0xff]
          %v594 = vld [vmem:[#allocation3] sm:$0xff]
          %v595 = vld [vmem:[#allocation3 + $0x8] sm:$0xff]
          %v596 = vld [vmem:[#allocation3 + $0x10] sm:$0xff]
          %v597 = vld [vmem:[#allocation3 + $0x18] sm:$0xff]
          %v598 = vld [vmem:[#allocation3 + $0x20] sm:$0xff]
          %v599 = vld [vmem:[#allocation3 + $0x28] sm:$0xff]
          %v600 = vld [vmem:[#allocation3 + $0x30] sm:$0xff]
          %v601 = vld [vmem:[#allocation3 + $0x38] sm:$0xff]
          %v602 = vld [vmem:[#allocation3 + $0x40] sm:$0xff]
          %v603 = vld [vmem:[#allocation3 + $0x48] sm:$0xff]
          %v604 = vld [vmem:[#allocation3 + $0x50] sm:$0xff]
          %v605 = vld [vmem:[#allocation3 + $0x58] sm:$0xff]
          %v606 = vld [vmem:[#allocation3 + $0x60] sm:$0xff]
          %v607 = vld [vmem:[#allocation3 + $0x68] sm:$0xff]
          %v608 = vld [vmem:[#allocation3 + $0x70] sm:$0xff]
          %v609 = vld [vmem:[#allocation3 + $0x78] sm:$0xff]
          %v610 = vld [vmem:[#allocation3 + $0x80] sm:$0xff]
          %v611 = vld [vmem:[#allocation3 + $0x88] sm:$0xff]
          %v612 = vld [vmem:[#allocation3 + $0x90] sm:$0xff]
          %v613 = vld [vmem:[#allocation3 + $0x98] sm:$0xff]
          %v614 = vld [vmem:[#allocation3 + $0xa0] sm:$0xff]
          %v615 = vld [vmem:[#allocation3 + $0xa8] sm:$0xff]
          %v616 = vld [vmem:[#allocation3 + $0xb0] sm:$0xff]
          %v617 = vld [vmem:[#allocation3 + $0xb8] sm:$0xff]
          %v618 = vld [vmem:[#allocation3 + $0xc0] sm:$0xff]
          %v619 = vld [vmem:[#allocation3 + $0xc8] sm:$0xff]
          %v620 = vld [vmem:[#allocation3 + $0xd0] sm:$0xff]
          %v621 = vld [vmem:[#allocation3 + $0xd8] sm:$0xff]
          %v622 = vld [vmem:[#allocation3 + $0xe0] sm:$0xff]
          %v623 = vld [vmem:[#allocation3 + $0xe8] sm:$0xff]
          %v624 = vld [vmem:[#allocation3 + $0xf0] sm:$0xff]
          %v625 = vld [vmem:[#allocation3 + $0xf8] sm:$0xff]
          %v626 = vld [vmem:[%s6] sm:$0x1]
          %v628 = vlaneseq
          %v629 = vshrl.u32 %v628, 7
          %v630 = vsub.s32 0, %v629
          %v631 = vrot.slane %v626, %v630
          %633 = vmatprep.subr.mxu0 0.0
          %634 = vmatpush1.msra.mxu0 %v594
          %635 = vmatprep.subr.mxu0 0.0
          %636 = vmatpush1.msra.mxu0 %v595
          %637 = vmatprep.subr.mxu0 0.0
          %638 = vmatpush1.msra.mxu0 %v596
          %639 = vmatprep.subr.mxu0 0.0
          %640 = vmatpush1.msra.mxu0 %v597
          %641 = vmatprep.subr.mxu0 0.0
          %642 = vmatpush1.msra.mxu0 %v598
          %643 = vmatprep.subr.mxu0 0.0
          %644 = vmatpush1.msra.mxu0 %v599
          %645 = vmatprep.subr.mxu0 0.0
          %646 = vmatpush1.msra.mxu0 %v600
          %647 = vmatprep.subr.mxu0 0.0
          %648 = vmatpush1.msra.mxu0 %v601
          %649 = vmatprep.subr.mxu0 0.0
          %650 = vmatpush1.msra.mxu0 %v602
          %651 = vmatprep.subr.mxu0 0.0
          %652 = vmatpush1.msra.mxu0 %v603
          %653 = vmatprep.subr.mxu0 0.0
          %654 = vmatpush1.msra.mxu0 %v604
          %655 = vmatprep.subr.mxu0 0.0
          %656 = vmatpush1.msra.mxu0 %v605
          %657 = vmatprep.subr.mxu0 0.0
          %658 = vmatpush1.msra.mxu0 %v606
          %659 = vmatprep.subr.mxu0 0.0
          %660 = vmatpush1.msra.mxu0 %v607
          %661 = vmatprep.subr.mxu0 0.0
          %662 = vmatpush1.msra.mxu0 %v608
          %663 = vmatprep.subr.mxu0 0.0
          %664 = vmatpush1.msra.mxu0 %v609
          %665 = vmatprep.subr.mxu0 0.0
          %666 = vmatpush1.msra.mxu0 %v610
          %667 = vmatprep.subr.mxu0 0.0
          %668 = vmatpush1.msra.mxu0 %v611
          %669 = vmatprep.subr.mxu0 0.0
          %670 = vmatpush1.msra.mxu0 %v612
          %671 = vmatprep.subr.mxu0 0.0
          %672 = vmatpush1.msra.mxu0 %v613
          %673 = vmatprep.subr.mxu0 0.0
          %674 = vmatpush1.msra.mxu0 %v614
          %675 = vmatprep.subr.mxu0 0.0
          %676 = vmatpush1.msra.mxu0 %v615
          %677 = vmatprep.subr.mxu0 0.0
          %678 = vmatpush1.msra.mxu0 %v616
          %679 = vmatprep.subr.mxu0 0.0
          %680 = vmatpush1.msra.mxu0 %v617
          %681 = vmatprep.subr.mxu0 0.0
          %682 = vmatpush1.msra.mxu0 %v618
          %683 = vmatprep.subr.mxu0 0.0
          %684 = vmatpush1.msra.mxu0 %v619
          %685 = vmatprep.subr.mxu0 0.0
          %686 = vmatpush1.msra.mxu0 %v620
          %687 = vmatprep.subr.mxu0 0.0
          %688 = vmatpush1.msra.mxu0 %v621
          %689 = vmatprep.subr.mxu0 0.0
          %690 = vmatpush1.msra.mxu0 %v622
          %691 = vmatprep.subr.mxu0 0.0
          %692 = vmatpush1.msra.mxu0 %v623
          %693 = vmatprep.subr.mxu0 0.0
          %694 = vmatpush1.msra.mxu0 %v624
          %695 = vmatprep.subr.mxu0 0.0
          %696 = vmatpush1.msra.mxu0 %v625
          %697 = vmatprep.mubr.f32.mxu0 %v592
          %698 = vmatmul.mubr.f32.gmra.mrb[0].mxu0 %v590
          %v699 = vpop.f32.mrb[0].mxu0
          %v700 = vadd.f32 %v631, %v699
          %v701 = vpop.f32.mrb[0].mxu0
          %702 = vdwg.mxu0
          %703 = vadd.xlane.f32.xlu0 %v700
          %v704 = vpop.xlane.xlu0 %703
          %v705 = vrcp.pop 128.0
          %v706 = vmul.f32 %v704, %v705
          %v707 = vsub.f32 %v700, %v706
          %v708 = vmul.f32 %v707, %v707
          %709 = vadd.xlane.f32.xlu0 %v708
          %v710 = vpop.xlane.xlu0 %709
          %v711 = vmul.f32 %v710, %v705
          %v712 = vadd.f32 %v711, 1e-05
          %v713 = vrsqrt.pop %v712
          %v714 = vmul.f32 %v707, %v713
          %v715 = vld [vmem:[%s7] sm:$0x1]
          %v717 = vlaneseq
          %v718 = vshrl.u32 %v717, 7
          %v719 = vsub.s32 0, %v718
          %v720 = vrot.slane %v715, %v719
          %v722 = vmul.f32 %v714, %v720
          %v723 = vld [vmem:[%s8] sm:$0x1]
          %v725 = vlaneseq
          %v726 = vshrl.u32 %v725, 7
          %v727 = vsub.s32 0, %v726
          %v728 = vrot.slane %v723, %v727
          %v730 = vadd.f32 %v722, %v728
          %v731 = vmax.f32 %v730, 0.0
          %v732 = vadd.f32 %v731, %v590
          %733 = vst [vmem:[%s462] sm:$0xff] %v732
          %v734 = vld [vmem:[#allocation3] sm:$0xff]
          %v735 = vld [vmem:[#allocation3 + $0x8] sm:$0xff]
          %v736 = vld [vmem:[#allocation3 + $0x10] sm:$0xff]
          %v737 = vld [vmem:[#allocation3 + $0x18] sm:$0xff]
          %v738 = vld [vmem:[#allocation3 + $0x20] sm:$0xff]
          %v739 = vld [vmem:[#allocation3 + $0x28] sm:$0xff]
          %v740 = vld [vmem:[#allocation3 + $0x30] sm:$0xff]
          %v741 = vld [vmem:[#allocation3 + $0x38] sm:$0xff]
          %v742 = vld [vmem:[#allocation3 + $0x40] sm:$0xff]
          %v743 = vld [vmem:[#allocation3 + $0x48] sm:$0xff]
          %v744 = vld [vmem:[#allocation3 + $0x50] sm:$0xff]
          %v745 = vld [vmem:[#allocation3 + $0x58] sm:$0xff]
          %v746 = vld [vmem:[#allocation3 + $0x60] sm:$0xff]
          %v747 = vld [vmem:[#allocation3 + $0x68] sm:$0xff]
          %v748 = vld [vmem:[#allocation3 + $0x70] sm:$0xff]
          %v749 = vld [vmem:[#allocation3 + $0x78] sm:$0xff]
          %v750 = vld [vmem:[#allocation3 + $0x80] sm:$0xff]
          %v751 = vld [vmem:[#allocation3 + $0x88] sm:$0xff]
          %v752 = vld [vmem:[#allocation3 + $0x90] sm:$0xff]
          %v753 = vld [vmem:[#allocation3 + $0x98] sm:$0xff]
          %v754 = vld [vmem:[#allocation3 + $0xa0] sm:$0xff]
          %v755 = vld [vmem:[#allocation3 + $0xa8] sm:$0xff]
          %v756 = vld [vmem:[#allocation3 + $0xb0] sm:$0xff]
          %v757 = vld [vmem:[#allocation3 + $0xb8] sm:$0xff]
          %v758 = vld [vmem:[#allocation3 + $0xc0] sm:$0xff]
          %v759 = vld [vmem:[#allocation3 + $0xc8] sm:$0xff]
          %v760 = vld [vmem:[#allocation3 + $0xd0] sm:$0xff]
          %v761 = vld [vmem:[#allocation3 + $0xd8] sm:$0xff]
          %v762 = vld [vmem:[#allocation3 + $0xe0] sm:$0xff]
          %v763 = vld [vmem:[#allocation3 + $0xe8] sm:$0xff]
          %v764 = vld [vmem:[#allocation3 + $0xf0] sm:$0xff]
          %v765 = vld [vmem:[#allocation3 + $0xf8] sm:$0xff]
          %v766 = vld [vmem:[%s6] sm:$0x1]
          %v768 = vlaneseq
          %v769 = vshrl.u32 %v768, 7
          %v770 = vsub.s32 0, %v769
          %v771 = vrot.slane %v766, %v770
          %773 = vmatprep.subr.mxu0 0.0
          %774 = vmatpush1.msra.mxu0 %v734
          %775 = vmatprep.subr.mxu0 0.0
          %776 = vmatpush1.msra.mxu0 %v735
          %777 = vmatprep.subr.mxu0 0.0
          %778 = vmatpush1.msra.mxu0 %v736
          %779 = vmatprep.subr.mxu0 0.0
          %780 = vmatpush1.msra.mxu0 %v737
          %781 = vmatprep.subr.mxu0 0.0
          %782 = vmatpush1.msra.mxu0 %v738
          %783 = vmatprep.subr.mxu0 0.0
          %784 = vmatpush1.msra.mxu0 %v739
          %785 = vmatprep.subr.mxu0 0.0
          %786 = vmatpush1.msra.mxu0 %v740
          %787 = vmatprep.subr.mxu0 0.0
          %788 = vmatpush1.msra.mxu0 %v741
          %789 = vmatprep.subr.mxu0 0.0
          %790 = vmatpush1.msra.mxu0 %v742
          %791 = vmatprep.subr.mxu0 0.0
          %792 = vmatpush1.msra.mxu0 %v743
          %793 = vmatprep.subr.mxu0 0.0
          %794 = vmatpush1.msra.mxu0 %v744
          %795 = vmatprep.subr.mxu0 0.0
          %796 = vmatpush1.msra.mxu0 %v745
          %797 = vmatprep.subr.mxu0 0.0
          %798 = vmatpush1.msra.mxu0 %v746
          %799 = vmatprep.subr.mxu0 0.0
          %800 = vmatpush1.msra.mxu0 %v747
          %801 = vmatprep.subr.mxu0 0.0
          %802 = vmatpush1.msra.mxu0 %v748
          %803 = vmatprep.subr.mxu0 0.0
          %804 = vmatpush1.msra.mxu0 %v749
          %805 = vmatprep.subr.mxu0 0.0
          %806 = vmatpush1.msra.mxu0 %v750
          %807 = vmatprep.subr.mxu0 0.0
          %808 = vmatpush1.msra.mxu0 %v751
          %809 = vmatprep.subr.mxu0 0.0
          %810 = vmatpush1.msra.mxu0 %v752
          %811 = vmatprep.subr.mxu0 0.0
          %812 = vmatpush1.msra.mxu0 %v753
          %813 = vmatprep.subr.mxu0 0.0
          %814 = vmatpush1.msra.mxu0 %v754
          %815 = vmatprep.subr.mxu0 0.0
          %816 = vmatpush1.msra.mxu0 %v755
          %817 = vmatprep.subr.mxu0 0.0
          %818 = vmatpush1.msra.mxu0 %v756
          %819 = vmatprep.subr.mxu0 0.0
          %820 = vmatpush1.msra.mxu0 %v757
          %821 = vmatprep.subr.mxu0 0.0
          %822 = vmatpush1.msra.mxu0 %v758
          %823 = vmatprep.subr.mxu0 0.0
          %824 = vmatpush1.msra.mxu0 %v759
          %825 = vmatprep.subr.mxu0 0.0
          %826 = vmatpush1.msra.mxu0 %v760
          %827 = vmatprep.subr.mxu0 0.0
          %828 = vmatpush1.msra.mxu0 %v761
          %829 = vmatprep.subr.mxu0 0.0
          %830 = vmatpush1.msra.mxu0 %v762
          %831 = vmatprep.subr.mxu0 0.0
          %832 = vmatpush1.msra.mxu0 %v763
          %833 = vmatprep.subr.mxu0 0.0
          %834 = vmatpush1.msra.mxu0 %v764
          %835 = vmatprep.subr.mxu0 0.0
          %836 = vmatpush1.msra.mxu0 %v765
          %837 = vmatprep.mubr.f32.mxu0 %v593
          %838 = vmatmul.mubr.f32.gmra.mrb[0].mxu0 %v591
          %v839 = vpop.f32.mrb[0].mxu0
          %v840 = vadd.f32 %v771, %v839
          %v841 = vpop.f32.mrb[0].mxu0
          %842 = vdwg.mxu0
          %843 = vadd.xlane.f32.xlu0 %v840
          %v844 = vpop.xlane.xlu0 %843
          %v845 = vmul.f32 %v844, %v705
          %v846 = vsub.f32 %v840, %v845
          %v847 = vmul.f32 %v846, %v846
          %848 = vadd.xlane.f32.xlu0 %v847
          %v849 = vpop.xlane.xlu0 %848
          %v850 = vmul.f32 %v849, %v705
          %v851 = vadd.f32 %v850, 1e-05
          %v852 = vrsqrt.pop %v851
          %v853 = vmul.f32 %v846, %v852
          %v854 = vld [vmem:[%s7] sm:$0x1]
          %v856 = vlaneseq
          %v857 = vshrl.u32 %v856, 7
          %v858 = vsub.s32 0, %v857
          %v859 = vrot.slane %v854, %v858
          %v861 = vmul.f32 %v853, %v859
          %v862 = vld [vmem:[%s8] sm:$0x1]
          %v864 = vlaneseq
          %v865 = vshrl.u32 %v864, 7
          %v866 = vsub.s32 0, %v865
          %v867 = vrot.slane %v862, %v866
          %v869 = vadd.f32 %v861, %v867
          %v870 = vmax.f32 %v869, 0.0
          %v871 = vadd.f32 %v870, %v591
          %872 = vst [vmem:[%s462 + $0x8] sm:$0xff] %v871
        $region68: #{ultra_forward.5} parent=55 // pred_fallthru
          _
        %p873 = scmp.lt.s32.totalorder %s26, 0
        %s874 = scalar_select %p873, %s26, 0
        %s875 = smul.addr %s874, 2
        %s876 = smul.addr %s875, 8
        %s877 = scalar_lea.vmem %s9, %s876
        // Predicated region
        $region69: #{ultra_forward.5} parent=55 // pred_check
          %p878 = pneg %p276
        $region70: #{ultra_forward.5} parent=55 // pred_check_branch
          %880 = sbr.rel (%p878) target = $region72
        $region71: #{ultra_forward.5} parent=55 // pred_region
          _
        $region72: #{ultra_forward.5} parent=55 // pred_fallthru
          _
        // Predicated region
        $region73: #{ultra_forward.5} parent=55 // pred_check
          %p881 = pneg %p276
        $region74: #{ultra_forward.5} parent=55 // pred_check_branch
          %883 = sbr.rel (%p881) target = $region76
        $region75: #{ultra_forward.5} parent=55 // pred_region
          %p884 = scmp.lt.s32.totalorder %s26, 0
          %s885 = scalar_select %p884, %s26, 0
          %s886 = smul.addr %s885, 2
          %s887 = smul.addr %s886, 8
          %s888 = scalar_lea.vmem %s9, %s887
        $region76: #{ultra_forward.5} parent=55 // pred_fallthru
          _
      $region56: #{ultra_forward.5} parent=5 // pred_fallthru
        _
      %p889 = scmp.le.s32.totalorder 2, %s16
      // Predicated region
      $region77: #{ultra_forward.5} parent=5 // pred_check
        %p890 = pneg %p889
      $region78: #{ultra_forward.5} parent=5 // pred_check_branch
        %892 = sbr.rel (%p890) target = $region80
      $region79: #{ultra_forward.5} parent=5 // pred_region
        %s893 = ssub.s32 %s16, 2
      $region80: #{ultra_forward.5} parent=5 // pred_fallthru
        _
    $region6: #{ultra_forward.5} parent=1 // loop_footer
      %s20 = sadd.s32 1, %s16
    $region7: #{ultra_forward.5} parent=1 // loop_footer_branch
      %15 = sbr.rel target = $region3
    $region8: #{ultra_forward.5} parent=1 // loop_exit
      _
    %894 = vsyncpa [#allocation4], 1
    %s895 = scalar_lea.sflag [#allocation4], 1
    %896 = vsyncpa %s895, 1

// kernel: ultra_forward.7
$region0: #{ultra_forward.7}
  #allocation0 [shape = 'u32[]', space=smem, size = 0x4, offset = 0x4, fixed_abs, tag = 'smem constant byte address 0x4 - core index']
  #allocation1 [shape = 'u32[144,128]{1,0:T(1,128)}', space=vmem, size = 0x12000, scoped, tag = 'internal scratch']
  #allocation2 [shape = 'f32[16,256]{1,0:T(8,128)}', space=vmem, size = 0x4000, scoped, tag = 'scratch operand']
  %s0 = inlined_call_operand.vmem [shape: bf16[16,256], index: 0, kind: input, shape index: {}]
  %s1 = inlined_call_operand.vmem [shape: f32[16,256], index: 1, kind: input, shape index: {}, may-alias: {1,2}]
  %s2 = inlined_call_operand.vmem [shape: f32[16,256], index: 2, kind: input, shape index: {}, may-alias: {1,2}]
  %s3 = inlined_call_operand.vmem [shape: bf16[8,1,256], index: 3, kind: input, shape index: {}]
  %s4 = inlined_call_operand.vmem [shape: s8[8,16,16], index: 4, kind: input, shape index: {}]
  %s5 = inlined_call_operand.vmem [shape: f32[256,128], index: 5, kind: input, shape index: {}]
  %s6 = inlined_call_operand.vmem [shape: f32[1,128], index: 6, kind: input, shape index: {}]
  %s7 = inlined_call_operand.vmem [shape: f32[1,128], index: 7, kind: input, shape index: {}]
  %s8 = inlined_call_operand.vmem [shape: f32[1,128], index: 8, kind: input, shape index: {}]
  %s9 = inlined_call_operand.vmem [shape: f32[16,256], index: 9, kind: output, shape index: {}]
  %s10 = sld [smem:[#allocation0]]
  $region77: #{ultra_forward.7} parent=0
    _
  %s12 = ssub.s32 1, %s10
  %s13 = scalar_select 0, %s12, %s10
  loop: start=0, step=1, limit=10
  $region2: #{ultra_forward.7} parent=0 // loop_pre_header
    _
  $region3: #{ultra_forward.7} parent=0 // loop_header
    %s15 = sphi 0, %s19
    %p16 = scmp.ge.s32.totalorder %s15, 10
    %s22 = sphi 0, %s41
    %s23 = sphi 0, %s37
    %s24 = sphi 0, %s33
    %s25 = sphi 0, %s22
    %s26 = sphi 0, %s23
    %s27 = sphi 0, %s24
    %s28 = sphi 0, %s25
    %s29 = sphi 0, %s26
    %s30 = sphi 0, %s27
    %s44 = sphi 0, %s46
    %s47 = sphi 0, %s44
    %s48 = sphi 0, %s47
    %s64 = sphi 0, %s48
    %s70 = sphi 0, %s72
    %s73 = sphi 0, %s70
    %s74 = sphi 0, %s73
    %s90 = sphi 0, %s74
    %s96 = sphi 0, %s98
    %s99 = sphi 0, %s96
    %s100 = sphi 0, %s99
    %s116 = sphi 0, %s100
    %s122 = sphi 0, %s124
    %s125 = sphi 0, %s122
    %s126 = sphi 0, %s125
    %s142 = sphi 0, %s126
    %s152 = sphi 0, %s154
    %s155 = sphi 0, %s152
    %s156 = sphi 0, %s155
    %s172 = sphi 0, %s156
    %s176 = sphi 0, %s176
    %s178 = sphi 0, %s176
    %s179 = sphi 0, %s178
    %s193 = sphi 0, %s179
    %s197 = sphi 0, %s197
    %s199 = sphi 0, %s197
    %s200 = sphi 0, %s199
    %s214 = sphi 0, %s200
    %s218 = sphi 0, %s218
    %s220 = sphi 0, %s218
    %s221 = sphi 0, %s220
    %s235 = sphi 0, %s221
    %s239 = sphi 0, %s239
    %s241 = sphi 0, %s239
    %s242 = sphi 0, %s241
    %s256 = sphi 0, %s242
    %s262 = sphi 0, %s264
    %s265 = sphi 0, %s262
    %s266 = sphi 0, %s265
    %s282 = sphi 0, %s266
  $region4: #{ultra_forward.7} parent=0 // loop_header_branch
    %18 = sbr.rel (%p16) target = $region8
  $region5: #{ultra_forward.7} parent=0 // loop_body
    %s20 = ssub.s32 %s15, 1
    %s21 = ssub.s32 %s15, 2
    %s31 = sadd.s32 1, %s24
    %p32 = scmp.ge.s32.totalorder %s31, 8
    %s33 = scalar_select %p32, 0, %s31
    %s34 = sadd.s32 1, %s23
    %s35 = scalar_select %p32, %s34, %s23
    %p36 = scmp.ge.s32.totalorder %s35, 1
    %s37 = scalar_select %p36, 0, %s35
    %s38 = sadd.s32 1, %s22
    %s39 = scalar_select %p36, %s38, %s22
    %p40 = scmp.ge.s32.totalorder %s39, 1
    %s41 = scalar_select %p40, 0, %s39
    %s42 = ssub.s32 %s23, %s37
    %p43 = scmp.eq.s32.totalorder %s42, 0
    %s45 = sadd.s32 %s44, 1
    %s46 = scalar_select %p43, %s44, %s45
    %p49 = pneg %p43
    %p50 = scmp.eq.s32.totalorder %s15, 7
    %p51 = por %p49, %p50
    %p52 = scmp.ne.s32.totalorder %s44, %s47
    %p53 = scmp.eq.s32.totalorder %s15, 0
    %p54 = por %p52, %p53
    %p55 = scmp.ne.s32.totalorder %s44, %s47
    %p56 = scmp.eq.s32.totalorder %s20, 7
    %p57 = por %p55, %p56
    %p58 = scmp.ne.s32.totalorder %s47, %s48
    %p59 = scmp.eq.s32.totalorder %s20, 0
    %p60 = por %p58, %p59
    %p61 = scmp.ne.s32.totalorder %s47, %s48
    %p62 = scmp.eq.s32.totalorder %s21, 7
    %p63 = por %p61, %p62
    %p65 = scmp.ne.s32.totalorder %s48, %s64
    %p66 = scmp.eq.s32.totalorder %s21, 0
    %p67 = por %p65, %p66
    %s68 = ssub.s32 %s22, %s41
    %p69 = scmp.eq.s32.totalorder %s68, 0
    %s71 = sadd.s32 %s70, 1
    %s72 = scalar_select %p69, %s70, %s71
    %p75 = pneg %p69
    %p76 = scmp.eq.s32.totalorder %s15, 7
    %p77 = por %p75, %p76
    %p78 = scmp.ne.s32.totalorder %s70, %s73
    %p79 = scmp.eq.s32.totalorder %s15, 0
    %p80 = por %p78, %p79
    %p81 = scmp.ne.s32.totalorder %s70, %s73
    %p82 = scmp.eq.s32.totalorder %s20, 7
    %p83 = por %p81, %p82
    %p84 = scmp.ne.s32.totalorder %s73, %s74
    %p85 = scmp.eq.s32.totalorder %s20, 0
    %p86 = por %p84, %p85
    %p87 = scmp.ne.s32.totalorder %s73, %s74
    %p88 = scmp.eq.s32.totalorder %s21, 7
    %p89 = por %p87, %p88
    %p91 = scmp.ne.s32.totalorder %s74, %s90
    %p92 = scmp.eq.s32.totalorder %s21, 0
    %p93 = por %p91, %p92
    %s94 = ssub.s32 %s22, %s41
    %p95 = scmp.eq.s32.totalorder %s94, 0
    %s97 = sadd.s32 %s96, 1
    %s98 = scalar_select %p95, %s96, %s97
    %p101 = pneg %p95
    %p102 = scmp.eq.s32.totalorder %s15, 7
    %p103 = por %p101, %p102
    %p104 = scmp.ne.s32.totalorder %s96, %s99
    %p105 = scmp.eq.s32.totalorder %s15, 0
    %p106 = por %p104, %p105
    %p107 = scmp.ne.s32.totalorder %s96, %s99
    %p108 = scmp.eq.s32.totalorder %s20, 7
    %p109 = por %p107, %p108
    %p110 = scmp.ne.s32.totalorder %s99, %s100
    %p111 = scmp.eq.s32.totalorder %s20, 0
    %p112 = por %p110, %p111
    %p113 = scmp.ne.s32.totalorder %s99, %s100
    %p114 = scmp.eq.s32.totalorder %s21, 7
    %p115 = por %p113, %p114
    %p117 = scmp.ne.s32.totalorder %s100, %s116
    %p118 = scmp.eq.s32.totalorder %s21, 0
    %p119 = por %p117, %p118
    %s120 = ssub.s32 %s24, %s33
    %p121 = scmp.eq.s32.totalorder %s120, 0
    %s123 = sadd.s32 %s122, 1
    %s124 = scalar_select %p121, %s122, %s123
    %p127 = pneg %p121
    %p128 = scmp.eq.s32.totalorder %s15, 7
    %p129 = por %p127, %p128
    %p130 = scmp.ne.s32.totalorder %s122, %s125
    %p131 = scmp.eq.s32.totalorder %s15, 0
    %p132 = por %p130, %p131
    %p133 = scmp.ne.s32.totalorder %s122, %s125
    %p134 = scmp.eq.s32.totalorder %s20, 7
    %p135 = por %p133, %p134
    %p136 = scmp.ne.s32.totalorder %s125, %s126
    %p137 = scmp.eq.s32.totalorder %s20, 0
    %p138 = por %p136, %p137
    %p139 = scmp.ne.s32.totalorder %s125, %s126
    %p140 = scmp.eq.s32.totalorder %s21, 7
    %p141 = por %p139, %p140
    %p143 = scmp.ne.s32.totalorder %s126, %s142
    %p144 = scmp.eq.s32.totalorder %s21, 0
    %p145 = por %p143, %p144
    %s146 = ssub.s32 %s24, %s33
    %s147 = ssub.s32 %s22, %s41
    %s148 = sor.u32 %s146, %s147
    %s149 = ssub.s32 %s23, %s37
    %s150 = sor.u32 %s148, %s149
    %p151 = scmp.eq.s32.totalorder %s150, 0
    %s153 = sadd.s32 %s152, 1
    %s154 = scalar_select %p151, %s152, %s153
    %p157 = pneg %p151
    %p158 = scmp.eq.s32.totalorder %s15, 7
    %p159 = por %p157, %p158
    %p160 = scmp.ne.s32.totalorder %s152, %s155
    %p161 = scmp.eq.s32.totalorder %s15, 0
    %p162 = por %p160, %p161
    %p163 = scmp.ne.s32.totalorder %s152, %s155
    %p164 = scmp.eq.s32.totalorder %s20, 7
    %p165 = por %p163, %p164
    %p166 = scmp.ne.s32.totalorder %s155, %s156
    %p167 = scmp.eq.s32.totalorder %s20, 0
    %p168 = por %p166, %p167
    %p169 = scmp.ne.s32.totalorder %s155, %s156
    %p170 = scmp.eq.s32.totalorder %s21, 7
    %p171 = por %p169, %p170
    %p173 = scmp.ne.s32.totalorder %s156, %s172
    %p174 = scmp.eq.s32.totalorder %s21, 0
    %p175 = por %p173, %p174
    %s177 = sadd.s32 %s176, 1
    %p180 = scmp.eq.s32.totalorder %s15, 7
    %p181 = scmp.ne.s32.totalorder %s176, %s178
    %p182 = scmp.eq.s32.totalorder %s15, 0
    %p183 = por %p181, %p182
    %p184 = scmp.ne.s32.totalorder %s176, %s178
    %p185 = scmp.eq.s32.totalorder %s20, 7
    %p186 = por %p184, %p185
    %p187 = scmp.ne.s32.totalorder %s178, %s179
    %p188 = scmp.eq.s32.totalorder %s20, 0
    %p189 = por %p187, %p188
    %p190 = scmp.ne.s32.totalorder %s178, %s179
    %p191 = scmp.eq.s32.totalorder %s21, 7
    %p192 = por %p190, %p191
    %p194 = scmp.ne.s32.totalorder %s179, %s193
    %p195 = scmp.eq.s32.totalorder %s21, 0
    %p196 = por %p194, %p195
    %s198 = sadd.s32 %s197, 1
    %p201 = scmp.eq.s32.totalorder %s15, 7
    %p202 = scmp.ne.s32.totalorder %s197, %s199
    %p203 = scmp.eq.s32.totalorder %s15, 0
    %p204 = por %p202, %p203
    %p205 = scmp.ne.s32.totalorder %s197, %s199
    %p206 = scmp.eq.s32.totalorder %s20, 7
    %p207 = por %p205, %p206
    %p208 = scmp.ne.s32.totalorder %s199, %s200
    %p209 = scmp.eq.s32.totalorder %s20, 0
    %p210 = por %p208, %p209
    %p211 = scmp.ne.s32.totalorder %s199, %s200
    %p212 = scmp.eq.s32.totalorder %s21, 7
    %p213 = por %p211, %p212
    %p215 = scmp.ne.s32.totalorder %s200, %s214
    %p216 = scmp.eq.s32.totalorder %s21, 0
    %p217 = por %p215, %p216
    %s219 = sadd.s32 %s218, 1
    %p222 = scmp.eq.s32.totalorder %s15, 7
    %p223 = scmp.ne.s32.totalorder %s218, %s220
    %p224 = scmp.eq.s32.totalorder %s15, 0
    %p225 = por %p223, %p224
    %p226 = scmp.ne.s32.totalorder %s218, %s220
    %p227 = scmp.eq.s32.totalorder %s20, 7
    %p228 = por %p226, %p227
    %p229 = scmp.ne.s32.totalorder %s220, %s221
    %p230 = scmp.eq.s32.totalorder %s20, 0
    %p231 = por %p229, %p230
    %p232 = scmp.ne.s32.totalorder %s220, %s221
    %p233 = scmp.eq.s32.totalorder %s21, 7
    %p234 = por %p232, %p233
    %p236 = scmp.ne.s32.totalorder %s221, %s235
    %p237 = scmp.eq.s32.totalorder %s21, 0
    %p238 = por %p236, %p237
    %s240 = sadd.s32 %s239, 1
    %p243 = scmp.eq.s32.totalorder %s15, 7
    %p244 = scmp.ne.s32.totalorder %s239, %s241
    %p245 = scmp.eq.s32.totalorder %s15, 0
    %p246 = por %p244, %p245
    %p247 = scmp.ne.s32.totalorder %s239, %s241
    %p248 = scmp.eq.s32.totalorder %s20, 7
    %p249 = por %p247, %p248
    %p250 = scmp.ne.s32.totalorder %s241, %s242
    %p251 = scmp.eq.s32.totalorder %s20, 0
    %p252 = por %p250, %p251
    %p253 = scmp.ne.s32.totalorder %s241, %s242
    %p254 = scmp.eq.s32.totalorder %s21, 7
    %p255 = por %p253, %p254
    %p257 = scmp.ne.s32.totalorder %s242, %s256
    %p258 = scmp.eq.s32.totalorder %s21, 0
    %p259 = por %p257, %p258
    %s260 = ssub.s32 %s22, %s41
    %p261 = scmp.eq.s32.totalorder %s260, 0
    %s263 = sadd.s32 %s262, 1
    %s264 = scalar_select %p261, %s262, %s263
    %p267 = pneg %p261
    %p268 = scmp.eq.s32.totalorder %s15, 7
    %p269 = por %p267, %p268
    %p270 = scmp.ne.s32.totalorder %s262, %s265
    %p271 = scmp.eq.s32.totalorder %s15, 0
    %p272 = por %p270, %p271
    %p273 = scmp.ne.s32.totalorder %s262, %s265
    %p274 = scmp.eq.s32.totalorder %s20, 7
    %p275 = por %p273, %p274
    %p276 = scmp.ne.s32.totalorder %s265, %s266
    %p277 = scmp.eq.s32.totalorder %s20, 0
    %p278 = por %p276, %p277
    %p279 = scmp.ne.s32.totalorder %s265, %s266
    %p280 = scmp.eq.s32.totalorder %s21, 7
    %p281 = por %p279, %p280
    %p283 = scmp.ne.s32.totalorder %s266, %s282
    %p284 = scmp.eq.s32.totalorder %s21, 0
    %p285 = por %p283, %p284
    %p286 = scmp.le.s32.totalorder 1, %s15
    %p287 = scmp.lt.s32.totalorder %s15, 9
    %p288 = pnand %p286, %p287
    %p289 = pneg %p288
    // Predicated region
    $region9: #{ultra_forward.7} parent=5 // pred_check
      _
    $region10: #{ultra_forward.7} parent=5 // pred_check_branch
      %291 = sbr.rel (%p288) target = $region12
    $region11: #{ultra_forward.7} parent=5 // pred_region
      %s292 = ssub.s32 %s15, 1
      // Predicated region
      $region13: #{ultra_forward.7} parent=11 // pred_check
        %p293 = pneg %p60
      $region14: #{ultra_forward.7} parent=11 // pred_check_branch
        %295 = sbr.rel (%p293) target = $region16
      $region15: #{ultra_forward.7} parent=11 // pred_region
        %s296 = smul.u32 2, %s26
        %p297 = scmp.lt.s32.totalorder %s296, 1
        %s298 = scalar_select %p297, %s296, 1
        %s299 = smul.addr %s298, 2
        %s300 = smul.addr %s299, 4
        %s301 = scalar_lea.vmem %s0, %s300
        %s302 = smul.u32 2, %s26
      $region16: #{ultra_forward.7} parent=11 // pred_fallthru
        _
      // Predicated region
      $region17: #{ultra_forward.7} parent=11 // pred_check
        %p303 = pneg %p86
      $region18: #{ultra_forward.7} parent=11 // pred_check_branch
        %305 = sbr.rel (%p303) target = $region20
      $region19: #{ultra_forward.7} parent=11 // pred_region
        %s306 = smul.u32 2, %s25
        %p307 = scmp.lt.s32.totalorder %s306, 1
        %s308 = scalar_select %p307, %s306, 1
        %s309 = smul.addr %s308, 2
        %s310 = smul.addr %s309, 8
        %s311 = scalar_lea.vmem %s1, %s310
        %s312 = smul.u32 2, %s25
      $region20: #{ultra_forward.7} parent=11 // pred_fallthru
        _
      // Predicated region
      $region21: #{ultra_forward.7} parent=11 // pred_check
        %p313 = pneg %p112
      $region22: #{ultra_forward.7} parent=11 // pred_check_branch
        %315 = sbr.rel (%p313) target = $region24
      $region23: #{ultra_forward.7} parent=11 // pred_region
        %s316 = smul.u32 2, %s25
        %p317 = scmp.lt.s32.totalorder %s316, 1
        %s318 = scalar_select %p317, %s316, 1
        %s319 = smul.addr %s318, 2
        %s320 = smul.addr %s319, 8
        %s321 = scalar_lea.vmem %s2, %s320
        %s322 = smul.u32 2, %s25
      $region24: #{ultra_forward.7} parent=11 // pred_fallthru
        _
      // Predicated region
      $region25: #{ultra_forward.7} parent=11 // pred_check
        %p323 = pneg %p189
      $region26: #{ultra_forward.7} parent=11 // pred_check_branch
        %325 = sbr.rel (%p323) target = $region28
      $region27: #{ultra_forward.7} parent=11 // pred_region
        _
      $region28: #{ultra_forward.7} parent=11 // pred_fallthru
        _
      // Predicated region
      $region29: #{ultra_forward.7} parent=11 // pred_check
        %p326 = pneg %p210
      $region30: #{ultra_forward.7} parent=11 // pred_check_branch
        %328 = sbr.rel (%p326) target = $region32
      $region31: #{ultra_forward.7} parent=11 // pred_region
        _
      $region32: #{ultra_forward.7} parent=11 // pred_fallthru
        _
      // Predicated region
      $region33: #{ultra_forward.7} parent=11 // pred_check
        %p329 = pneg %p231
      $region34: #{ultra_forward.7} parent=11 // pred_check_branch
        %331 = sbr.rel (%p329) target = $region36
      $region35: #{ultra_forward.7} parent=11 // pred_region
        _
      $region36: #{ultra_forward.7} parent=11 // pred_fallthru
        _
      // Predicated region
      $region37: #{ultra_forward.7} parent=11 // pred_check
        %p332 = pneg %p252
      $region38: #{ultra_forward.7} parent=11 // pred_check_branch
        %334 = sbr.rel (%p332) target = $region40
      $region39: #{ultra_forward.7} parent=11 // pred_region
        _
      $region40: #{ultra_forward.7} parent=11 // pred_fallthru
        _
    $region12: #{ultra_forward.7} parent=5 // pred_fallthru
      _
    %p335 = scmp.lt.s32.totalorder %s15, 8
    // Predicated region
    $region41: #{ultra_forward.7} parent=5 // pred_check
      %p336 = pneg %p335
    $region42: #{ultra_forward.7} parent=5 // pred_check_branch
      %338 = sbr.rel (%p336) target = $region44
    $region43: #{ultra_forward.7} parent=5 // pred_region
      // Predicated region
      $region45: #{ultra_forward.7} parent=43 // pred_check
        %p339 = pneg %p132
      $region46: #{ultra_forward.7} parent=43 // pred_check_branch
        %341 = sbr.rel (%p339) target = $region48
      $region47: #{ultra_forward.7} parent=43 // pred_region
        %p342 = scmp.lt.s32.totalorder %s24, 7
        %s343 = scalar_select %p342, %s24, 7
        %s344 = smul.addr %s343, 2
        %s345 = scalar_lea.vmem %s3, %s344
      $region48: #{ultra_forward.7} parent=43 // pred_fallthru
        _
      // Predicated region
      $region49: #{ultra_forward.7} parent=43 // pred_check
        %p346 = pneg %p162
      $region50: #{ultra_forward.7} parent=43 // pred_check_branch
        %348 = sbr.rel (%p346) target = $region52
      $region51: #{ultra_forward.7} parent=43 // pred_region
        %s349 = smul.u32 2, %s22
        %p350 = scmp.lt.s32.totalorder %s24, 7
        %s351 = scalar_select %p350, %s24, 7
        %p352 = scmp.lt.s32.totalorder %s349, 1
        %s353 = scalar_select %p352, %s349, 1
        %p354 = scmp.lt.s32.totalorder %s23, 0
        %s355 = scalar_select %p354, %s23, 0
        %s356 = sadd.s32 %s355, %s353
        %s357 = smul.addr %s351, 2
        %s358 = sadd.s32 %s356, %s357
        %s359 = smul.addr %s358, 2
        %s360 = scalar_lea.vmem %s4, %s359
        %s361 = smul.u32 2, %s22
      $region52: #{ultra_forward.7} parent=43 // pred_fallthru
        _
    $region44: #{ultra_forward.7} parent=5 // pred_fallthru
      _
    %p362 = scmp.le.s32.totalorder 1, %s15
    %p363 = scmp.lt.s32.totalorder %s15, 9
    %p364 = pnand %p362, %p363
    %p365 = pneg %p364
    // Predicated region
    $region53: #{ultra_forward.7} parent=5 // pred_check
      _
    $region54: #{ultra_forward.7} parent=5 // pred_check_branch
      %367 = sbr.rel (%p364) target = $region56
    $region55: #{ultra_forward.7} parent=5 // pred_region
      %s368 = ssub.s32 %s15, 1
      %s369 = smul.u32 2, %s26
      %p370 = scmp.lt.s32.totalorder %s369, 1
      %s371 = scalar_select %p370, %s369, 1
      %s372 = smul.addr %s371, 2
      %s373 = smul.addr %s372, 4
      %s374 = scalar_lea.vmem %s0, %s373
      %p375 = pneg %p60
      %p376 = pneg %p57
      %s377 = smul.u32 2, %s25
      %p378 = scmp.lt.s32.totalorder %s377, 1
      %s379 = scalar_select %p378, %s377, 1
      %s380 = smul.addr %s379, 2
      %s381 = smul.addr %s380, 8
      %s382 = scalar_lea.vmem %s1, %s381
      %p383 = pneg %p86
      %p384 = pneg %p83
      %s385 = smul.u32 2, %s25
      %p386 = scmp.lt.s32.totalorder %s385, 1
      %s387 = scalar_select %p386, %s385, 1
      %s388 = smul.addr %s387, 2
      %s389 = smul.addr %s388, 8
      %s390 = scalar_lea.vmem %s2, %s389
      %p391 = pneg %p112
      %p392 = pneg %p109
      %p393 = scmp.lt.s32.totalorder %s27, 7
      %s394 = scalar_select %p393, %s27, 7
      %s395 = smul.addr %s394, 2
      %s396 = scalar_lea.vmem %s3, %s395
      %p397 = pneg %p138
      %p398 = pneg %p135
      %s399 = smul.u32 2, %s25
      %p400 = scmp.lt.s32.totalorder %s27, 7
      %s401 = scalar_select %p400, %s27, 7
      %p402 = scmp.lt.s32.totalorder %s399, 1
      %s403 = scalar_select %p402, %s399, 1
      %p404 = scmp.lt.s32.totalorder %s26, 0
      %s405 = scalar_select %p404, %s26, 0
      %s406 = sadd.s32 %s405, %s403
      %s407 = smul.addr %s401, 2
      %s408 = sadd.s32 %s406, %s407
      %s409 = smul.addr %s408, 2
      %s410 = scalar_lea.vmem %s4, %s409
      %p411 = pneg %p168
      %p412 = pneg %p165
      %p413 = pneg %p189
      %p414 = pneg %p186
      %p415 = pneg %p210
      %p416 = pneg %p207
      %p417 = pneg %p231
      %p418 = pneg %p228
      %p419 = pneg %p252
      %p420 = pneg %p249
      %p421 = pneg %p278
      %p422 = pneg %p275
      %s423 = smul.u32 2, %s25
      %p424 = scmp.lt.s32.totalorder %s423, 1
      %s425 = scalar_select %p424, %s423, 1
      %s426 = smul.addr %s425, 2
      %s427 = smul.addr %s426, 8
      %s428 = scalar_lea.vmem %s9, %s427
      %s429 = smul.u32 2, %s26
      %p430 = scmp.lt.s32.totalorder %s429, 1
      %s431 = scalar_select %p430, %s429, 1
      %s432 = smul.addr %s431, 2
      %s433 = smul.addr %s432, 4
      %s434 = scalar_lea.vmem %s0, %s433
      %s435 = smul.u32 2, %s26
      %s436 = smul.u32 2, %s25
      %p437 = scmp.lt.s32.totalorder %s436, 1
      %s438 = scalar_select %p437, %s436, 1
      %s439 = smul.addr %s438, 2
      %s440 = smul.addr %s439, 8
      %s441 = scalar_lea.vmem %s1, %s440
      %s442 = smul.u32 2, %s25
      %s443 = smul.u32 2, %s25
      %p444 = scmp.lt.s32.totalorder %s443, 1
      %s445 = scalar_select %p444, %s443, 1
      %s446 = smul.addr %s445, 2
      %s447 = smul.addr %s446, 8
      %s448 = scalar_lea.vmem %s2, %s447
      %s449 = smul.u32 2, %s25
      %p450 = scmp.lt.s32.totalorder %s27, 7
      %s451 = scalar_select %p450, %s27, 7
      %s452 = smul.addr %s451, 2
      %s453 = scalar_lea.vmem %s3, %s452
      %s454 = smul.u32 2, %s25
      %p455 = scmp.lt.s32.totalorder %s27, 7
      %s456 = scalar_select %p455, %s27, 7
      %p457 = scmp.lt.s32.totalorder %s454, 1
      %s458 = scalar_select %p457, %s454, 1
      %p459 = scmp.lt.s32.totalorder %s26, 0
      %s460 = scalar_select %p459, %s26, 0
      %s461 = sadd.s32 %s460, %s458
      %s462 = smul.addr %s456, 2
      %s463 = sadd.s32 %s461, %s462
      %s464 = smul.addr %s463, 2
      %s465 = scalar_lea.vmem %s4, %s464
      %s466 = smul.u32 2, %s25
      %s467 = smul.u32 2, %s25
      %p468 = scmp.lt.s32.totalorder %s467, 1
      %s469 = scalar_select %p468, %s467, 1
      %s470 = smul.addr %s469, 2
      %s471 = smul.addr %s470, 8
      %s472 = scalar_lea.vmem %s9, %s471
      %s473 = smul.u32 2, %s25
      %p475 = scmp.eq.s32.totalorder %s26, 0
      %p476 = scmp.eq.s32.totalorder %s27, 0
      %p477 = pnand %p475, %p476
      %p478 = pneg %p477
      // Predicated region
      $region57: #{ultra_forward.7} parent=55 // pred_check
        _
      $region58: #{ultra_forward.7} parent=55 // pred_check_branch
        %480 = sbr.rel (%p477) target = $region60
      $region59: #{ultra_forward.7} parent=55 // pred_region
        %v481 = vld [vmem:[%s448] sm:$0xff]
        %v482 = vld [vmem:[%s448 + $0x8] sm:$0xff]
        %v483 = vld [vmem:[%s448 + $0x10] sm:$0xff]
        %v484 = vld [vmem:[%s448 + $0x18] sm:$0xff]
        %485 = vst [vmem:[#allocation2] sm:$0xff] %v481
        %486 = vst [vmem:[#allocation2 + $0x8] sm:$0xff] %v482
        %487 = vst [vmem:[#allocation2 + $0x10] sm:$0xff] %v483
        %488 = vst [vmem:[#allocation2 + $0x18] sm:$0xff] %v484
      $region60: #{ultra_forward.7} parent=55 // pred_fallthru
        _
      %v489 = vld [vmem:[%s434] sm:$0xff]
      %v490 = vld [vmem:[%s434 + $0x8] sm:$0xff]
      %v491 = vld [vmem:[%s453] sm:$0x3]
      %v494 = vunpack.c.l.s4 1966171168
      %v495 = vunpack.c.0.s8 %v494
      %v496 = vlaneseq
      %v497 = vshrl.u32 %v496, 7
      %v498 = vsub.s32 %v495, %v497
      %v499 = vrot.slane %v491, %v498
      %v500 = vcombine.high %v499, %v499
      %v502 = vunpack.c.l.s4 1966171168
      %v503 = vunpack.c.0.s8 %v502
      %v504 = vlaneseq
      %v505 = vshrl.u32 %v504, 7
      %v506 = vsub.s32 %v503, %v505
      %v507 = vrot.slane %v499, %v506
      %v509 = vunpack.c.l.s4 1966171168
      %v510 = vunpack.c.0.s8 %v509
      %v511 = vlaneseq
      %v512 = vshrl.u32 %v511, 7
      %v513 = vsub.s32 %v510, %v512
      %v514 = vrot.slane %v500, %v513
      %v516 = vpack.i.b16 %v507, %v507
      %v518 = vlaneseq
      %v519 = vshrl.u32 %v518, 7
      %v520 = vsub.s32 0, %v519
      %v521 = vrot.slane %v516, %v520
      %v523 = vpack.i.b16 %v514, %v514
      %v525 = vlaneseq
      %v526 = vshrl.u32 %v525, 7
      %v527 = vsub.s32 0, %v526
      %v528 = vrot.slane %v523, %v527
      %v531 = vunpack.c.l.b16 %v521
      %v532 = vunpack.c.l.b16 %v528
      %v533 = vpack.c.b16 %v532, %v531
      %v535 = vmul.bf16 %v489, %v533
      %v536 = vmul.bf16 %v490, %v533
      %v537 = vld [vmem:[%s465] sm:$0x3]
      %v538 = vld [vmem:[%s465 + $0x2] sm:$0x3]
      %v539 = vunpack.c.l.s8.bf16 %v537
      %v540 = vunpack.c.l.s8.bf16 %v538
      %v541 = vld [vmem:[#allocation2] sm:$0xff]
      %v542 = vld [vmem:[#allocation2 + $0x8] sm:$0xff]
      %v543 = vld [vmem:[#allocation2 + $0x10] sm:$0xff]
      %v544 = vld [vmem:[#allocation2 + $0x18] sm:$0xff]
      %v547 = vunpack.c.l.b16 %v539
      %v548 = vunpack.c.l.b16 %v540
      %v549 = vpack.c.b16 %v548, %v547
      %v552 = vunpack.c.l.b16 %v535
      %v553 = vunpack.c.h.b16 %v535
      %v554 = vunpack.c.l.b16 %v536
      %v555 = vunpack.c.h.b16 %v536
      %v556 = vpack.c.b16 %v554, %v552
      %v557 = vpack.c.b16 %v555, %v553
      %vm560 = vcmask 130048
      %v562 = vsel %vm560, %v549, 0
      %564 = vmatprep.subr.bf16.mxu0 %v557
      %565 = vmatpush1.bf16.msra.mxu0 %v556
      %566 = vmatprep.subr.bf16.mxu0 0
      %567 = vmatpush1.bf16.msra.mxu0 0
      %568 = vmatprep.subr.bf16.mxu0 0
      %569 = vmatpush1.bf16.msra.mxu0 0
      %570 = vmatprep.subr.bf16.mxu0 0
      %571 = vmatpush1.bf16.msra.mxu0 0
      %572 = vmatprep.subr.bf16.mxu0 0
      %573 = vmatpush1.bf16.msra.mxu0 0
      %574 = vmatprep.subr.bf16.mxu0 0
      %575 = vmatpush1.bf16.msra.mxu0 0
      %576 = vmatprep.subr.bf16.mxu0 0
      %577 = vmatpush1.bf16.msra.mxu0 0
      %578 = vmatprep.subr.bf16.mxu0 0
      %579 = vmatpush1.bf16.msra.mxu0 0
      %580 = vmatprep.subr.bf16.mxu0 0
      %581 = vmatpush1.bf16.msra.mxu0 0
      %582 = vmatprep.subr.bf16.mxu0 0
      %583 = vmatpush1.bf16.msra.mxu0 0
      %584 = vmatprep.subr.bf16.mxu0 0
      %585 = vmatpush1.bf16.msra.mxu0 0
      %586 = vmatprep.subr.bf16.mxu0 0
      %587 = vmatpush1.bf16.msra.mxu0 0
      %588 = vmatprep.subr.bf16.mxu0 0
      %589 = vmatpush1.bf16.msra.mxu0 0
      %590 = vmatprep.subr.bf16.mxu0 0
      %591 = vmatpush1.bf16.msra.mxu0 0
      %592 = vmatprep.subr.bf16.mxu0 0
      %593 = vmatpush1.bf16.msra.mxu0 0
      %594 = vmatprep.subr.bf16.mxu0 0
      %595 = vmatpush1.bf16.msra.mxu0 0
      %596 = vmatprep.mubr.bf16.mxu0 0
      %597 = vmatmul.mubr.bf16.gmra.mrb[0].mxu0 %v562
      %v598 = vpop.f32.mrb[0].mxu0
      %v599 = vadd.f32 0.0, %v598
      %v600 = vpop.f32.mrb[0].mxu0
      %v601 = vadd.f32 0.0, %v600
      %v602 = vpop.f32.mrb[0].mxu0
      %v603 = vadd.f32 0.0, %v602
      %v604 = vpop.f32.mrb[0].mxu0
      %v605 = vadd.f32 0.0, %v604
      %606 = vdwg.mxu0
      %v607 = vadd.f32 %v541, %v599
      %v608 = vadd.f32 %v542, %v601
      %v609 = vadd.f32 %v543, %v603
      %v610 = vadd.f32 %v544, %v605
      %611 = vst [vmem:[#allocation2] sm:$0xff] %v607
      %612 = vst [vmem:[#allocation2 + $0x8] sm:$0xff] %v608
      %613 = vst [vmem:[#allocation2 + $0x10] sm:$0xff] %v609
      %614 = vst [vmem:[#allocation2 + $0x18] sm:$0xff] %v610
      %p615 = scmp.eq.s32.totalorder %s27, 7
      %p616 = pnand %p475, %p615
      %p617 = pneg %p616
      // Predicated region
      $region61: #{ultra_forward.7} parent=55 // pred_check
        _
      $region62: #{ultra_forward.7} parent=55 // pred_check_branch
        %619 = sbr.rel (%p616) target = $region64
      $region63: #{ultra_forward.7} parent=55 // pred_region
        %v620 = vld [vmem:[%s441] sm:$0xff]
        %v621 = vld [vmem:[%s441 + $0x8] sm:$0xff]
        %v622 = vld [vmem:[%s441 + $0x10] sm:$0xff]
        %v623 = vld [vmem:[%s441 + $0x18] sm:$0xff]
        %v624 = vld [vmem:[#allocation2] sm:$0xff]
        %v625 = vld [vmem:[#allocation2 + $0x8] sm:$0xff]
        %v626 = vld [vmem:[#allocation2 + $0x10] sm:$0xff]
        %v627 = vld [vmem:[#allocation2 + $0x18] sm:$0xff]
        %v628 = vld [vmem:[%s5] sm:$0xff]
        %v629 = vld [vmem:[%s5 + $0x8] sm:$0xff]
        %v630 = vld [vmem:[%s5 + $0x10] sm:$0xff]
        %v631 = vld [vmem:[%s5 + $0x18] sm:$0xff]
        %v632 = vld [vmem:[%s5 + $0x20] sm:$0xff]
        %v633 = vld [vmem:[%s5 + $0x28] sm:$0xff]
        %v634 = vld [vmem:[%s5 + $0x30] sm:$0xff]
        %v635 = vld [vmem:[%s5 + $0x38] sm:$0xff]
        %v636 = vld [vmem:[%s5 + $0x40] sm:$0xff]
        %v637 = vld [vmem:[%s5 + $0x48] sm:$0xff]
        %v638 = vld [vmem:[%s5 + $0x50] sm:$0xff]
        %v639 = vld [vmem:[%s5 + $0x58] sm:$0xff]
        %v640 = vld [vmem:[%s5 + $0x60] sm:$0xff]
        %v641 = vld [vmem:[%s5 + $0x68] sm:$0xff]
        %v642 = vld [vmem:[%s5 + $0x70] sm:$0xff]
        %v643 = vld [vmem:[%s5 + $0x78] sm:$0xff]
        %v644 = vld [vmem:[%s5 + $0x80] sm:$0xff]
        %v645 = vld [vmem:[%s5 + $0x88] sm:$0xff]
        %v646 = vld [vmem:[%s5 + $0x90] sm:$0xff]
        %v647 = vld [vmem:[%s5 + $0x98] sm:$0xff]
        %v648 = vld [vmem:[%s5 + $0xa0] sm:$0xff]
        %v649 = vld [vmem:[%s5 + $0xa8] sm:$0xff]
        %v650 = vld [vmem:[%s5 + $0xb0] sm:$0xff]
        %v651 = vld [vmem:[%s5 + $0xb8] sm:$0xff]
        %v652 = vld [vmem:[%s5 + $0xc0] sm:$0xff]
        %v653 = vld [vmem:[%s5 + $0xc8] sm:$0xff]
        %v654 = vld [vmem:[%s5 + $0xd0] sm:$0xff]
        %v655 = vld [vmem:[%s5 + $0xd8] sm:$0xff]
        %v656 = vld [vmem:[%s5 + $0xe0] sm:$0xff]
        %v657 = vld [vmem:[%s5 + $0xe8] sm:$0xff]
        %v658 = vld [vmem:[%s5 + $0xf0] sm:$0xff]
        %v659 = vld [vmem:[%s5 + $0xf8] sm:$0xff]
        %v660 = vld [vmem:[%s6] sm:$0x1]
        %v662 = vlaneseq
        %v663 = vshrl.u32 %v662, 7
        %v664 = vsub.s32 0, %v663
        %v665 = vrot.slane %v660, %v664
        %667 = vmatprep.subr.mxu0 0.0
        %668 = vmatpush1.msra.mxu0 %v628
        %669 = vmatprep.subr.mxu0 0.0
        %670 = vmatpush1.msra.mxu0 %v629
        %671 = vmatprep.subr.mxu0 0.0
        %672 = vmatpush1.msra.mxu0 %v630
        %673 = vmatprep.subr.mxu0 0.0
        %674 = vmatpush1.msra.mxu0 %v631
        %675 = vmatprep.subr.mxu0 0.0
        %676 = vmatpush1.msra.mxu0 %v632
        %677 = vmatprep.subr.mxu0 0.0
        %678 = vmatpush1.msra.mxu0 %v633
        %679 = vmatprep.subr.mxu0 0.0
        %680 = vmatpush1.msra.mxu0 %v634
        %681 = vmatprep.subr.mxu0 0.0
        %682 = vmatpush1.msra.mxu0 %v635
        %683 = vmatprep.subr.mxu0 0.0
        %684 = vmatpush1.msra.mxu0 %v636
        %685 = vmatprep.subr.mxu0 0.0
        %686 = vmatpush1.msra.mxu0 %v637
        %687 = vmatprep.subr.mxu0 0.0
        %688 = vmatpush1.msra.mxu0 %v638
        %689 = vmatprep.subr.mxu0 0.0
        %690 = vmatpush1.msra.mxu0 %v639
        %691 = vmatprep.subr.mxu0 0.0
        %692 = vmatpush1.msra.mxu0 %v640
        %693 = vmatprep.subr.mxu0 0.0
        %694 = vmatpush1.msra.mxu0 %v641
        %695 = vmatprep.subr.mxu0 0.0
        %696 = vmatpush1.msra.mxu0 %v642
        %697 = vmatprep.subr.mxu0 0.0
        %698 = vmatpush1.msra.mxu0 %v643
        %699 = vmatprep.subr.mxu0 0.0
        %700 = vmatpush1.msra.mxu0 %v644
        %701 = vmatprep.subr.mxu0 0.0
        %702 = vmatpush1.msra.mxu0 %v645
        %703 = vmatprep.subr.mxu0 0.0
        %704 = vmatpush1.msra.mxu0 %v646
        %705 = vmatprep.subr.mxu0 0.0
        %706 = vmatpush1.msra.mxu0 %v647
        %707 = vmatprep.subr.mxu0 0.0
        %708 = vmatpush1.msra.mxu0 %v648
        %709 = vmatprep.subr.mxu0 0.0
        %710 = vmatpush1.msra.mxu0 %v649
        %711 = vmatprep.subr.mxu0 0.0
        %712 = vmatpush1.msra.mxu0 %v650
        %713 = vmatprep.subr.mxu0 0.0
        %714 = vmatpush1.msra.mxu0 %v651
        %715 = vmatprep.subr.mxu0 0.0
        %716 = vmatpush1.msra.mxu0 %v652
        %717 = vmatprep.subr.mxu0 0.0
        %718 = vmatpush1.msra.mxu0 %v653
        %719 = vmatprep.subr.mxu0 0.0
        %720 = vmatpush1.msra.mxu0 %v654
        %721 = vmatprep.subr.mxu0 0.0
        %722 = vmatpush1.msra.mxu0 %v655
        %723 = vmatprep.subr.mxu0 0.0
        %724 = vmatpush1.msra.mxu0 %v656
        %725 = vmatprep.subr.mxu0 0.0
        %726 = vmatpush1.msra.mxu0 %v657
        %727 = vmatprep.subr.mxu0 0.0
        %728 = vmatpush1.msra.mxu0 %v658
        %729 = vmatprep.subr.mxu0 0.0
        %730 = vmatpush1.msra.mxu0 %v659
        %731 = vmatprep.mubr.f32.mxu0 %v624
        %732 = vmatmul.mubr.f32.gmra.mrb[0].mxu0 %v620
        %v733 = vpop.f32.mrb[0].mxu0
        %v734 = vadd.f32 %v665, %v733
        %v735 = vpop.f32.mrb[0].mxu0
        %736 = vmatprep.mubr.f32.mxu0 %v626
        %737 = vmatmul.mubr.f32.gmra.mrb[0].mxu0 %v622
        %v738 = vpop.f32.mrb[0].mxu0
        %v739 = vadd.f32 %v665, %v738
        %v740 = vpop.f32.mrb[0].mxu0
        %741 = vdwg.mxu0
        %742 = vadd.xlane.f32.xlu0 %v734
        %v743 = vpop.xlane.xlu0 %742
        %744 = vadd.xlane.f32.xlu0 %v739
        %v745 = vpop.xlane.xlu0 %744
        %v746 = vrcp.pop 128.0
        %v747 = vmul.f32 %v743, %v746
        %v748 = vmul.f32 %v745, %v746
        %v749 = vsub.f32 %v734, %v747
        %v750 = vsub.f32 %v739, %v748
        %v751 = vmul.f32 %v749, %v749
        %v752 = vmul.f32 %v750, %v750
        %753 = vadd.xlane.f32.xlu0 %v751
        %v754 = vpop.xlane.xlu0 %753
        %755 = vadd.xlane.f32.xlu0 %v752
        %v756 = vpop.xlane.xlu0 %755
        %v757 = vmul.f32 %v754, %v746
        %v758 = vmul.f32 %v756, %v746
        %v759 = vadd.f32 %v757, 1e-05
        %v760 = vadd.f32 %v758, 1e-05
        %v761 = vrsqrt.pop %v759
        %v762 = vrsqrt.pop %v760
        %v763 = vmul.f32 %v749, %v761
        %v764 = vmul.f32 %v750, %v762
        %v765 = vld [vmem:[%s7] sm:$0x1]
        %v767 = vlaneseq
        %v768 = vshrl.u32 %v767, 7
        %v769 = vsub.s32 0, %v768
        %v770 = vrot.slane %v765, %v769
        %v772 = vmul.f32 %v763, %v770
        %v773 = vmul.f32 %v764, %v770
        %v774 = vld [vmem:[%s8] sm:$0x1]
        %v776 = vlaneseq
        %v777 = vshrl.u32 %v776, 7
        %v778 = vsub.s32 0, %v777
        %v779 = vrot.slane %v774, %v778
        %v781 = vadd.f32 %v772, %v779
        %v782 = vadd.f32 %v773, %v779
        %v783 = vmax.f32 %v781, 0.0
        %v784 = vmax.f32 %v782, 0.0
        %v785 = vadd.f32 %v783, %v620
        %v786 = vadd.f32 %v784, %v622
        %787 = vst [vmem:[%s472] sm:$0xff] %v785
        %788 = vst [vmem:[%s472 + $0x10] sm:$0xff] %v786
        %v789 = vld [vmem:[%s5] sm:$0xff]
        %v790 = vld [vmem:[%s5 + $0x8] sm:$0xff]
        %v791 = vld [vmem:[%s5 + $0x10] sm:$0xff]
        %v792 = vld [vmem:[%s5 + $0x18] sm:$0xff]
        %v793 = vld [vmem:[%s5 + $0x20] sm:$0xff]
        %v794 = vld [vmem:[%s5 + $0x28] sm:$0xff]
        %v795 = vld [vmem:[%s5 + $0x30] sm:$0xff]
        %v796 = vld [vmem:[%s5 + $0x38] sm:$0xff]
        %v797 = vld [vmem:[%s5 + $0x40] sm:$0xff]
        %v798 = vld [vmem:[%s5 + $0x48] sm:$0xff]
        %v799 = vld [vmem:[%s5 + $0x50] sm:$0xff]
        %v800 = vld [vmem:[%s5 + $0x58] sm:$0xff]
        %v801 = vld [vmem:[%s5 + $0x60] sm:$0xff]
        %v802 = vld [vmem:[%s5 + $0x68] sm:$0xff]
        %v803 = vld [vmem:[%s5 + $0x70] sm:$0xff]
        %v804 = vld [vmem:[%s5 + $0x78] sm:$0xff]
        %v805 = vld [vmem:[%s5 + $0x80] sm:$0xff]
        %v806 = vld [vmem:[%s5 + $0x88] sm:$0xff]
        %v807 = vld [vmem:[%s5 + $0x90] sm:$0xff]
        %v808 = vld [vmem:[%s5 + $0x98] sm:$0xff]
        %v809 = vld [vmem:[%s5 + $0xa0] sm:$0xff]
        %v810 = vld [vmem:[%s5 + $0xa8] sm:$0xff]
        %v811 = vld [vmem:[%s5 + $0xb0] sm:$0xff]
        %v812 = vld [vmem:[%s5 + $0xb8] sm:$0xff]
        %v813 = vld [vmem:[%s5 + $0xc0] sm:$0xff]
        %v814 = vld [vmem:[%s5 + $0xc8] sm:$0xff]
        %v815 = vld [vmem:[%s5 + $0xd0] sm:$0xff]
        %v816 = vld [vmem:[%s5 + $0xd8] sm:$0xff]
        %v817 = vld [vmem:[%s5 + $0xe0] sm:$0xff]
        %v818 = vld [vmem:[%s5 + $0xe8] sm:$0xff]
        %v819 = vld [vmem:[%s5 + $0xf0] sm:$0xff]
        %v820 = vld [vmem:[%s5 + $0xf8] sm:$0xff]
        %v821 = vld [vmem:[%s6] sm:$0x1]
        %v823 = vlaneseq
        %v824 = vshrl.u32 %v823, 7
        %v825 = vsub.s32 0, %v824
        %v826 = vrot.slane %v821, %v825
        %828 = vmatprep.subr.mxu0 0.0
        %829 = vmatpush1.msra.mxu0 %v789
        %830 = vmatprep.subr.mxu0 0.0
        %831 = vmatpush1.msra.mxu0 %v790
        %832 = vmatprep.subr.mxu0 0.0
        %833 = vmatpush1.msra.mxu0 %v791
        %834 = vmatprep.subr.mxu0 0.0
        %835 = vmatpush1.msra.mxu0 %v792
        %836 = vmatprep.subr.mxu0 0.0
        %837 = vmatpush1.msra.mxu0 %v793
        %838 = vmatprep.subr.mxu0 0.0
        %839 = vmatpush1.msra.mxu0 %v794
        %840 = vmatprep.subr.mxu0 0.0
        %841 = vmatpush1.msra.mxu0 %v795
        %842 = vmatprep.subr.mxu0 0.0
        %843 = vmatpush1.msra.mxu0 %v796
        %844 = vmatprep.subr.mxu0 0.0
        %845 = vmatpush1.msra.mxu0 %v797
        %846 = vmatprep.subr.mxu0 0.0
        %847 = vmatpush1.msra.mxu0 %v798
        %848 = vmatprep.subr.mxu0 0.0
        %849 = vmatpush1.msra.mxu0 %v799
        %850 = vmatprep.subr.mxu0 0.0
        %851 = vmatpush1.msra.mxu0 %v800
        %852 = vmatprep.subr.mxu0 0.0
        %853 = vmatpush1.msra.mxu0 %v801
        %854 = vmatprep.subr.mxu0 0.0
        %855 = vmatpush1.msra.mxu0 %v802
        %856 = vmatprep.subr.mxu0 0.0
        %857 = vmatpush1.msra.mxu0 %v803
        %858 = vmatprep.subr.mxu0 0.0
        %859 = vmatpush1.msra.mxu0 %v804
        %860 = vmatprep.subr.mxu0 0.0
        %861 = vmatpush1.msra.mxu0 %v805
        %862 = vmatprep.subr.mxu0 0.0
        %863 = vmatpush1.msra.mxu0 %v806
        %864 = vmatprep.subr.mxu0 0.0
        %865 = vmatpush1.msra.mxu0 %v807
        %866 = vmatprep.subr.mxu0 0.0
        %867 = vmatpush1.msra.mxu0 %v808
        %868 = vmatprep.subr.mxu0 0.0
        %869 = vmatpush1.msra.mxu0 %v809
        %870 = vmatprep.subr.mxu0 0.0
        %871 = vmatpush1.msra.mxu0 %v810
        %872 = vmatprep.subr.mxu0 0.0
        %873 = vmatpush1.msra.mxu0 %v811
        %874 = vmatprep.subr.mxu0 0.0
        %875 = vmatpush1.msra.mxu0 %v812
        %876 = vmatprep.subr.mxu0 0.0
        %877 = vmatpush1.msra.mxu0 %v813
        %878 = vmatprep.subr.mxu0 0.0
        %879 = vmatpush1.msra.mxu0 %v814
        %880 = vmatprep.subr.mxu0 0.0
        %881 = vmatpush1.msra.mxu0 %v815
        %882 = vmatprep.subr.mxu0 0.0
        %883 = vmatpush1.msra.mxu0 %v816
        %884 = vmatprep.subr.mxu0 0.0
        %885 = vmatpush1.msra.mxu0 %v817
        %886 = vmatprep.subr.mxu0 0.0
        %887 = vmatpush1.msra.mxu0 %v818
        %888 = vmatprep.subr.mxu0 0.0
        %889 = vmatpush1.msra.mxu0 %v819
        %890 = vmatprep.subr.mxu0 0.0
        %891 = vmatpush1.msra.mxu0 %v820
        %892 = vmatprep.mubr.f32.mxu0 %v625
        %893 = vmatmul.mubr.f32.gmra.mrb[0].mxu0 %v621
        %v894 = vpop.f32.mrb[0].mxu0
        %v895 = vadd.f32 %v826, %v894
        %v896 = vpop.f32.mrb[0].mxu0
        %897 = vmatprep.mubr.f32.mxu0 %v627
        %898 = vmatmul.mubr.f32.gmra.mrb[0].mxu0 %v623
        %v899 = vpop.f32.mrb[0].mxu0
        %v900 = vadd.f32 %v826, %v899
        %v901 = vpop.f32.mrb[0].mxu0
        %902 = vdwg.mxu0
        %903 = vadd.xlane.f32.xlu0 %v895
        %v904 = vpop.xlane.xlu0 %903
        %905 = vadd.xlane.f32.xlu0 %v900
        %v906 = vpop.xlane.xlu0 %905
        %v907 = vmul.f32 %v904, %v746
        %v908 = vmul.f32 %v906, %v746
        %v909 = vsub.f32 %v895, %v907
        %v910 = vsub.f32 %v900, %v908
        %v911 = vmul.f32 %v909, %v909
        %v912 = vmul.f32 %v910, %v910
        %913 = vadd.xlane.f32.xlu0 %v911
        %v914 = vpop.xlane.xlu0 %913
        %915 = vadd.xlane.f32.xlu0 %v912
        %v916 = vpop.xlane.xlu0 %915
        %v917 = vmul.f32 %v914, %v746
        %v918 = vmul.f32 %v916, %v746
        %v919 = vadd.f32 %v917, 1e-05
        %v920 = vadd.f32 %v918, 1e-05
        %v921 = vrsqrt.pop %v919
        %v922 = vrsqrt.pop %v920
        %v923 = vmul.f32 %v909, %v921
        %v924 = vmul.f32 %v910, %v922
        %v925 = vld [vmem:[%s7] sm:$0x1]
        %v927 = vlaneseq
        %v928 = vshrl.u32 %v927, 7
        %v929 = vsub.s32 0, %v928
        %v930 = vrot.slane %v925, %v929
        %v932 = vmul.f32 %v923, %v930
        %v933 = vmul.f32 %v924, %v930
        %v934 = vld [vmem:[%s8] sm:$0x1]
        %v936 = vlaneseq
        %v937 = vshrl.u32 %v936, 7
        %v938 = vsub.s32 0, %v937
        %v939 = vrot.slane %v934, %v938
        %v941 = vadd.f32 %v932, %v939
        %v942 = vadd.f32 %v933, %v939
        %v943 = vmax.f32 %v941, 0.0
        %v944 = vmax.f32 %v942, 0.0
        %v945 = vadd.f32 %v943, %v621
        %v946 = vadd.f32 %v944, %v623
        %947 = vst [vmem:[%s472 + $0x8] sm:$0xff] %v945
        %948 = vst [vmem:[%s472 + $0x18] sm:$0xff] %v946
      $region64: #{ultra_forward.7} parent=55 // pred_fallthru
        _
      %s949 = smul.u32 2, %s25
      %p950 = scmp.lt.s32.totalorder %s949, 1
      %s951 = scalar_select %p950, %s949, 1
      %s952 = smul.addr %s951, 2
      %s953 = smul.addr %s952, 8
      %s954 = scalar_lea.vmem %s9, %s953
      // Predicated region
      $region65: #{ultra_forward.7} parent=55 // pred_check
        %p955 = pneg %p275
      $region66: #{ultra_forward.7} parent=55 // pred_check_branch
        %957 = sbr.rel (%p955) target = $region68
      $region67: #{ultra_forward.7} parent=55 // pred_region
        %s958 = smul.u32 2, %s25
      $region68: #{ultra_forward.7} parent=55 // pred_fallthru
        _
      // Predicated region
      $region69: #{ultra_forward.7} parent=55 // pred_check
        %p959 = pneg %p275
      $region70: #{ultra_forward.7} parent=55 // pred_check_branch
        %961 = sbr.rel (%p959) target = $region72
      $region71: #{ultra_forward.7} parent=55 // pred_region
        %s962 = smul.u32 2, %s25
        %p963 = scmp.lt.s32.totalorder %s962, 1
        %s964 = scalar_select %p963, %s962, 1
        %s965 = smul.addr %s964, 2
        %s966 = smul.addr %s965, 8
        %s967 = scalar_lea.vmem %s9, %s966
      $region72: #{ultra_forward.7} parent=55 // pred_fallthru
        _
    $region56: #{ultra_forward.7} parent=5 // pred_fallthru
      _
    %p968 = scmp.le.s32.totalorder 2, %s15
    // Predicated region
    $region73: #{ultra_forward.7} parent=5 // pred_check
      %p969 = pneg %p968
    $region74: #{ultra_forward.7} parent=5 // pred_check_branch
      %971 = sbr.rel (%p969) target = $region76
    $region75: #{ultra_forward.7} parent=5 // pred_region
      %s972 = ssub.s32 %s15, 2
    $region76: #{ultra_forward.7} parent=5 // pred_fallthru
      _
  $region6: #{ultra_forward.7} parent=0 // loop_footer
    %s19 = sadd.s32 1, %s15
  $region7: #{ultra_forward.7} parent=0 // loop_footer_branch
    %14 = sbr.rel target = $region3
  $region8: #{ultra_forward.7} parent=0 // loop_exit
    _

</llo_original>
